<compile_context>
chip_gen: v5e
topology: v5e:2x2
jax: 0.10.0
libtpu: 0.0.40
codegen_flags: <defaults>
</compile_context>

<pallas_src>
import math
import functools

import jax
import jax.numpy as jnp
from jax.experimental import pallas as pl
from jax.experimental.pallas import tpu as pltpu


# Row-tile targets. The FFN tile is capped so TM * d_ff * 4B (f32 intermediate)
# plus double-buffered weight/input tiles stays comfortably under v7x's 64 MiB
# VMEM; v5e/v6e (128 MiB) have extra headroom.
_ROW_TILE = 512
_FFN_ROW_TILE = 256


def _pick_row_tile(rows, target):
    """Largest row tile that divides `rows`, is a multiple of 8 and <= target."""
    if rows <= target:
        return rows
    for tm in range(target - (target % 8), 7, -8):
        if rows % tm == 0:
            return tm
    return rows


# ----------------------------- kernel helpers -------------------------------

def _layernorm(x, a, b, eps):
    d = x.shape[-1]
    mean = jnp.mean(x, axis=-1, keepdims=True)
    xc = x - mean
    # torch.Tensor.std uses Bessel's correction (n-1); eps is added to std.
    std = jnp.sqrt(jnp.sum(xc * xc, axis=-1, keepdims=True) / (d - 1))
    return a * xc / (std + eps) + b


def _mha_core(q, k, v, m, *, h, scale):
    """Multi-head attention for one batch element, all heads in VMEM.

    q: [Tq, D], k/v: [Tk, D], m: [Mq, Tk] (Mq == Tq or 1). Returns [Tq, D].
    Head split/merge via static lane slices + concat (no HBM transposes).
    """
    D = q.shape[-1]
    dk = D // h
    # Hoist mask compare + broadcast out of the per-head loop.
    m_zero = jnp.broadcast_to(m == 0.0, (q.shape[0], k.shape[0]))
    outs = []
    for head in range(h):
        lo = head * dk
        qh = q[:, lo:lo + dk]
        kh = k[:, lo:lo + dk]
        vh = v[:, lo:lo + dk]
        s = jax.lax.dot_general(qh, kh, (((1,), (1,)), ((), ())),
                                preferred_element_type=jnp.float32) * scale
        s = jnp.where(m_zero, -1e9, s)            # masked_fill(mask == 0, -1e9)
        smax = jnp.max(s, axis=-1, keepdims=True)
        e = jnp.exp(s - smax)
        denom = jnp.sum(e, axis=-1, keepdims=True)
        p = e * pl.reciprocal(denom, approx=True)  # EUP slot, ~free
        outs.append(jnp.dot(p, vh, preferred_element_type=jnp.float32))
    return jnp.concatenate(outs, axis=-1)          # lane-dense single store


# ------------------------------ Pallas kernels ------------------------------

def _layernorm_kernel(x_ref, a_ref, b_ref, o_ref, *, eps):
    o_ref[...] = _layernorm(x_ref[...], a_ref[...], b_ref[...], eps)


def _ln_matmul_kernel(x_ref, a_ref, b_ref, w_ref, bias_ref, o_ref, *, eps):
    # LN(x) @ W + b   (fused pre-norm + projection)
    nx = _layernorm(x_ref[...], a_ref[...], b_ref[...], eps)
    o_ref[...] = (jnp.dot(nx, w_ref[...], preferred_element_type=jnp.float32)
                  + bias_ref[...])


def _linear_kernel(x_ref, w_ref, bias_ref, o_ref):
    o_ref[...] = (jnp.dot(x_ref[...], w_ref[...], preferred_element_type=jnp.float32)
                  + bias_ref[...])


def _matmul_residual_kernel(x_ref, w_ref, bias_ref, res_ref, o_ref):
    # res + x @ W + b   (output projection with fused residual add)
    o_ref[...] = (res_ref[...]
                  + jnp.dot(x_ref[...], w_ref[...], preferred_element_type=jnp.float32)
                  + bias_ref[...])


def _ln_ffn_residual_kernel(x_ref, a_ref, b_ref, w1_ref, b1_ref, w2_ref, b2_ref,
                            o_ref, *, eps):
    # x + FFN(LN(x))   (fused pre-norm + 2-layer MLP + residual)
    x = x_ref[...]
    nx = _layernorm(x, a_ref[...], b_ref[...], eps)
    h1 = jnp.dot(nx, w1_ref[...], preferred_element_type=jnp.float32) + b1_ref[...]
    h1 = jnp.maximum(h1, 0.0)
    o_ref[...] = x + jnp.dot(h1, w2_ref[...], preferred_element_type=jnp.float32) + b2_ref[...]


def _self_attn_kernel(qkv_ref, m_ref, o_ref, *, h, scale):
    D = o_ref.shape[-1]
    qkv = qkv_ref[0]                      # [T, 3D] packed
    q = qkv[:, 0:D]
    k = qkv[:, D:2 * D]
    v = qkv[:, 2 * D:3 * D]
    o_ref[0] = _mha_core(q, k, v, m_ref[0], h=h, scale=scale)


def _cross_attn_kernel(q_ref, kv_ref, m_ref, o_ref, *, h, scale):
    D = o_ref.shape[-1]
    kv = kv_ref[0]                        # [S, 2D] packed
    k = kv[:, 0:D]
    v = kv[:, D:2 * D]
    o_ref[0] = _mha_core(q_ref[0], k, v, m_ref[0], h=h, scale=scale)


# --------------------------- pallas_call wrappers ---------------------------

_PARALLEL = pltpu.CompilerParams(dimension_semantics=("parallel",))


def layer_norm(x2d, a, b, eps=1e-6):
    rows, d = x2d.shape
    tm = _pick_row_tile(rows, _ROW_TILE)
    return pl.pallas_call(
        functools.partial(_layernorm_kernel, eps=eps),
        out_shape=jax.ShapeDtypeStruct((rows, d), jnp.float32),
        grid=(rows // tm,),
        in_specs=[pl.BlockSpec((tm, d), lambda i: (i, 0)),
                  pl.BlockSpec((1, d), lambda i: (0, 0)),
                  pl.BlockSpec((1, d), lambda i: (0, 0))],
        out_specs=pl.BlockSpec((tm, d), lambda i: (i, 0)),
        compiler_params=_PARALLEL,
    )(x2d, a.reshape(1, d), b.reshape(1, d))


def ln_matmul(x2d, a, b, w, bias, eps=1e-6):
    rows, din = x2d.shape
    dout = w.shape[1]
    tm = _pick_row_tile(rows, _ROW_TILE)
    return pl.pallas_call(
        functools.partial(_ln_matmul_kernel, eps=eps),
        out_shape=jax.ShapeDtypeStruct((rows, dout), jnp.float32),
        grid=(rows // tm,),
        in_specs=[pl.BlockSpec((tm, din), lambda i: (i, 0)),
                  pl.BlockSpec((1, din), lambda i: (0, 0)),
                  pl.BlockSpec((1, din), lambda i: (0, 0)),
                  pl.BlockSpec((din, dout), lambda i: (0, 0)),
                  pl.BlockSpec((1, dout), lambda i: (0, 0))],
        out_specs=pl.BlockSpec((tm, dout), lambda i: (i, 0)),
        compiler_params=_PARALLEL,
    )(x2d, a.reshape(1, din), b.reshape(1, din), w, bias.reshape(1, dout))


def linear(x2d, w, bias):
    rows, din = x2d.shape
    dout = w.shape[1]
    tm = _pick_row_tile(rows, _ROW_TILE)
    return pl.pallas_call(
        _linear_kernel,
        out_shape=jax.ShapeDtypeStruct((rows, dout), jnp.float32),
        grid=(rows // tm,),
        in_specs=[pl.BlockSpec((tm, din), lambda i: (i, 0)),
                  pl.BlockSpec((din, dout), lambda i: (0, 0)),
                  pl.BlockSpec((1, dout), lambda i: (0, 0))],
        out_specs=pl.BlockSpec((tm, dout), lambda i: (i, 0)),
        compiler_params=_PARALLEL,
    )(x2d, w, bias.reshape(1, dout))


def matmul_residual(x2d, w, bias, res2d):
    rows, din = x2d.shape
    dout = w.shape[1]
    tm = _pick_row_tile(rows, _ROW_TILE)
    return pl.pallas_call(
        _matmul_residual_kernel,
        out_shape=jax.ShapeDtypeStruct((rows, dout), jnp.float32),
        grid=(rows // tm,),
        in_specs=[pl.BlockSpec((tm, din), lambda i: (i, 0)),
                  pl.BlockSpec((din, dout), lambda i: (0, 0)),
                  pl.BlockSpec((1, dout), lambda i: (0, 0)),
                  pl.BlockSpec((tm, dout), lambda i: (i, 0))],
        out_specs=pl.BlockSpec((tm, dout), lambda i: (i, 0)),
        compiler_params=_PARALLEL,
    )(x2d, w, bias.reshape(1, dout), res2d)


def ln_ffn_residual(x2d, a, b, w1, b1, w2, b2, eps=1e-6):
    rows, d = x2d.shape
    dff = w1.shape[1]
    tm = _pick_row_tile(rows, _FFN_ROW_TILE)
    return pl.pallas_call(
        functools.partial(_ln_ffn_residual_kernel, eps=eps),
        out_shape=jax.ShapeDtypeStruct((rows, d), jnp.float32),
        grid=(rows // tm,),
        in_specs=[pl.BlockSpec((tm, d), lambda i: (i, 0)),
                  pl.BlockSpec((1, d), lambda i: (0, 0)),
                  pl.BlockSpec((1, d), lambda i: (0, 0)),
                  pl.BlockSpec((d, dff), lambda i: (0, 0)),
                  pl.BlockSpec((1, dff), lambda i: (0, 0)),
                  pl.BlockSpec((dff, d), lambda i: (0, 0)),
                  pl.BlockSpec((1, d), lambda i: (0, 0))],
        out_specs=pl.BlockSpec((tm, d), lambda i: (i, 0)),
        compiler_params=_PARALLEL,
    )(x2d, a.reshape(1, d), b.reshape(1, d), w1, b1.reshape(1, dff),
      w2, b2.reshape(1, d))


def self_attention(qkv, mask, h, scale):
    B, T, d3 = qkv.shape
    D = d3 // 3
    Mq, Tk = mask.shape[1], mask.shape[2]
    return pl.pallas_call(
        functools.partial(_self_attn_kernel, h=h, scale=scale),
        out_shape=jax.ShapeDtypeStruct((B, T, D), jnp.float32),
        grid=(B,),
        in_specs=[pl.BlockSpec((1, T, d3), lambda i: (i, 0, 0)),
                  pl.BlockSpec((1, Mq, Tk), lambda i: (i, 0, 0))],
        out_specs=pl.BlockSpec((1, T, D), lambda i: (i, 0, 0)),
        compiler_params=_PARALLEL,
    )(qkv, mask)


def cross_attention(q, kv, mask, h, scale):
    B, T, D = q.shape
    S = kv.shape[1]
    Mq, Tk = mask.shape[1], mask.shape[2]
    return pl.pallas_call(
        functools.partial(_cross_attn_kernel, h=h, scale=scale),
        out_shape=jax.ShapeDtypeStruct((B, T, D), jnp.float32),
        grid=(B,),
        in_specs=[pl.BlockSpec((1, T, D), lambda i: (i, 0, 0)),
                  pl.BlockSpec((1, S, 2 * D), lambda i: (i, 0, 0)),
                  pl.BlockSpec((1, Mq, Tk), lambda i: (i, 0, 0))],
        out_specs=pl.BlockSpec((1, T, D), lambda i: (i, 0, 0)),
        compiler_params=_PARALLEL,
    )(q, kv, mask)


# ----------------------------- model (glue JAX) -----------------------------

def decoder_forward(params, x, memory, src_mask, tgt_mask, h):
    B, T, D = x.shape
    S = memory.shape[1]
    scale = 1.0 / math.sqrt(D // h)
    x2d = x.reshape(B * T, D)
    mem2d = memory.reshape(B * S, D)
    tgt_m = tgt_mask.astype(jnp.float32)      # [B, T, T]  (no per-head broadcast)
    src_m = src_mask.astype(jnp.float32)      # [B, 1, S]

    for p in params['layers']:
        sa, ca, ff = p['self_attn'], p['src_attn'], p['ff']

        # sublayer 0: x + SelfAttn(LN(x))    [LN+QKV fused; residual fused in Wo]
        qkv = ln_matmul(x2d, p['ln0']['a'], p['ln0']['b'], sa['wqkv'], sa['bqkv'])
        attn = self_attention(qkv.reshape(B, T, 3 * D), tgt_m, h, scale)
        x2d = matmul_residual(attn.reshape(B * T, D), sa['wo'], sa['bo'], x2d)

        # sublayer 1: x + SrcAttn(LN(x), memory)
        q = ln_matmul(x2d, p['ln1']['a'], p['ln1']['b'], ca['wq'], ca['bq'])
        kv = linear(mem2d, ca['wkv'], ca['bkv'])
        attn = cross_attention(q.reshape(B, T, D), kv.reshape(B, S, 2 * D),
                               src_m, h, scale)
        x2d = matmul_residual(attn.reshape(B * T, D), ca['wo'], ca['bo'], x2d)

        # sublayer 2: x + FFN(LN(x))         [LN+FFN+residual fused]
        x2d = ln_ffn_residual(x2d, p['ln2']['a'], p['ln2']['b'],
                              ff['w1'], ff['b1'], ff['w2'], ff['b2'])

    fn = params['final_norm']
    return layer_norm(x2d, fn['a'], fn['b']).reshape(B, T, D)


# --------------------------- pure-JAX reference -----------------------------

def _ref_layernorm(x, a, b, eps=1e-6):
    mean = x.mean(-1, keepdims=True)
    std = jnp.sqrt(((x - mean) ** 2).sum(-1, keepdims=True) / (x.shape[-1] - 1))
    return a * (x - mean) / (std + eps) + b


def _ref_mha(p, q_in, k_in, v_in, mask, h):
    B, Tq, D = q_in.shape
    dk = D // h

    def proj(x, w, b):
        return (x @ w + b).reshape(B, -1, h, dk).transpose(0, 2, 1, 3)

    q = proj(q_in, p['wq'], p['bq'])
    k = proj(k_in, p['wk'], p['bk'])
    v = proj(v_in, p['wv'], p['bv'])
    scores = jnp.einsum('bhqd,bhkd->bhqk', q, k) / math.sqrt(dk)
    m4 = jnp.broadcast_to(mask[:, None], scores.shape)
    scores = jnp.where(m4 == 0, -1e9, scores)
    p_attn = jax.nn.softmax(scores, axis=-1)
    out = jnp.einsum('bhqk,bhkd->bhqd', p_attn, v).transpose(0, 2, 1, 3).reshape(B, Tq, D)
    return out @ p['wo'] + p['bo']


def _ref_decoder_forward(params, x, memory, src_mask, tgt_mask, h):
    for p in params['layers']:
        nx = _ref_layernorm(x, p['ln0']['a'], p['ln0']['b'])
        x = x + _ref_mha(p['self_attn'], nx, nx, nx, tgt_mask, h)
        nx = _ref_layernorm(x, p['ln1']['a'], p['ln1']['b'])
        x = x + _ref_mha(p['src_attn'], nx, memory, memory, src_mask, h)
        nx = _ref_layernorm(x, p['ln2']['a'], p['ln2']['b'])
        ff = p['ff']
        x = x + (jnp.maximum(nx @ ff['w1'] + ff['b1'], 0.0) @ ff['w2'] + ff['b2'])
    fn = params['final_norm']
    return _ref_layernorm(x, fn['a'], fn['b'])


# ------------------------------- param init --------------------------------

def _init_linear(key, din, dout):
    kw, kb = jax.random.split(key)
    return {'w': 0.05 * jax.random.normal(kw, (din, dout), jnp.float32),
            'b': 0.05 * jax.random.normal(kb, (dout,), jnp.float32)}


def _init_attn(key, d_model):
    ks = jax.random.split(key, 4)
    q, k, v, o = (_init_linear(kk, d_model, d_model) for kk in ks)
    return {
        # individual weights (reference path)
        'wq': q['w'], 'bq': q['b'], 'wk': k['w'], 'bk': k['b'],
        'wv': v['w'], 'bv': v['b'], 'wo': o['w'], 'bo': o['b'],
        # packed weights (fused Pallas kernels)
        'wqkv': jnp.concatenate([q['w'], k['w'], v['w']], axis=1),
        'bqkv': jnp.concatenate([q['b'], k['b'], v['b']], axis=0),
        'wkv': jnp.concatenate([k['w'], v['w']], axis=1),
        'bkv': jnp.concatenate([k['b'], v['b']], axis=0),
    }


def _init_layer(key, d_model, d_ff):
    k_sa, k_ca, k1, k2 = jax.random.split(key, 4)
    ln = lambda: {'a': jnp.ones((d_model,), jnp.float32),
                  'b': jnp.zeros((d_model,), jnp.float32)}
    return {
        'self_attn': _init_attn(k_sa, d_model),
        'src_attn': _init_attn(k_ca, d_model),
        'ff': {'w1': 0.05 * jax.random.normal(k1, (d_model, d_ff), jnp.float32),
               'b1': jnp.zeros((d_ff,), jnp.float32),
               'w2': 0.05 * jax.random.normal(k2, (d_ff, d_model), jnp.float32),
               'b2': jnp.zeros((d_model,), jnp.float32)},
        'ln0': ln(), 'ln1': ln(), 'ln2': ln(),
    }


# ---------------------------------- main ------------------------------------

if __name__ == "__main__":
    B, T_tgt, T_src = 2, 8, 8
    d_model, h, d_ff, N = 32, 4, 64, 2

    root = jax.random.PRNGKey(0)
    k_layer, k_x, k_mem = jax.random.split(root, 3)

    # clones() deep-copies a single layer -> all N layers share identical init.
    layer_p = _init_layer(k_layer, d_model, d_ff)
    params = {'layers': [layer_p] * N,
              'final_norm': {'a': jnp.ones((d_model,), jnp.float32),
                             'b': jnp.zeros((d_model,), jnp.float32)}}

    x = jax.random.normal(k_x, (B, T_tgt, d_model), jnp.float32)
    memory = jax.random.normal(k_mem, (B, T_src, d_model), jnp.float32)

    # tgt_mask: causal (subsequent) mask, [B, T_tgt, T_tgt]
    tgt_mask = jnp.broadcast_to(jnp.tril(jnp.ones((T_tgt, T_tgt), jnp.float32)),
                                (B, T_tgt, T_tgt))
    # src_mask: padding mask, [B, 1, T_src]; batch 1 has last two positions padded
    src_mask = jnp.ones((B, 1, T_src), jnp.float32).at[1, 0, -2:].set(0.0)

    fwd = jax.jit(decoder_forward, static_argnums=(5,))
    out = jax.block_until_ready(fwd(params, x, memory, src_mask, tgt_mask, h))

    ref = _ref_decoder_forward(params, x, memory, src_mask, tgt_mask, h)
    assert out.shape == (B, T_tgt, d_model), out.shape
    # Tolerance 2e-3: approx reciprocal (EUP) in the softmax denominator.
    assert jnp.allclose(out, ref, atol=2e-3, rtol=2e-3), \
        float(jnp.max(jnp.abs(out - ref)))

    print("KERNEL_OK")
</pallas_src>

<mosaic_0001>
module attributes {stable_mosaic.version = 11 : i64} {
  func.func @_matmul_residual_kernel(%arg0: i32, %arg1: memref<16x32xf32, #tpu.memory_space<vmem>>, %arg2: memref<32x32xf32, #tpu.memory_space<vmem>>, %arg3: memref<1x32xf32, #tpu.memory_space<vmem>>, %arg4: memref<16x32xf32, #tpu.memory_space<vmem>>, %arg5: memref<16x32xf32, #tpu.memory_space<vmem>>) attributes {dimension_semantics = [#tpu.dimension_semantics<parallel>], iteration_bounds = array<i64: 1>, scalar_prefetch = 0 : i64, scratch_operands = 0 : i64, tpu.core_type = #tpu.core_type<tc>, window_params = [{transform_indices = @transform_0, window_bounds = array<i64: 16, 32>}, {pipeline_mode = #tpu.pipeline_mode<synchronous>, transform_indices = @transform_1, window_bounds = array<i64: 32, 32>}, {pipeline_mode = #tpu.pipeline_mode<synchronous>, transform_indices = @transform_2, window_bounds = array<i64: 1, 32>}, {transform_indices = @transform_3, window_bounds = array<i64: 16, 32>}, {transform_indices = @transform_4, window_bounds = array<i64: 16, 32>}]} {
    %c0 = arith.constant 0 : index
    %c0_0 = arith.constant 0 : index
    %0 = vector.load %arg4[%c0, %c0_0] : memref<16x32xf32, #tpu.memory_space<vmem>>, vector<16x32xf32>
    %c0_1 = arith.constant 0 : index
    %c0_2 = arith.constant 0 : index
    %1 = vector.load %arg1[%c0_1, %c0_2] : memref<16x32xf32, #tpu.memory_space<vmem>>, vector<16x32xf32>
    %c0_3 = arith.constant 0 : index
    %c0_4 = arith.constant 0 : index
    %2 = vector.load %arg2[%c0_3, %c0_4] : memref<32x32xf32, #tpu.memory_space<vmem>>, vector<32x32xf32>
    %cst = arith.constant dense<0.000000e+00> : vector<16x32xf32>
    %3 = tpu.matmul %1, %2, %cst {dimension_numbers = #tpu.dot_dimension_numbers<[1], [0], [0], [1], [0, 0, 1, 1], [], []>} : vector<16x32xf32>, vector<32x32xf32>, vector<16x32xf32> -> vector<16x32xf32>
    %4 = arith.addf %0, %3 : vector<16x32xf32>
    %c0_5 = arith.constant 0 : index
    %c0_6 = arith.constant 0 : index
    %5 = vector.load %arg3[%c0_5, %c0_6] : memref<1x32xf32, #tpu.memory_space<vmem>>, vector<1x32xf32>
    %6 = vector.broadcast %5 : vector<1x32xf32> to vector<16x32xf32>
    %7 = arith.addf %4, %6 : vector<16x32xf32>
    %c0_7 = arith.constant 0 : index
    %c0_8 = arith.constant 0 : index
    %8 = vector.load %arg5[%c0_7, %c0_8] : memref<16x32xf32, #tpu.memory_space<vmem>>, vector<16x32xf32>
    tpu.vector_store %arg5[%c0_7, %c0_8], %7 {strides = array<i32>} : memref<16x32xf32, #tpu.memory_space<vmem>>, vector<16x32xf32>,
    return
  }
  func.func @transform_0(%arg0: i32) -> (i32, i32) {
    %c0_i32 = arith.constant 0 : i32
    %c0_i32_0 = arith.constant 0 : i32
    return %arg0, %c0_i32 : i32, i32
  }
  func.func @transform_1(%arg0: i32) -> (i32, i32) {
    %c0_i32 = arith.constant 0 : i32
    %c0_i32_0 = arith.constant 0 : i32
    %c0_i32_1 = arith.constant 0 : i32
    return %c0_i32, %c0_i32_0 : i32, i32
  }
  func.func @transform_2(%arg0: i32) -> (i32, i32) {
    %c0_i32 = arith.constant 0 : i32
    %c0_i32_0 = arith.constant 0 : i32
    %c0_i32_1 = arith.constant 0 : i32
    return %c0_i32, %c0_i32_0 : i32, i32
  }
  func.func @transform_3(%arg0: i32) -> (i32, i32) {
    %c0_i32 = arith.constant 0 : i32
    %c0_i32_0 = arith.constant 0 : i32
    return %arg0, %c0_i32 : i32, i32
  }
  func.func @transform_4(%arg0: i32) -> (i32, i32) {
    %c0_i32 = arith.constant 0 : i32
    %c0_i32_0 = arith.constant 0 : i32
    return %arg0, %c0_i32 : i32, i32
  }
}

module attributes {stable_mosaic.version = 11 : i64} {
  func.func @_ln_matmul_kernel(%arg0: i32, %arg1: memref<16x32xf32, #tpu.memory_space<vmem>>, %arg2: memref<1x32xf32, #tpu.memory_space<vmem>>, %arg3: memref<1x32xf32, #tpu.memory_space<vmem>>, %arg4: memref<32x96xf32, #tpu.memory_space<vmem>>, %arg5: memref<1x96xf32, #tpu.memory_space<vmem>>, %arg6: memref<16x96xf32, #tpu.memory_space<vmem>>) attributes {dimension_semantics = [#tpu.dimension_semantics<parallel>], iteration_bounds = array<i64: 1>, scalar_prefetch = 0 : i64, scratch_operands = 0 : i64, tpu.core_type = #tpu.core_type<tc>, window_params = [{transform_indices = @transform_0, window_bounds = array<i64: 16, 32>}, {pipeline_mode = #tpu.pipeline_mode<synchronous>, transform_indices = @transform_1, window_bounds = array<i64: 1, 32>}, {pipeline_mode = #tpu.pipeline_mode<synchronous>, transform_indices = @transform_2, window_bounds = array<i64: 1, 32>}, {pipeline_mode = #tpu.pipeline_mode<synchronous>, transform_indices = @transform_3, window_bounds = array<i64: 32, 96>}, {pipeline_mode = #tpu.pipeline_mode<synchronous>, transform_indices = @transform_4, window_bounds = array<i64: 1, 96>}, {transform_indices = @transform_5, window_bounds = array<i64: 16, 96>}]} {
    %c0 = arith.constant 0 : index
    %c0_0 = arith.constant 0 : index
    %0 = vector.load %arg1[%c0, %c0_0] : memref<16x32xf32, #tpu.memory_space<vmem>>, vector<16x32xf32>
    %c0_1 = arith.constant 0 : index
    %c0_2 = arith.constant 0 : index
    %1 = vector.load %arg2[%c0_1, %c0_2] : memref<1x32xf32, #tpu.memory_space<vmem>>, vector<1x32xf32>
    %c0_3 = arith.constant 0 : index
    %c0_4 = arith.constant 0 : index
    %2 = vector.load %arg3[%c0_3, %c0_4] : memref<1x32xf32, #tpu.memory_space<vmem>>, vector<1x32xf32>
    %cst = arith.constant dense<0.000000e+00> : vector<16xf32>
    %3 = vector.multi_reduction <add>, %0, %cst [1] : vector<16x32xf32> to vector<16xf32>
    %4 = vector.shape_cast %3 : vector<16xf32> to vector<16x1xf32>
    %cst_5 = arith.constant 3.200000e+01 : f32
    %5 = vector.broadcast %cst_5 : f32 to vector<16x1xf32>
    %6 = arith.divf %4, %5 : vector<16x1xf32>
    %7 = vector.broadcast %6 : vector<16x1xf32> to vector<16x32xf32>
    %8 = arith.subf %0, %7 : vector<16x32xf32>
    %9 = arith.mulf %8, %8 : vector<16x32xf32>
    %cst_6 = arith.constant dense<0.000000e+00> : vector<16xf32>
    %10 = vector.multi_reduction <add>, %9, %cst_6 [1] : vector<16x32xf32> to vector<16xf32>
    %11 = vector.shape_cast %10 : vector<16xf32> to vector<16x1xf32>
    %cst_7 = arith.constant 3.100000e+01 : f32
    %12 = vector.broadcast %cst_7 : f32 to vector<16x1xf32>
    %13 = arith.divf %11, %12 : vector<16x1xf32>
    %14 = math.sqrt %13 : vector<16x1xf32>
    %15 = vector.broadcast %1 : vector<1x32xf32> to vector<16x32xf32>
    %16 = arith.mulf %15, %8 : vector<16x32xf32>
    %cst_8 = arith.constant 9.99999997E-7 : f32
    %17 = vector.broadcast %cst_8 : f32 to vector<16x1xf32>
    %18 = arith.addf %14, %17 : vector<16x1xf32>
    %19 = vector.broadcast %18 : vector<16x1xf32> to vector<16x32xf32>
    %20 = arith.divf %16, %19 : vector<16x32xf32>
    %21 = vector.broadcast %2 : vector<1x32xf32> to vector<16x32xf32>
    %22 = arith.addf %20, %21 : vector<16x32xf32>
    %c0_9 = arith.constant 0 : index
    %c0_10 = arith.constant 0 : index
    %23 = vector.load %arg4[%c0_9, %c0_10] : memref<32x96xf32, #tpu.memory_space<vmem>>, vector<32x96xf32>
    %cst_11 = arith.constant dense<0.000000e+00> : vector<16x96xf32>
    %24 = tpu.matmul %22, %23, %cst_11 {dimension_numbers = #tpu.dot_dimension_numbers<[1], [0], [0], [1], [0, 0, 1, 1], [], []>} : vector<16x32xf32>, vector<32x96xf32>, vector<16x96xf32> -> vector<16x96xf32>
    %c0_12 = arith.constant 0 : index
    %c0_13 = arith.constant 0 : index
    %25 = vector.load %arg5[%c0_12, %c0_13] : memref<1x96xf32, #tpu.memory_space<vmem>>, vector<1x96xf32>
    %26 = vector.broadcast %25 : vector<1x96xf32> to vector<16x96xf32>
    %27 = arith.addf %24, %26 : vector<16x96xf32>
    %c0_14 = arith.constant 0 : index
    %c0_15 = arith.constant 0 : index
    %28 = vector.load %arg6[%c0_14, %c0_15] : memref<16x96xf32, #tpu.memory_space<vmem>>, vector<16x96xf32>
    tpu.vector_store %arg6[%c0_14, %c0_15], %27 {strides = array<i32>} : memref<16x96xf32, #tpu.memory_space<vmem>>, vector<16x96xf32>,
    return
  }
  func.func @transform_0(%arg0: i32) -> (i32, i32) {
    %c0_i32 = arith.constant 0 : i32
    %c0_i32_0 = arith.constant 0 : i32
    return %arg0, %c0_i32 : i32, i32
  }
  func.func @transform_1(%arg0: i32) -> (i32, i32) {
    %c0_i32 = arith.constant 0 : i32
    %c0_i32_0 = arith.constant 0 : i32
    %c0_i32_1 = arith.constant 0 : i32
    return %c0_i32, %c0_i32_0 : i32, i32
  }
  func.func @transform_2(%arg0: i32) -> (i32, i32) {
    %c0_i32 = arith.constant 0 : i32
    %c0_i32_0 = arith.constant 0 : i32
    %c0_i32_1 = arith.constant 0 : i32
    return %c0_i32, %c0_i32_0 : i32, i32
  }
  func.func @transform_3(%arg0: i32) -> (i32, i32) {
    %c0_i32 = arith.constant 0 : i32
    %c0_i32_0 = arith.constant 0 : i32
    %c0_i32_1 = arith.constant 0 : i32
    return %c0_i32, %c0_i32_0 : i32, i32
  }
  func.func @transform_4(%arg0: i32) -> (i32, i32) {
    %c0_i32 = arith.constant 0 : i32
    %c0_i32_0 = arith.constant 0 : i32
    %c0_i32_1 = arith.constant 0 : i32
    return %c0_i32, %c0_i32_0 : i32, i32
  }
  func.func @transform_5(%arg0: i32) -> (i32, i32) {
    %c0_i32 = arith.constant 0 : i32
    %c0_i32_0 = arith.constant 0 : i32
    return %arg0, %c0_i32 : i32, i32
  }
}

module attributes {stable_mosaic.version = 11 : i64} {
  func.func @_ln_matmul_kernel(%arg0: i32, %arg1: memref<16x32xf32, #tpu.memory_space<vmem>>, %arg2: memref<1x32xf32, #tpu.memory_space<vmem>>, %arg3: memref<1x32xf32, #tpu.memory_space<vmem>>, %arg4: memref<32x32xf32, #tpu.memory_space<vmem>>, %arg5: memref<1x32xf32, #tpu.memory_space<vmem>>, %arg6: memref<16x32xf32, #tpu.memory_space<vmem>>) attributes {dimension_semantics = [#tpu.dimension_semantics<parallel>], iteration_bounds = array<i64: 1>, scalar_prefetch = 0 : i64, scratch_operands = 0 : i64, tpu.core_type = #tpu.core_type<tc>, window_params = [{transform_indices = @transform_0, window_bounds = array<i64: 16, 32>}, {pipeline_mode = #tpu.pipeline_mode<synchronous>, transform_indices = @transform_1, window_bounds = array<i64: 1, 32>}, {pipeline_mode = #tpu.pipeline_mode<synchronous>, transform_indices = @transform_2, window_bounds = array<i64: 1, 32>}, {pipeline_mode = #tpu.pipeline_mode<synchronous>, transform_indices = @transform_3, window_bounds = array<i64: 32, 32>}, {pipeline_mode = #tpu.pipeline_mode<synchronous>, transform_indices = @transform_4, window_bounds = array<i64: 1, 32>}, {transform_indices = @transform_5, window_bounds = array<i64: 16, 32>}]} {
    %c0 = arith.constant 0 : index
    %c0_0 = arith.constant 0 : index
    %0 = vector.load %arg1[%c0, %c0_0] : memref<16x32xf32, #tpu.memory_space<vmem>>, vector<16x32xf32>
    %c0_1 = arith.constant 0 : index
    %c0_2 = arith.constant 0 : index
    %1 = vector.load %arg2[%c0_1, %c0_2] : memref<1x32xf32, #tpu.memory_space<vmem>>, vector<1x32xf32>
    %c0_3 = arith.constant 0 : index
    %c0_4 = arith.constant 0 : index
    %2 = vector.load %arg3[%c0_3, %c0_4] : memref<1x32xf32, #tpu.memory_space<vmem>>, vector<1x32xf32>
    %cst = arith.constant dense<0.000000e+00> : vector<16xf32>
    %3 = vector.multi_reduction <add>, %0, %cst [1] : vector<16x32xf32> to vector<16xf32>
    %4 = vector.shape_cast %3 : vector<16xf32> to vector<16x1xf32>
    %cst_5 = arith.constant 3.200000e+01 : f32
    %5 = vector.broadcast %cst_5 : f32 to vector<16x1xf32>
    %6 = arith.divf %4, %5 : vector<16x1xf32>
    %7 = vector.broadcast %6 : vector<16x1xf32> to vector<16x32xf32>
    %8 = arith.subf %0, %7 : vector<16x32xf32>
    %9 = arith.mulf %8, %8 : vector<16x32xf32>
    %cst_6 = arith.constant dense<0.000000e+00> : vector<16xf32>
    %10 = vector.multi_reduction <add>, %9, %cst_6 [1] : vector<16x32xf32> to vector<16xf32>
    %11 = vector.shape_cast %10 : vector<16xf32> to vector<16x1xf32>
    %cst_7 = arith.constant 3.100000e+01 : f32
    %12 = vector.broadcast %cst_7 : f32 to vector<16x1xf32>
    %13 = arith.divf %11, %12 : vector<16x1xf32>
    %14 = math.sqrt %13 : vector<16x1xf32>
    %15 = vector.broadcast %1 : vector<1x32xf32> to vector<16x32xf32>
    %16 = arith.mulf %15, %8 : vector<16x32xf32>
    %cst_8 = arith.constant 9.99999997E-7 : f32
    %17 = vector.broadcast %cst_8 : f32 to vector<16x1xf32>
    %18 = arith.addf %14, %17 : vector<16x1xf32>
    %19 = vector.broadcast %18 : vector<16x1xf32> to vector<16x32xf32>
    %20 = arith.divf %16, %19 : vector<16x32xf32>
    %21 = vector.broadcast %2 : vector<1x32xf32> to vector<16x32xf32>
    %22 = arith.addf %20, %21 : vector<16x32xf32>
    %c0_9 = arith.constant 0 : index
    %c0_10 = arith.constant 0 : index
    %23 = vector.load %arg4[%c0_9, %c0_10] : memref<32x32xf32, #tpu.memory_space<vmem>>, vector<32x32xf32>
    %cst_11 = arith.constant dense<0.000000e+00> : vector<16x32xf32>
    %24 = tpu.matmul %22, %23, %cst_11 {dimension_numbers = #tpu.dot_dimension_numbers<[1], [0], [0], [1], [0, 0, 1, 1], [], []>} : vector<16x32xf32>, vector<32x32xf32>, vector<16x32xf32> -> vector<16x32xf32>
    %c0_12 = arith.constant 0 : index
    %c0_13 = arith.constant 0 : index
    %25 = vector.load %arg5[%c0_12, %c0_13] : memref<1x32xf32, #tpu.memory_space<vmem>>, vector<1x32xf32>
    %26 = vector.broadcast %25 : vector<1x32xf32> to vector<16x32xf32>
    %27 = arith.addf %24, %26 : vector<16x32xf32>
    %c0_14 = arith.constant 0 : index
    %c0_15 = arith.constant 0 : index
    %28 = vector.load %arg6[%c0_14, %c0_15] : memref<16x32xf32, #tpu.memory_space<vmem>>, vector<16x32xf32>
    tpu.vector_store %arg6[%c0_14, %c0_15], %27 {strides = array<i32>} : memref<16x32xf32, #tpu.memory_space<vmem>>, vector<16x32xf32>,
    return
  }
  func.func @transform_0(%arg0: i32) -> (i32, i32) {
    %c0_i32 = arith.constant 0 : i32
    %c0_i32_0 = arith.constant 0 : i32
    return %arg0, %c0_i32 : i32, i32
  }
  func.func @transform_1(%arg0: i32) -> (i32, i32) {
    %c0_i32 = arith.constant 0 : i32
    %c0_i32_0 = arith.constant 0 : i32
    %c0_i32_1 = arith.constant 0 : i32
    return %c0_i32, %c0_i32_0 : i32, i32
  }
  func.func @transform_2(%arg0: i32) -> (i32, i32) {
    %c0_i32 = arith.constant 0 : i32
    %c0_i32_0 = arith.constant 0 : i32
    %c0_i32_1 = arith.constant 0 : i32
    return %c0_i32, %c0_i32_0 : i32, i32
  }
  func.func @transform_3(%arg0: i32) -> (i32, i32) {
    %c0_i32 = arith.constant 0 : i32
    %c0_i32_0 = arith.constant 0 : i32
    %c0_i32_1 = arith.constant 0 : i32
    return %c0_i32, %c0_i32_0 : i32, i32
  }
  func.func @transform_4(%arg0: i32) -> (i32, i32) {
    %c0_i32 = arith.constant 0 : i32
    %c0_i32_0 = arith.constant 0 : i32
    %c0_i32_1 = arith.constant 0 : i32
    return %c0_i32, %c0_i32_0 : i32, i32
  }
  func.func @transform_5(%arg0: i32) -> (i32, i32) {
    %c0_i32 = arith.constant 0 : i32
    %c0_i32_0 = arith.constant 0 : i32
    return %arg0, %c0_i32 : i32, i32
  }
}

module attributes {stable_mosaic.version = 11 : i64} {
  func.func @_self_attn_kernel(%arg0: i32, %arg1: memref<1x8x96xf32, #tpu.memory_space<vmem>>, %arg2: memref<1x8x8xf32, #tpu.memory_space<vmem>>, %arg3: memref<1x8x32xf32, #tpu.memory_space<vmem>>) attributes {dimension_semantics = [#tpu.dimension_semantics<parallel>], iteration_bounds = array<i64: 2>, scalar_prefetch = 0 : i64, scratch_operands = 0 : i64, tpu.core_type = #tpu.core_type<tc>, window_params = [{transform_indices = @transform_0, window_bounds = array<i64: 1, 8, 96>}, {transform_indices = @transform_1, window_bounds = array<i64: 1, 8, 8>}, {transform_indices = @transform_2, window_bounds = array<i64: 1, 8, 32>}]} {
    %c0 = arith.constant 0 : index
    %c0_0 = arith.constant 0 : index
    %c0_1 = arith.constant 0 : index
    %0 = vector.load %arg1[%c0, %c0_0, %c0_1] : memref<1x8x96xf32, #tpu.memory_space<vmem>>, vector<1x8x96xf32>
    %1 = vector.shape_cast %0 : vector<1x8x96xf32> to vector<8x96xf32>
    %2 = vector.extract_strided_slice %1 {offsets = [0, 0], sizes = [8, 32], strides = [1, 1]} : vector<8x96xf32> to vector<8x32xf32>
    %3 = vector.extract_strided_slice %1 {offsets = [0, 32], sizes = [8, 32], strides = [1, 1]} : vector<8x96xf32> to vector<8x32xf32>
    %4 = vector.extract_strided_slice %1 {offsets = [0, 64], sizes = [8, 32], strides = [1, 1]} : vector<8x96xf32> to vector<8x32xf32>
    %c0_2 = arith.constant 0 : index
    %c0_3 = arith.constant 0 : index
    %c0_4 = arith.constant 0 : index
    %5 = vector.load %arg2[%c0_2, %c0_3, %c0_4] : memref<1x8x8xf32, #tpu.memory_space<vmem>>, vector<1x8x8xf32>
    %6 = vector.shape_cast %5 : vector<1x8x8xf32> to vector<8x8xf32>
    %cst = arith.constant 0.000000e+00 : f32
    %7 = vector.broadcast %cst : f32 to vector<8x8xf32>
    %8 = arith.cmpf oeq, %6, %7 : vector<8x8xf32>
    %9 = vector.extract_strided_slice %2 {offsets = [0, 0], sizes = [8, 8], strides = [1, 1]} : vector<8x32xf32> to vector<8x8xf32>
    %10 = vector.extract_strided_slice %3 {offsets = [0, 0], sizes = [8, 8], strides = [1, 1]} : vector<8x32xf32> to vector<8x8xf32>
    %11 = vector.extract_strided_slice %4 {offsets = [0, 0], sizes = [8, 8], strides = [1, 1]} : vector<8x32xf32> to vector<8x8xf32>
    %cst_5 = arith.constant dense<0.000000e+00> : vector<8x8xf32>
    %12 = tpu.matmul %9, %10, %cst_5 {dimension_numbers = #tpu.dot_dimension_numbers<[1], [1], [0], [0], [0, 0, 1, 0], [], []>} : vector<8x8xf32>, vector<8x8xf32>, vector<8x8xf32> -> vector<8x8xf32>
    %cst_6 = arith.constant 0.353553385 : f32
    %13 = vector.broadcast %cst_6 : f32 to vector<8x8xf32>
    %14 = arith.mulf %12, %13 : vector<8x8xf32>
    %cst_7 = arith.constant -1.000000e+09 : f32
    %15 = vector.broadcast %cst_7 : f32 to vector<8x8xf32>
    %16 = arith.select %8, %15, %14 : vector<8x8xi1>, vector<8x8xf32>
    %cst_8 = arith.constant dense<0xFF800000> : vector<8xf32>
    %17 = vector.multi_reduction <maximumf>, %16, %cst_8 [1] : vector<8x8xf32> to vector<8xf32>
    %18 = vector.shape_cast %17 : vector<8xf32> to vector<8x1xf32>
    %19 = vector.broadcast %18 : vector<8x1xf32> to vector<8x8xf32>
    %20 = arith.subf %16, %19 : vector<8x8xf32>
    %21 = math.exp %20 : vector<8x8xf32>
    %cst_9 = arith.constant dense<0.000000e+00> : vector<8xf32>
    %22 = vector.multi_reduction <add>, %21, %cst_9 [1] : vector<8x8xf32> to vector<8xf32>
    %23 = vector.shape_cast %22 : vector<8xf32> to vector<8x1xf32>
    %24 = tpu.reciprocal %23 {approx = true} : vector<8x1xf32> -> vector<8x1xf32>
    %25 = vector.broadcast %24 : vector<8x1xf32> to vector<8x8xf32>
    %26 = arith.mulf %21, %25 : vector<8x8xf32>
    %cst_10 = arith.constant dense<0.000000e+00> : vector<8x8xf32>
    %27 = tpu.matmul %26, %11, %cst_10 {dimension_numbers = #tpu.dot_dimension_numbers<[1], [0], [0], [1], [0, 0, 1, 1], [], []>} : vector<8x8xf32>, vector<8x8xf32>, vector<8x8xf32> -> vector<8x8xf32>
    %28 = vector.extract_strided_slice %2 {offsets = [0, 8], sizes = [8, 8], strides = [1, 1]} : vector<8x32xf32> to vector<8x8xf32>
    %29 = vector.extract_strided_slice %3 {offsets = [0, 8], sizes = [8, 8], strides = [1, 1]} : vector<8x32xf32> to vector<8x8xf32>
    %30 = vector.extract_strided_slice %4 {offsets = [0, 8], sizes = [8, 8], strides = [1, 1]} : vector<8x32xf32> to vector<8x8xf32>
    %cst_11 = arith.constant dense<0.000000e+00> : vector<8x8xf32>
    %31 = tpu.matmul %28, %29, %cst_11 {dimension_numbers = #tpu.dot_dimension_numbers<[1], [1], [0], [0], [0, 0, 1, 0], [], []>} : vector<8x8xf32>, vector<8x8xf32>, vector<8x8xf32> -> vector<8x8xf32>
    %cst_12 = arith.constant 0.353553385 : f32
    %32 = vector.broadcast %cst_12 : f32 to vector<8x8xf32>
    %33 = arith.mulf %31, %32 : vector<8x8xf32>
    %cst_13 = arith.constant -1.000000e+09 : f32
    %34 = vector.broadcast %cst_13 : f32 to vector<8x8xf32>
    %35 = arith.select %8, %34, %33 : vector<8x8xi1>, vector<8x8xf32>
    %cst_14 = arith.constant dense<0xFF800000> : vector<8xf32>
    %36 = vector.multi_reduction <maximumf>, %35, %cst_14 [1] : vector<8x8xf32> to vector<8xf32>
    %37 = vector.shape_cast %36 : vector<8xf32> to vector<8x1xf32>
    %38 = vector.broadcast %37 : vector<8x1xf32> to vector<8x8xf32>
    %39 = arith.subf %35, %38 : vector<8x8xf32>
    %40 = math.exp %39 : vector<8x8xf32>
    %cst_15 = arith.constant dense<0.000000e+00> : vector<8xf32>
    %41 = vector.multi_reduction <add>, %40, %cst_15 [1] : vector<8x8xf32> to vector<8xf32>
    %42 = vector.shape_cast %41 : vector<8xf32> to vector<8x1xf32>
    %43 = tpu.reciprocal %42 {approx = true} : vector<8x1xf32> -> vector<8x1xf32>
    %44 = vector.broadcast %43 : vector<8x1xf32> to vector<8x8xf32>
    %45 = arith.mulf %40, %44 : vector<8x8xf32>
    %cst_16 = arith.constant dense<0.000000e+00> : vector<8x8xf32>
    %46 = tpu.matmul %45, %30, %cst_16 {dimension_numbers = #tpu.dot_dimension_numbers<[1], [0], [0], [1], [0, 0, 1, 1], [], []>} : vector<8x8xf32>, vector<8x8xf32>, vector<8x8xf32> -> vector<8x8xf32>
    %47 = vector.extract_strided_slice %2 {offsets = [0, 16], sizes = [8, 8], strides = [1, 1]} : vector<8x32xf32> to vector<8x8xf32>
    %48 = vector.extract_strided_slice %3 {offsets = [0, 16], sizes = [8, 8], strides = [1, 1]} : vector<8x32xf32> to vector<8x8xf32>
    %49 = vector.extract_strided_slice %4 {offsets = [0, 16], sizes = [8, 8], strides = [1, 1]} : vector<8x32xf32> to vector<8x8xf32>
    %cst_17 = arith.constant dense<0.000000e+00> : vector<8x8xf32>
    %50 = tpu.matmul %47, %48, %cst_17 {dimension_numbers = #tpu.dot_dimension_numbers<[1], [1], [0], [0], [0, 0, 1, 0], [], []>} : vector<8x8xf32>, vector<8x8xf32>, vector<8x8xf32> -> vector<8x8xf32>
    %cst_18 = arith.constant 0.353553385 : f32
    %51 = vector.broadcast %cst_18 : f32 to vector<8x8xf32>
    %52 = arith.mulf %50, %51 : vector<8x8xf32>
    %cst_19 = arith.constant -1.000000e+09 : f32
    %53 = vector.broadcast %cst_19 : f32 to vector<8x8xf32>
    %54 = arith.select %8, %53, %52 : vector<8x8xi1>, vector<8x8xf32>
    %cst_20 = arith.constant dense<0xFF800000> : vector<8xf32>
    %55 = vector.multi_reduction <maximumf>, %54, %cst_20 [1] : vector<8x8xf32> to vector<8xf32>
    %56 = vector.shape_cast %55 : vector<8xf32> to vector<8x1xf32>
    %57 = vector.broadcast %56 : vector<8x1xf32> to vector<8x8xf32>
    %58 = arith.subf %54, %57 : vector<8x8xf32>
    %59 = math.exp %58 : vector<8x8xf32>
    %cst_21 = arith.constant dense<0.000000e+00> : vector<8xf32>
    %60 = vector.multi_reduction <add>, %59, %cst_21 [1] : vector<8x8xf32> to vector<8xf32>
    %61 = vector.shape_cast %60 : vector<8xf32> to vector<8x1xf32>
    %62 = tpu.reciprocal %61 {approx = true} : vector<8x1xf32> -> vector<8x1xf32>
    %63 = vector.broadcast %62 : vector<8x1xf32> to vector<8x8xf32>
    %64 = arith.mulf %59, %63 : vector<8x8xf32>
    %cst_22 = arith.constant dense<0.000000e+00> : vector<8x8xf32>
    %65 = tpu.matmul %64, %49, %cst_22 {dimension_numbers = #tpu.dot_dimension_numbers<[1], [0], [0], [1], [0, 0, 1, 1], [], []>} : vector<8x8xf32>, vector<8x8xf32>, vector<8x8xf32> -> vector<8x8xf32>
    %66 = vector.extract_strided_slice %2 {offsets = [0, 24], sizes = [8, 8], strides = [1, 1]} : vector<8x32xf32> to vector<8x8xf32>
    %67 = vector.extract_strided_slice %3 {offsets = [0, 24], sizes = [8, 8], strides = [1, 1]} : vector<8x32xf32> to vector<8x8xf32>
    %68 = vector.extract_strided_slice %4 {offsets = [0, 24], sizes = [8, 8], strides = [1, 1]} : vector<8x32xf32> to vector<8x8xf32>
    %cst_23 = arith.constant dense<0.000000e+00> : vector<8x8xf32>
    %69 = tpu.matmul %66, %67, %cst_23 {dimension_numbers = #tpu.dot_dimension_numbers<[1], [1], [0], [0], [0, 0, 1, 0], [], []>} : vector<8x8xf32>, vector<8x8xf32>, vector<8x8xf32> -> vector<8x8xf32>
    %cst_24 = arith.constant 0.353553385 : f32
    %70 = vector.broadcast %cst_24 : f32 to vector<8x8xf32>
    %71 = arith.mulf %69, %70 : vector<8x8xf32>
    %cst_25 = arith.constant -1.000000e+09 : f32
    %72 = vector.broadcast %cst_25 : f32 to vector<8x8xf32>
    %73 = arith.select %8, %72, %71 : vector<8x8xi1>, vector<8x8xf32>
    %cst_26 = arith.constant dense<0xFF800000> : vector<8xf32>
    %74 = vector.multi_reduction <maximumf>, %73, %cst_26 [1] : vector<8x8xf32> to vector<8xf32>
    %75 = vector.shape_cast %74 : vector<8xf32> to vector<8x1xf32>
    %76 = vector.broadcast %75 : vector<8x1xf32> to vector<8x8xf32>
    %77 = arith.subf %73, %76 : vector<8x8xf32>
    %78 = math.exp %77 : vector<8x8xf32>
    %cst_27 = arith.constant dense<0.000000e+00> : vector<8xf32>
    %79 = vector.multi_reduction <add>, %78, %cst_27 [1] : vector<8x8xf32> to vector<8xf32>
    %80 = vector.shape_cast %79 : vector<8xf32> to vector<8x1xf32>
    %81 = tpu.reciprocal %80 {approx = true} : vector<8x1xf32> -> vector<8x1xf32>
    %82 = vector.broadcast %81 : vector<8x1xf32> to vector<8x8xf32>
    %83 = arith.mulf %78, %82 : vector<8x8xf32>
    %cst_28 = arith.constant dense<0.000000e+00> : vector<8x8xf32>
    %84 = tpu.matmul %83, %68, %cst_28 {dimension_numbers = #tpu.dot_dimension_numbers<[1], [0], [0], [1], [0, 0, 1, 1], [], []>} : vector<8x8xf32>, vector<8x8xf32>, vector<8x8xf32> -> vector<8x8xf32>
    %85 = tpu.concatenate %27, %46, %65, %84 in 1 : vector<8x8xf32>, vector<8x8xf32>, vector<8x8xf32>, vector<8x8xf32> -> vector<8x32xf32>
    %c0_29 = arith.constant 0 : index
    %c0_30 = arith.constant 0 : index
    %c0_31 = arith.constant 0 : index
    %86 = vector.load %arg3[%c0_29, %c0_30, %c0_31] : memref<1x8x32xf32, #tpu.memory_space<vmem>>, vector<1x8x32xf32>
    %87 = vector.shape_cast %86 : vector<1x8x32xf32> to vector<8x32xf32>
    %88 = vector.shape_cast %85 : vector<8x32xf32> to vector<1x8x32xf32>
    tpu.vector_store %arg3[%c0_29, %c0_30, %c0_31], %88 {strides = array<i32>} : memref<1x8x32xf32, #tpu.memory_space<vmem>>, vector<1x8x32xf32>,
    return
  }
  func.func @transform_0(%arg0: i32) -> (i32, i32, i32) {
    %c0_i32 = arith.constant 0 : i32
    %c0_i32_0 = arith.constant 0 : i32
    %c0_i32_1 = arith.constant 0 : i32
    return %arg0, %c0_i32, %c0_i32_0 : i32, i32, i32
  }
  func.func @transform_1(%arg0: i32) -> (i32, i32, i32) {
    %c0_i32 = arith.constant 0 : i32
    %c0_i32_0 = arith.constant 0 : i32
    %c0_i32_1 = arith.constant 0 : i32
    return %arg0, %c0_i32, %c0_i32_0 : i32, i32, i32
  }
  func.func @transform_2(%arg0: i32) -> (i32, i32, i32) {
    %c0_i32 = arith.constant 0 : i32
    %c0_i32_0 = arith.constant 0 : i32
    %c0_i32_1 = arith.constant 0 : i32
    return %arg0, %c0_i32, %c0_i32_0 : i32, i32, i32
  }
}

module attributes {stable_mosaic.version = 11 : i64} {
  func.func @_linear_kernel(%arg0: i32, %arg1: memref<16x32xf32, #tpu.memory_space<vmem>>, %arg2: memref<32x64xf32, #tpu.memory_space<vmem>>, %arg3: memref<1x64xf32, #tpu.memory_space<vmem>>, %arg4: memref<16x64xf32, #tpu.memory_space<vmem>>) attributes {dimension_semantics = [#tpu.dimension_semantics<parallel>], iteration_bounds = array<i64: 1>, scalar_prefetch = 0 : i64, scratch_operands = 0 : i64, tpu.core_type = #tpu.core_type<tc>, window_params = [{transform_indices = @transform_0, window_bounds = array<i64: 16, 32>}, {pipeline_mode = #tpu.pipeline_mode<synchronous>, transform_indices = @transform_1, window_bounds = array<i64: 32, 64>}, {pipeline_mode = #tpu.pipeline_mode<synchronous>, transform_indices = @transform_2, window_bounds = array<i64: 1, 64>}, {transform_indices = @transform_3, window_bounds = array<i64: 16, 64>}]} {
    %c0 = arith.constant 0 : index
    %c0_0 = arith.constant 0 : index
    %0 = vector.load %arg1[%c0, %c0_0] : memref<16x32xf32, #tpu.memory_space<vmem>>, vector<16x32xf32>
    %c0_1 = arith.constant 0 : index
    %c0_2 = arith.constant 0 : index
    %1 = vector.load %arg2[%c0_1, %c0_2] : memref<32x64xf32, #tpu.memory_space<vmem>>, vector<32x64xf32>
    %cst = arith.constant dense<0.000000e+00> : vector<16x64xf32>
    %2 = tpu.matmul %0, %1, %cst {dimension_numbers = #tpu.dot_dimension_numbers<[1], [0], [0], [1], [0, 0, 1, 1], [], []>} : vector<16x32xf32>, vector<32x64xf32>, vector<16x64xf32> -> vector<16x64xf32>
    %c0_3 = arith.constant 0 : index
    %c0_4 = arith.constant 0 : index
    %3 = vector.load %arg3[%c0_3, %c0_4] : memref<1x64xf32, #tpu.memory_space<vmem>>, vector<1x64xf32>
    %4 = vector.broadcast %3 : vector<1x64xf32> to vector<16x64xf32>
    %5 = arith.addf %2, %4 : vector<16x64xf32>
    %c0_5 = arith.constant 0 : index
    %c0_6 = arith.constant 0 : index
    %6 = vector.load %arg4[%c0_5, %c0_6] : memref<16x64xf32, #tpu.memory_space<vmem>>, vector<16x64xf32>
    tpu.vector_store %arg4[%c0_5, %c0_6], %5 {strides = array<i32>} : memref<16x64xf32, #tpu.memory_space<vmem>>, vector<16x64xf32>,
    return
  }
  func.func @transform_0(%arg0: i32) -> (i32, i32) {
    %c0_i32 = arith.constant 0 : i32
    %c0_i32_0 = arith.constant 0 : i32
    return %arg0, %c0_i32 : i32, i32
  }
  func.func @transform_1(%arg0: i32) -> (i32, i32) {
    %c0_i32 = arith.constant 0 : i32
    %c0_i32_0 = arith.constant 0 : i32
    %c0_i32_1 = arith.constant 0 : i32
    return %c0_i32, %c0_i32_0 : i32, i32
  }
  func.func @transform_2(%arg0: i32) -> (i32, i32) {
    %c0_i32 = arith.constant 0 : i32
    %c0_i32_0 = arith.constant 0 : i32
    %c0_i32_1 = arith.constant 0 : i32
    return %c0_i32, %c0_i32_0 : i32, i32
  }
  func.func @transform_3(%arg0: i32) -> (i32, i32) {
    %c0_i32 = arith.constant 0 : i32
    %c0_i32_0 = arith.constant 0 : i32
    return %arg0, %c0_i32 : i32, i32
  }
}

module attributes {stable_mosaic.version = 11 : i64} {
  func.func @_matmul_residual_kernel(%arg0: i32, %arg1: memref<16x32xf32, #tpu.memory_space<vmem>>, %arg2: memref<32x32xf32, #tpu.memory_space<vmem>>, %arg3: memref<1x32xf32, #tpu.memory_space<vmem>>, %arg4: memref<16x32xf32, #tpu.memory_space<vmem>>, %arg5: memref<16x32xf32, #tpu.memory_space<vmem>>) attributes {dimension_semantics = [#tpu.dimension_semantics<parallel>], iteration_bounds = array<i64: 1>, scalar_prefetch = 0 : i64, scratch_operands = 0 : i64, tpu.core_type = #tpu.core_type<tc>, window_params = [{transform_indices = @transform_0, window_bounds = array<i64: 16, 32>}, {pipeline_mode = #tpu.pipeline_mode<synchronous>, transform_indices = @transform_1, window_bounds = array<i64: 32, 32>}, {pipeline_mode = #tpu.pipeline_mode<synchronous>, transform_indices = @transform_2, window_bounds = array<i64: 1, 32>}, {transform_indices = @transform_3, window_bounds = array<i64: 16, 32>}, {transform_indices = @transform_4, window_bounds = array<i64: 16, 32>}]} {
    %c0 = arith.constant 0 : index
    %c0_0 = arith.constant 0 : index
    %0 = vector.load %arg4[%c0, %c0_0] : memref<16x32xf32, #tpu.memory_space<vmem>>, vector<16x32xf32>
    %c0_1 = arith.constant 0 : index
    %c0_2 = arith.constant 0 : index
    %1 = vector.load %arg1[%c0_1, %c0_2] : memref<16x32xf32, #tpu.memory_space<vmem>>, vector<16x32xf32>
    %c0_3 = arith.constant 0 : index
    %c0_4 = arith.constant 0 : index
    %2 = vector.load %arg2[%c0_3, %c0_4] : memref<32x32xf32, #tpu.memory_space<vmem>>, vector<32x32xf32>
    %cst = arith.constant dense<0.000000e+00> : vector<16x32xf32>
    %3 = tpu.matmul %1, %2, %cst {dimension_numbers = #tpu.dot_dimension_numbers<[1], [0], [0], [1], [0, 0, 1, 1], [], []>} : vector<16x32xf32>, vector<32x32xf32>, vector<16x32xf32> -> vector<16x32xf32>
    %4 = arith.addf %0, %3 : vector<16x32xf32>
    %c0_5 = arith.constant 0 : index
    %c0_6 = arith.constant 0 : index
    %5 = vector.load %arg3[%c0_5, %c0_6] : memref<1x32xf32, #tpu.memory_space<vmem>>, vector<1x32xf32>
    %6 = vector.broadcast %5 : vector<1x32xf32> to vector<16x32xf32>
    %7 = arith.addf %4, %6 : vector<16x32xf32>
    %c0_7 = arith.constant 0 : index
    %c0_8 = arith.constant 0 : index
    %8 = vector.load %arg5[%c0_7, %c0_8] : memref<16x32xf32, #tpu.memory_space<vmem>>, vector<16x32xf32>
    tpu.vector_store %arg5[%c0_7, %c0_8], %7 {strides = array<i32>} : memref<16x32xf32, #tpu.memory_space<vmem>>, vector<16x32xf32>,
    return
  }
  func.func @transform_0(%arg0: i32) -> (i32, i32) {
    %c0_i32 = arith.constant 0 : i32
    %c0_i32_0 = arith.constant 0 : i32
    return %arg0, %c0_i32 : i32, i32
  }
  func.func @transform_1(%arg0: i32) -> (i32, i32) {
    %c0_i32 = arith.constant 0 : i32
    %c0_i32_0 = arith.constant 0 : i32
    %c0_i32_1 = arith.constant 0 : i32
    return %c0_i32, %c0_i32_0 : i32, i32
  }
  func.func @transform_2(%arg0: i32) -> (i32, i32) {
    %c0_i32 = arith.constant 0 : i32
    %c0_i32_0 = arith.constant 0 : i32
    %c0_i32_1 = arith.constant 0 : i32
    return %c0_i32, %c0_i32_0 : i32, i32
  }
  func.func @transform_3(%arg0: i32) -> (i32, i32) {
    %c0_i32 = arith.constant 0 : i32
    %c0_i32_0 = arith.constant 0 : i32
    return %arg0, %c0_i32 : i32, i32
  }
  func.func @transform_4(%arg0: i32) -> (i32, i32) {
    %c0_i32 = arith.constant 0 : i32
    %c0_i32_0 = arith.constant 0 : i32
    return %arg0, %c0_i32 : i32, i32
  }
}

module attributes {stable_mosaic.version = 11 : i64} {
  func.func @_cross_attn_kernel(%arg0: i32, %arg1: memref<1x8x32xf32, #tpu.memory_space<vmem>>, %arg2: memref<1x8x64xf32, #tpu.memory_space<vmem>>, %arg3: memref<1x1x8xf32, #tpu.memory_space<vmem>>, %arg4: memref<1x8x32xf32, #tpu.memory_space<vmem>>) attributes {dimension_semantics = [#tpu.dimension_semantics<parallel>], iteration_bounds = array<i64: 2>, scalar_prefetch = 0 : i64, scratch_operands = 0 : i64, tpu.core_type = #tpu.core_type<tc>, window_params = [{transform_indices = @transform_0, window_bounds = array<i64: 1, 8, 32>}, {transform_indices = @transform_1, window_bounds = array<i64: 1, 8, 64>}, {transform_indices = @transform_2, window_bounds = array<i64: 1, 1, 8>}, {transform_indices = @transform_3, window_bounds = array<i64: 1, 8, 32>}]} {
    %c0 = arith.constant 0 : index
    %c0_0 = arith.constant 0 : index
    %c0_1 = arith.constant 0 : index
    %0 = vector.load %arg2[%c0, %c0_0, %c0_1] : memref<1x8x64xf32, #tpu.memory_space<vmem>>, vector<1x8x64xf32>
    %1 = vector.shape_cast %0 : vector<1x8x64xf32> to vector<8x64xf32>
    %2 = vector.extract_strided_slice %1 {offsets = [0, 0], sizes = [8, 32], strides = [1, 1]} : vector<8x64xf32> to vector<8x32xf32>
    %3 = vector.extract_strided_slice %1 {offsets = [0, 32], sizes = [8, 32], strides = [1, 1]} : vector<8x64xf32> to vector<8x32xf32>
    %c0_2 = arith.constant 0 : index
    %c0_3 = arith.constant 0 : index
    %c0_4 = arith.constant 0 : index
    %4 = vector.load %arg1[%c0_2, %c0_3, %c0_4] : memref<1x8x32xf32, #tpu.memory_space<vmem>>, vector<1x8x32xf32>
    %5 = vector.shape_cast %4 : vector<1x8x32xf32> to vector<8x32xf32>
    %c0_5 = arith.constant 0 : index
    %c0_6 = arith.constant 0 : index
    %c0_7 = arith.constant 0 : index
    %6 = vector.load %arg3[%c0_5, %c0_6, %c0_7] : memref<1x1x8xf32, #tpu.memory_space<vmem>>, vector<1x1x8xf32>
    %7 = vector.shape_cast %6 : vector<1x1x8xf32> to vector<1x8xf32>
    %cst = arith.constant 0.000000e+00 : f32
    %8 = vector.broadcast %cst : f32 to vector<1x8xf32>
    %9 = arith.cmpf oeq, %7, %8 : vector<1x8xf32>
    %10 = vector.shape_cast %9 : vector<1x8xi1> to vector<1x8xi1>
    %11 = vector.broadcast %10 : vector<1x8xi1> to vector<8x8xi1>
    %12 = vector.extract_strided_slice %5 {offsets = [0, 0], sizes = [8, 8], strides = [1, 1]} : vector<8x32xf32> to vector<8x8xf32>
    %13 = vector.extract_strided_slice %2 {offsets = [0, 0], sizes = [8, 8], strides = [1, 1]} : vector<8x32xf32> to vector<8x8xf32>
    %14 = vector.extract_strided_slice %3 {offsets = [0, 0], sizes = [8, 8], strides = [1, 1]} : vector<8x32xf32> to vector<8x8xf32>
    %cst_8 = arith.constant dense<0.000000e+00> : vector<8x8xf32>
    %15 = tpu.matmul %12, %13, %cst_8 {dimension_numbers = #tpu.dot_dimension_numbers<[1], [1], [0], [0], [0, 0, 1, 0], [], []>} : vector<8x8xf32>, vector<8x8xf32>, vector<8x8xf32> -> vector<8x8xf32>
    %cst_9 = arith.constant 0.353553385 : f32
    %16 = vector.broadcast %cst_9 : f32 to vector<8x8xf32>
    %17 = arith.mulf %15, %16 : vector<8x8xf32>
    %cst_10 = arith.constant -1.000000e+09 : f32
    %18 = vector.broadcast %cst_10 : f32 to vector<8x8xf32>
    %19 = arith.select %11, %18, %17 : vector<8x8xi1>, vector<8x8xf32>
    %cst_11 = arith.constant dense<0xFF800000> : vector<8xf32>
    %20 = vector.multi_reduction <maximumf>, %19, %cst_11 [1] : vector<8x8xf32> to vector<8xf32>
    %21 = vector.shape_cast %20 : vector<8xf32> to vector<8x1xf32>
    %22 = vector.broadcast %21 : vector<8x1xf32> to vector<8x8xf32>
    %23 = arith.subf %19, %22 : vector<8x8xf32>
    %24 = math.exp %23 : vector<8x8xf32>
    %cst_12 = arith.constant dense<0.000000e+00> : vector<8xf32>
    %25 = vector.multi_reduction <add>, %24, %cst_12 [1] : vector<8x8xf32> to vector<8xf32>
    %26 = vector.shape_cast %25 : vector<8xf32> to vector<8x1xf32>
    %27 = tpu.reciprocal %26 {approx = true} : vector<8x1xf32> -> vector<8x1xf32>
    %28 = vector.broadcast %27 : vector<8x1xf32> to vector<8x8xf32>
    %29 = arith.mulf %24, %28 : vector<8x8xf32>
    %cst_13 = arith.constant dense<0.000000e+00> : vector<8x8xf32>
    %30 = tpu.matmul %29, %14, %cst_13 {dimension_numbers = #tpu.dot_dimension_numbers<[1], [0], [0], [1], [0, 0, 1, 1], [], []>} : vector<8x8xf32>, vector<8x8xf32>, vector<8x8xf32> -> vector<8x8xf32>
    %31 = vector.extract_strided_slice %5 {offsets = [0, 8], sizes = [8, 8], strides = [1, 1]} : vector<8x32xf32> to vector<8x8xf32>
    %32 = vector.extract_strided_slice %2 {offsets = [0, 8], sizes = [8, 8], strides = [1, 1]} : vector<8x32xf32> to vector<8x8xf32>
    %33 = vector.extract_strided_slice %3 {offsets = [0, 8], sizes = [8, 8], strides = [1, 1]} : vector<8x32xf32> to vector<8x8xf32>
    %cst_14 = arith.constant dense<0.000000e+00> : vector<8x8xf32>
    %34 = tpu.matmul %31, %32, %cst_14 {dimension_numbers = #tpu.dot_dimension_numbers<[1], [1], [0], [0], [0, 0, 1, 0], [], []>} : vector<8x8xf32>, vector<8x8xf32>, vector<8x8xf32> -> vector<8x8xf32>
    %cst_15 = arith.constant 0.353553385 : f32
    %35 = vector.broadcast %cst_15 : f32 to vector<8x8xf32>
    %36 = arith.mulf %34, %35 : vector<8x8xf32>
    %cst_16 = arith.constant -1.000000e+09 : f32
    %37 = vector.broadcast %cst_16 : f32 to vector<8x8xf32>
    %38 = arith.select %11, %37, %36 : vector<8x8xi1>, vector<8x8xf32>
    %cst_17 = arith.constant dense<0xFF800000> : vector<8xf32>
    %39 = vector.multi_reduction <maximumf>, %38, %cst_17 [1] : vector<8x8xf32> to vector<8xf32>
    %40 = vector.shape_cast %39 : vector<8xf32> to vector<8x1xf32>
    %41 = vector.broadcast %40 : vector<8x1xf32> to vector<8x8xf32>
    %42 = arith.subf %38, %41 : vector<8x8xf32>
    %43 = math.exp %42 : vector<8x8xf32>
    %cst_18 = arith.constant dense<0.000000e+00> : vector<8xf32>
    %44 = vector.multi_reduction <add>, %43, %cst_18 [1] : vector<8x8xf32> to vector<8xf32>
    %45 = vector.shape_cast %44 : vector<8xf32> to vector<8x1xf32>
    %46 = tpu.reciprocal %45 {approx = true} : vector<8x1xf32> -> vector<8x1xf32>
    %47 = vector.broadcast %46 : vector<8x1xf32> to vector<8x8xf32>
    %48 = arith.mulf %43, %47 : vector<8x8xf32>
    %cst_19 = arith.constant dense<0.000000e+00> : vector<8x8xf32>
    %49 = tpu.matmul %48, %33, %cst_19 {dimension_numbers = #tpu.dot_dimension_numbers<[1], [0], [0], [1], [0, 0, 1, 1], [], []>} : vector<8x8xf32>, vector<8x8xf32>, vector<8x8xf32> -> vector<8x8xf32>
    %50 = vector.extract_strided_slice %5 {offsets = [0, 16], sizes = [8, 8], strides = [1, 1]} : vector<8x32xf32> to vector<8x8xf32>
    %51 = vector.extract_strided_slice %2 {offsets = [0, 16], sizes = [8, 8], strides = [1, 1]} : vector<8x32xf32> to vector<8x8xf32>
    %52 = vector.extract_strided_slice %3 {offsets = [0, 16], sizes = [8, 8], strides = [1, 1]} : vector<8x32xf32> to vector<8x8xf32>
    %cst_20 = arith.constant dense<0.000000e+00> : vector<8x8xf32>
    %53 = tpu.matmul %50, %51, %cst_20 {dimension_numbers = #tpu.dot_dimension_numbers<[1], [1], [0], [0], [0, 0, 1, 0], [], []>} : vector<8x8xf32>, vector<8x8xf32>, vector<8x8xf32> -> vector<8x8xf32>
    %cst_21 = arith.constant 0.353553385 : f32
    %54 = vector.broadcast %cst_21 : f32 to vector<8x8xf32>
    %55 = arith.mulf %53, %54 : vector<8x8xf32>
    %cst_22 = arith.constant -1.000000e+09 : f32
    %56 = vector.broadcast %cst_22 : f32 to vector<8x8xf32>
    %57 = arith.select %11, %56, %55 : vector<8x8xi1>, vector<8x8xf32>
    %cst_23 = arith.constant dense<0xFF800000> : vector<8xf32>
    %58 = vector.multi_reduction <maximumf>, %57, %cst_23 [1] : vector<8x8xf32> to vector<8xf32>
    %59 = vector.shape_cast %58 : vector<8xf32> to vector<8x1xf32>
    %60 = vector.broadcast %59 : vector<8x1xf32> to vector<8x8xf32>
    %61 = arith.subf %57, %60 : vector<8x8xf32>
    %62 = math.exp %61 : vector<8x8xf32>
    %cst_24 = arith.constant dense<0.000000e+00> : vector<8xf32>
    %63 = vector.multi_reduction <add>, %62, %cst_24 [1] : vector<8x8xf32> to vector<8xf32>
    %64 = vector.shape_cast %63 : vector<8xf32> to vector<8x1xf32>
    %65 = tpu.reciprocal %64 {approx = true} : vector<8x1xf32> -> vector<8x1xf32>
    %66 = vector.broadcast %65 : vector<8x1xf32> to vector<8x8xf32>
    %67 = arith.mulf %62, %66 : vector<8x8xf32>
    %cst_25 = arith.constant dense<0.000000e+00> : vector<8x8xf32>
    %68 = tpu.matmul %67, %52, %cst_25 {dimension_numbers = #tpu.dot_dimension_numbers<[1], [0], [0], [1], [0, 0, 1, 1], [], []>} : vector<8x8xf32>, vector<8x8xf32>, vector<8x8xf32> -> vector<8x8xf32>
    %69 = vector.extract_strided_slice %5 {offsets = [0, 24], sizes = [8, 8], strides = [1, 1]} : vector<8x32xf32> to vector<8x8xf32>
    %70 = vector.extract_strided_slice %2 {offsets = [0, 24], sizes = [8, 8], strides = [1, 1]} : vector<8x32xf32> to vector<8x8xf32>
    %71 = vector.extract_strided_slice %3 {offsets = [0, 24], sizes = [8, 8], strides = [1, 1]} : vector<8x32xf32> to vector<8x8xf32>
    %cst_26 = arith.constant dense<0.000000e+00> : vector<8x8xf32>
    %72 = tpu.matmul %69, %70, %cst_26 {dimension_numbers = #tpu.dot_dimension_numbers<[1], [1], [0], [0], [0, 0, 1, 0], [], []>} : vector<8x8xf32>, vector<8x8xf32>, vector<8x8xf32> -> vector<8x8xf32>
    %cst_27 = arith.constant 0.353553385 : f32
    %73 = vector.broadcast %cst_27 : f32 to vector<8x8xf32>
    %74 = arith.mulf %72, %73 : vector<8x8xf32>
    %cst_28 = arith.constant -1.000000e+09 : f32
    %75 = vector.broadcast %cst_28 : f32 to vector<8x8xf32>
    %76 = arith.select %11, %75, %74 : vector<8x8xi1>, vector<8x8xf32>
    %cst_29 = arith.constant dense<0xFF800000> : vector<8xf32>
    %77 = vector.multi_reduction <maximumf>, %76, %cst_29 [1] : vector<8x8xf32> to vector<8xf32>
    %78 = vector.shape_cast %77 : vector<8xf32> to vector<8x1xf32>
    %79 = vector.broadcast %78 : vector<8x1xf32> to vector<8x8xf32>
    %80 = arith.subf %76, %79 : vector<8x8xf32>
    %81 = math.exp %80 : vector<8x8xf32>
    %cst_30 = arith.constant dense<0.000000e+00> : vector<8xf32>
    %82 = vector.multi_reduction <add>, %81, %cst_30 [1] : vector<8x8xf32> to vector<8xf32>
    %83 = vector.shape_cast %82 : vector<8xf32> to vector<8x1xf32>
    %84 = tpu.reciprocal %83 {approx = true} : vector<8x1xf32> -> vector<8x1xf32>
    %85 = vector.broadcast %84 : vector<8x1xf32> to vector<8x8xf32>
    %86 = arith.mulf %81, %85 : vector<8x8xf32>
    %cst_31 = arith.constant dense<0.000000e+00> : vector<8x8xf32>
    %87 = tpu.matmul %86, %71, %cst_31 {dimension_numbers = #tpu.dot_dimension_numbers<[1], [0], [0], [1], [0, 0, 1, 1], [], []>} : vector<8x8xf32>, vector<8x8xf32>, vector<8x8xf32> -> vector<8x8xf32>
    %88 = tpu.concatenate %30, %49, %68, %87 in 1 : vector<8x8xf32>, vector<8x8xf32>, vector<8x8xf32>, vector<8x8xf32> -> vector<8x32xf32>
    %c0_32 = arith.constant 0 : index
    %c0_33 = arith.constant 0 : index
    %c0_34 = arith.constant 0 : index
    %89 = vector.load %arg4[%c0_32, %c0_33, %c0_34] : memref<1x8x32xf32, #tpu.memory_space<vmem>>, vector<1x8x32xf32>
    %90 = vector.shape_cast %89 : vector<1x8x32xf32> to vector<8x32xf32>
    %91 = vector.shape_cast %88 : vector<8x32xf32> to vector<1x8x32xf32>
    tpu.vector_store %arg4[%c0_32, %c0_33, %c0_34], %91 {strides = array<i32>} : memref<1x8x32xf32, #tpu.memory_space<vmem>>, vector<1x8x32xf32>,
    return
  }
  func.func @transform_0(%arg0: i32) -> (i32, i32, i32) {
    %c0_i32 = arith.constant 0 : i32
    %c0_i32_0 = arith.constant 0 : i32
    %c0_i32_1 = arith.constant 0 : i32
    return %arg0, %c0_i32, %c0_i32_0 : i32, i32, i32
  }
  func.func @transform_1(%arg0: i32) -> (i32, i32, i32) {
    %c0_i32 = arith.constant 0 : i32
    %c0_i32_0 = arith.constant 0 : i32
    %c0_i32_1 = arith.constant 0 : i32
    return %arg0, %c0_i32, %c0_i32_0 : i32, i32, i32
  }
  func.func @transform_2(%arg0: i32) -> (i32, i32, i32) {
    %c0_i32 = arith.constant 0 : i32
    %c0_i32_0 = arith.constant 0 : i32
    %c0_i32_1 = arith.constant 0 : i32
    return %arg0, %c0_i32, %c0_i32_0 : i32, i32, i32
  }
  func.func @transform_3(%arg0: i32) -> (i32, i32, i32) {
    %c0_i32 = arith.constant 0 : i32
    %c0_i32_0 = arith.constant 0 : i32
    %c0_i32_1 = arith.constant 0 : i32
    return %arg0, %c0_i32, %c0_i32_0 : i32, i32, i32
  }
}

module attributes {stable_mosaic.version = 11 : i64} {
  func.func @_ln_ffn_residual_kernel(%arg0: i32, %arg1: memref<16x32xf32, #tpu.memory_space<vmem>>, %arg2: memref<1x32xf32, #tpu.memory_space<vmem>>, %arg3: memref<1x32xf32, #tpu.memory_space<vmem>>, %arg4: memref<32x64xf32, #tpu.memory_space<vmem>>, %arg5: memref<1x64xf32, #tpu.memory_space<vmem>>, %arg6: memref<64x32xf32, #tpu.memory_space<vmem>>, %arg7: memref<1x32xf32, #tpu.memory_space<vmem>>, %arg8: memref<16x32xf32, #tpu.memory_space<vmem>>) attributes {dimension_semantics = [#tpu.dimension_semantics<parallel>], iteration_bounds = array<i64: 1>, scalar_prefetch = 0 : i64, scratch_operands = 0 : i64, tpu.core_type = #tpu.core_type<tc>, window_params = [{transform_indices = @transform_0, window_bounds = array<i64: 16, 32>}, {pipeline_mode = #tpu.pipeline_mode<synchronous>, transform_indices = @transform_1, window_bounds = array<i64: 1, 32>}, {pipeline_mode = #tpu.pipeline_mode<synchronous>, transform_indices = @transform_2, window_bounds = array<i64: 1, 32>}, {pipeline_mode = #tpu.pipeline_mode<synchronous>, transform_indices = @transform_3, window_bounds = array<i64: 32, 64>}, {pipeline_mode = #tpu.pipeline_mode<synchronous>, transform_indices = @transform_4, window_bounds = array<i64: 1, 64>}, {pipeline_mode = #tpu.pipeline_mode<synchronous>, transform_indices = @transform_5, window_bounds = array<i64: 64, 32>}, {pipeline_mode = #tpu.pipeline_mode<synchronous>, transform_indices = @transform_6, window_bounds = array<i64: 1, 32>}, {transform_indices = @transform_7, window_bounds = array<i64: 16, 32>}]} {
    %c0 = arith.constant 0 : index
    %c0_0 = arith.constant 0 : index
    %0 = vector.load %arg1[%c0, %c0_0] : memref<16x32xf32, #tpu.memory_space<vmem>>, vector<16x32xf32>
    %c0_1 = arith.constant 0 : index
    %c0_2 = arith.constant 0 : index
    %1 = vector.load %arg2[%c0_1, %c0_2] : memref<1x32xf32, #tpu.memory_space<vmem>>, vector<1x32xf32>
    %c0_3 = arith.constant 0 : index
    %c0_4 = arith.constant 0 : index
    %2 = vector.load %arg3[%c0_3, %c0_4] : memref<1x32xf32, #tpu.memory_space<vmem>>, vector<1x32xf32>
    %cst = arith.constant dense<0.000000e+00> : vector<16xf32>
    %3 = vector.multi_reduction <add>, %0, %cst [1] : vector<16x32xf32> to vector<16xf32>
    %4 = vector.shape_cast %3 : vector<16xf32> to vector<16x1xf32>
    %cst_5 = arith.constant 3.200000e+01 : f32
    %5 = vector.broadcast %cst_5 : f32 to vector<16x1xf32>
    %6 = arith.divf %4, %5 : vector<16x1xf32>
    %7 = vector.broadcast %6 : vector<16x1xf32> to vector<16x32xf32>
    %8 = arith.subf %0, %7 : vector<16x32xf32>
    %9 = arith.mulf %8, %8 : vector<16x32xf32>
    %cst_6 = arith.constant dense<0.000000e+00> : vector<16xf32>
    %10 = vector.multi_reduction <add>, %9, %cst_6 [1] : vector<16x32xf32> to vector<16xf32>
    %11 = vector.shape_cast %10 : vector<16xf32> to vector<16x1xf32>
    %cst_7 = arith.constant 3.100000e+01 : f32
    %12 = vector.broadcast %cst_7 : f32 to vector<16x1xf32>
    %13 = arith.divf %11, %12 : vector<16x1xf32>
    %14 = math.sqrt %13 : vector<16x1xf32>
    %15 = vector.broadcast %1 : vector<1x32xf32> to vector<16x32xf32>
    %16 = arith.mulf %15, %8 : vector<16x32xf32>
    %cst_8 = arith.constant 9.99999997E-7 : f32
    %17 = vector.broadcast %cst_8 : f32 to vector<16x1xf32>
    %18 = arith.addf %14, %17 : vector<16x1xf32>
    %19 = vector.broadcast %18 : vector<16x1xf32> to vector<16x32xf32>
    %20 = arith.divf %16, %19 : vector<16x32xf32>
    %21 = vector.broadcast %2 : vector<1x32xf32> to vector<16x32xf32>
    %22 = arith.addf %20, %21 : vector<16x32xf32>
    %c0_9 = arith.constant 0 : index
    %c0_10 = arith.constant 0 : index
    %23 = vector.load %arg4[%c0_9, %c0_10] : memref<32x64xf32, #tpu.memory_space<vmem>>, vector<32x64xf32>
    %cst_11 = arith.constant dense<0.000000e+00> : vector<16x64xf32>
    %24 = tpu.matmul %22, %23, %cst_11 {dimension_numbers = #tpu.dot_dimension_numbers<[1], [0], [0], [1], [0, 0, 1, 1], [], []>} : vector<16x32xf32>, vector<32x64xf32>, vector<16x64xf32> -> vector<16x64xf32>
    %c0_12 = arith.constant 0 : index
    %c0_13 = arith.constant 0 : index
    %25 = vector.load %arg5[%c0_12, %c0_13] : memref<1x64xf32, #tpu.memory_space<vmem>>, vector<1x64xf32>
    %26 = vector.broadcast %25 : vector<1x64xf32> to vector<16x64xf32>
    %27 = arith.addf %24, %26 : vector<16x64xf32>
    %cst_14 = arith.constant 0.000000e+00 : f32
    %28 = vector.broadcast %cst_14 : f32 to vector<16x64xf32>
    %29 = arith.maximumf %27, %28 : vector<16x64xf32>
    %c0_15 = arith.constant 0 : index
    %c0_16 = arith.constant 0 : index
    %30 = vector.load %arg6[%c0_15, %c0_16] : memref<64x32xf32, #tpu.memory_space<vmem>>, vector<64x32xf32>
    %cst_17 = arith.constant dense<0.000000e+00> : vector<16x32xf32>
    %31 = tpu.matmul %29, %30, %cst_17 {dimension_numbers = #tpu.dot_dimension_numbers<[1], [0], [0], [1], [0, 0, 1, 1], [], []>} : vector<16x64xf32>, vector<64x32xf32>, vector<16x32xf32> -> vector<16x32xf32>
    %32 = arith.addf %0, %31 : vector<16x32xf32>
    %c0_18 = arith.constant 0 : index
    %c0_19 = arith.constant 0 : index
    %33 = vector.load %arg7[%c0_18, %c0_19] : memref<1x32xf32, #tpu.memory_space<vmem>>, vector<1x32xf32>
    %34 = vector.broadcast %33 : vector<1x32xf32> to vector<16x32xf32>
    %35 = arith.addf %32, %34 : vector<16x32xf32>
    %c0_20 = arith.constant 0 : index
    %c0_21 = arith.constant 0 : index
    %36 = vector.load %arg8[%c0_20, %c0_21] : memref<16x32xf32, #tpu.memory_space<vmem>>, vector<16x32xf32>
    tpu.vector_store %arg8[%c0_20, %c0_21], %35 {strides = array<i32>} : memref<16x32xf32, #tpu.memory_space<vmem>>, vector<16x32xf32>,
    return
  }
  func.func @transform_0(%arg0: i32) -> (i32, i32) {
    %c0_i32 = arith.constant 0 : i32
    %c0_i32_0 = arith.constant 0 : i32
    return %arg0, %c0_i32 : i32, i32
  }
  func.func @transform_1(%arg0: i32) -> (i32, i32) {
    %c0_i32 = arith.constant 0 : i32
    %c0_i32_0 = arith.constant 0 : i32
    %c0_i32_1 = arith.constant 0 : i32
    return %c0_i32, %c0_i32_0 : i32, i32
  }
  func.func @transform_2(%arg0: i32) -> (i32, i32) {
    %c0_i32 = arith.constant 0 : i32
    %c0_i32_0 = arith.constant 0 : i32
    %c0_i32_1 = arith.constant 0 : i32
    return %c0_i32, %c0_i32_0 : i32, i32
  }
  func.func @transform_3(%arg0: i32) -> (i32, i32) {
    %c0_i32 = arith.constant 0 : i32
    %c0_i32_0 = arith.constant 0 : i32
    %c0_i32_1 = arith.constant 0 : i32
    return %c0_i32, %c0_i32_0 : i32, i32
  }
  func.func @transform_4(%arg0: i32) -> (i32, i32) {
    %c0_i32 = arith.constant 0 : i32
    %c0_i32_0 = arith.constant 0 : i32
    %c0_i32_1 = arith.constant 0 : i32
    return %c0_i32, %c0_i32_0 : i32, i32
  }
  func.func @transform_5(%arg0: i32) -> (i32, i32) {
    %c0_i32 = arith.constant 0 : i32
    %c0_i32_0 = arith.constant 0 : i32
    %c0_i32_1 = arith.constant 0 : i32
    return %c0_i32, %c0_i32_0 : i32, i32
  }
  func.func @transform_6(%arg0: i32) -> (i32, i32) {
    %c0_i32 = arith.constant 0 : i32
    %c0_i32_0 = arith.constant 0 : i32
    %c0_i32_1 = arith.constant 0 : i32
    return %c0_i32, %c0_i32_0 : i32, i32
  }
  func.func @transform_7(%arg0: i32) -> (i32, i32) {
    %c0_i32 = arith.constant 0 : i32
    %c0_i32_0 = arith.constant 0 : i32
    return %arg0, %c0_i32 : i32, i32
  }
}

module attributes {stable_mosaic.version = 11 : i64} {
  func.func @_ln_matmul_kernel(%arg0: i32, %arg1: memref<16x32xf32, #tpu.memory_space<vmem>>, %arg2: memref<1x32xf32, #tpu.memory_space<vmem>>, %arg3: memref<1x32xf32, #tpu.memory_space<vmem>>, %arg4: memref<32x96xf32, #tpu.memory_space<vmem>>, %arg5: memref<1x96xf32, #tpu.memory_space<vmem>>, %arg6: memref<16x96xf32, #tpu.memory_space<vmem>>) attributes {dimension_semantics = [#tpu.dimension_semantics<parallel>], iteration_bounds = array<i64: 1>, scalar_prefetch = 0 : i64, scratch_operands = 0 : i64, tpu.core_type = #tpu.core_type<tc>, window_params = [{transform_indices = @transform_0, window_bounds = array<i64: 16, 32>}, {pipeline_mode = #tpu.pipeline_mode<synchronous>, transform_indices = @transform_1, window_bounds = array<i64: 1, 32>}, {pipeline_mode = #tpu.pipeline_mode<synchronous>, transform_indices = @transform_2, window_bounds = array<i64: 1, 32>}, {pipeline_mode = #tpu.pipeline_mode<synchronous>, transform_indices = @transform_3, window_bounds = array<i64: 32, 96>}, {pipeline_mode = #tpu.pipeline_mode<synchronous>, transform_indices = @transform_4, window_bounds = array<i64: 1, 96>}, {transform_indices = @transform_5, window_bounds = array<i64: 16, 96>}]} {
    %c0 = arith.constant 0 : index
    %c0_0 = arith.constant 0 : index
    %0 = vector.load %arg1[%c0, %c0_0] : memref<16x32xf32, #tpu.memory_space<vmem>>, vector<16x32xf32>
    %c0_1 = arith.constant 0 : index
    %c0_2 = arith.constant 0 : index
    %1 = vector.load %arg2[%c0_1, %c0_2] : memref<1x32xf32, #tpu.memory_space<vmem>>, vector<1x32xf32>
    %c0_3 = arith.constant 0 : index
    %c0_4 = arith.constant 0 : index
    %2 = vector.load %arg3[%c0_3, %c0_4] : memref<1x32xf32, #tpu.memory_space<vmem>>, vector<1x32xf32>
    %cst = arith.constant dense<0.000000e+00> : vector<16xf32>
    %3 = vector.multi_reduction <add>, %0, %cst [1] : vector<16x32xf32> to vector<16xf32>
    %4 = vector.shape_cast %3 : vector<16xf32> to vector<16x1xf32>
    %cst_5 = arith.constant 3.200000e+01 : f32
    %5 = vector.broadcast %cst_5 : f32 to vector<16x1xf32>
    %6 = arith.divf %4, %5 : vector<16x1xf32>
    %7 = vector.broadcast %6 : vector<16x1xf32> to vector<16x32xf32>
    %8 = arith.subf %0, %7 : vector<16x32xf32>
    %9 = arith.mulf %8, %8 : vector<16x32xf32>
    %cst_6 = arith.constant dense<0.000000e+00> : vector<16xf32>
    %10 = vector.multi_reduction <add>, %9, %cst_6 [1] : vector<16x32xf32> to vector<16xf32>
    %11 = vector.shape_cast %10 : vector<16xf32> to vector<16x1xf32>
    %cst_7 = arith.constant 3.100000e+01 : f32
    %12 = vector.broadcast %cst_7 : f32 to vector<16x1xf32>
    %13 = arith.divf %11, %12 : vector<16x1xf32>
    %14 = math.sqrt %13 : vector<16x1xf32>
    %15 = vector.broadcast %1 : vector<1x32xf32> to vector<16x32xf32>
    %16 = arith.mulf %15, %8 : vector<16x32xf32>
    %cst_8 = arith.constant 9.99999997E-7 : f32
    %17 = vector.broadcast %cst_8 : f32 to vector<16x1xf32>
    %18 = arith.addf %14, %17 : vector<16x1xf32>
    %19 = vector.broadcast %18 : vector<16x1xf32> to vector<16x32xf32>
    %20 = arith.divf %16, %19 : vector<16x32xf32>
    %21 = vector.broadcast %2 : vector<1x32xf32> to vector<16x32xf32>
    %22 = arith.addf %20, %21 : vector<16x32xf32>
    %c0_9 = arith.constant 0 : index
    %c0_10 = arith.constant 0 : index
    %23 = vector.load %arg4[%c0_9, %c0_10] : memref<32x96xf32, #tpu.memory_space<vmem>>, vector<32x96xf32>
    %cst_11 = arith.constant dense<0.000000e+00> : vector<16x96xf32>
    %24 = tpu.matmul %22, %23, %cst_11 {dimension_numbers = #tpu.dot_dimension_numbers<[1], [0], [0], [1], [0, 0, 1, 1], [], []>} : vector<16x32xf32>, vector<32x96xf32>, vector<16x96xf32> -> vector<16x96xf32>
    %c0_12 = arith.constant 0 : index
    %c0_13 = arith.constant 0 : index
    %25 = vector.load %arg5[%c0_12, %c0_13] : memref<1x96xf32, #tpu.memory_space<vmem>>, vector<1x96xf32>
    %26 = vector.broadcast %25 : vector<1x96xf32> to vector<16x96xf32>
    %27 = arith.addf %24, %26 : vector<16x96xf32>
    %c0_14 = arith.constant 0 : index
    %c0_15 = arith.constant 0 : index
    %28 = vector.load %arg6[%c0_14, %c0_15] : memref<16x96xf32, #tpu.memory_space<vmem>>, vector<16x96xf32>
    tpu.vector_store %arg6[%c0_14, %c0_15], %27 {strides = array<i32>} : memref<16x96xf32, #tpu.memory_space<vmem>>, vector<16x96xf32>,
    return
  }
  func.func @transform_0(%arg0: i32) -> (i32, i32) {
    %c0_i32 = arith.constant 0 : i32
    %c0_i32_0 = arith.constant 0 : i32
    return %arg0, %c0_i32 : i32, i32
  }
  func.func @transform_1(%arg0: i32) -> (i32, i32) {
    %c0_i32 = arith.constant 0 : i32
    %c0_i32_0 = arith.constant 0 : i32
    %c0_i32_1 = arith.constant 0 : i32
    return %c0_i32, %c0_i32_0 : i32, i32
  }
  func.func @transform_2(%arg0: i32) -> (i32, i32) {
    %c0_i32 = arith.constant 0 : i32
    %c0_i32_0 = arith.constant 0 : i32
    %c0_i32_1 = arith.constant 0 : i32
    return %c0_i32, %c0_i32_0 : i32, i32
  }
  func.func @transform_3(%arg0: i32) -> (i32, i32) {
    %c0_i32 = arith.constant 0 : i32
    %c0_i32_0 = arith.constant 0 : i32
    %c0_i32_1 = arith.constant 0 : i32
    return %c0_i32, %c0_i32_0 : i32, i32
  }
  func.func @transform_4(%arg0: i32) -> (i32, i32) {
    %c0_i32 = arith.constant 0 : i32
    %c0_i32_0 = arith.constant 0 : i32
    %c0_i32_1 = arith.constant 0 : i32
    return %c0_i32, %c0_i32_0 : i32, i32
  }
  func.func @transform_5(%arg0: i32) -> (i32, i32) {
    %c0_i32 = arith.constant 0 : i32
    %c0_i32_0 = arith.constant 0 : i32
    return %arg0, %c0_i32 : i32, i32
  }
}

module attributes {stable_mosaic.version = 11 : i64} {
  func.func @_linear_kernel(%arg0: i32, %arg1: memref<16x32xf32, #tpu.memory_space<vmem>>, %arg2: memref<32x64xf32, #tpu.memory_space<vmem>>, %arg3: memref<1x64xf32, #tpu.memory_space<vmem>>, %arg4: memref<16x64xf32, #tpu.memory_space<vmem>>) attributes {dimension_semantics = [#tpu.dimension_semantics<parallel>], iteration_bounds = array<i64: 1>, scalar_prefetch = 0 : i64, scratch_operands = 0 : i64, tpu.core_type = #tpu.core_type<tc>, window_params = [{transform_indices = @transform_0, window_bounds = array<i64: 16, 32>}, {pipeline_mode = #tpu.pipeline_mode<synchronous>, transform_indices = @transform_1, window_bounds = array<i64: 32, 64>}, {pipeline_mode = #tpu.pipeline_mode<synchronous>, transform_indices = @transform_2, window_bounds = array<i64: 1, 64>}, {transform_indices = @transform_3, window_bounds = array<i64: 16, 64>}]} {
    %c0 = arith.constant 0 : index
    %c0_0 = arith.constant 0 : index
    %0 = vector.load %arg1[%c0, %c0_0] : memref<16x32xf32, #tpu.memory_space<vmem>>, vector<16x32xf32>
    %c0_1 = arith.constant 0 : index
    %c0_2 = arith.constant 0 : index
    %1 = vector.load %arg2[%c0_1, %c0_2] : memref<32x64xf32, #tpu.memory_space<vmem>>, vector<32x64xf32>
    %cst = arith.constant dense<0.000000e+00> : vector<16x64xf32>
    %2 = tpu.matmul %0, %1, %cst {dimension_numbers = #tpu.dot_dimension_numbers<[1], [0], [0], [1], [0, 0, 1, 1], [], []>} : vector<16x32xf32>, vector<32x64xf32>, vector<16x64xf32> -> vector<16x64xf32>
    %c0_3 = arith.constant 0 : index
    %c0_4 = arith.constant 0 : index
    %3 = vector.load %arg3[%c0_3, %c0_4] : memref<1x64xf32, #tpu.memory_space<vmem>>, vector<1x64xf32>
    %4 = vector.broadcast %3 : vector<1x64xf32> to vector<16x64xf32>
    %5 = arith.addf %2, %4 : vector<16x64xf32>
    %c0_5 = arith.constant 0 : index
    %c0_6 = arith.constant 0 : index
    %6 = vector.load %arg4[%c0_5, %c0_6] : memref<16x64xf32, #tpu.memory_space<vmem>>, vector<16x64xf32>
    tpu.vector_store %arg4[%c0_5, %c0_6], %5 {strides = array<i32>} : memref<16x64xf32, #tpu.memory_space<vmem>>, vector<16x64xf32>,
    return
  }
  func.func @transform_0(%arg0: i32) -> (i32, i32) {
    %c0_i32 = arith.constant 0 : i32
    %c0_i32_0 = arith.constant 0 : i32
    return %arg0, %c0_i32 : i32, i32
  }
  func.func @transform_1(%arg0: i32) -> (i32, i32) {
    %c0_i32 = arith.constant 0 : i32
    %c0_i32_0 = arith.constant 0 : i32
    %c0_i32_1 = arith.constant 0 : i32
    return %c0_i32, %c0_i32_0 : i32, i32
  }
  func.func @transform_2(%arg0: i32) -> (i32, i32) {
    %c0_i32 = arith.constant 0 : i32
    %c0_i32_0 = arith.constant 0 : i32
    %c0_i32_1 = arith.constant 0 : i32
    return %c0_i32, %c0_i32_0 : i32, i32
  }
  func.func @transform_3(%arg0: i32) -> (i32, i32) {
    %c0_i32 = arith.constant 0 : i32
    %c0_i32_0 = arith.constant 0 : i32
    return %arg0, %c0_i32 : i32, i32
  }
}

module attributes {stable_mosaic.version = 11 : i64} {
  func.func @_ln_ffn_residual_kernel(%arg0: i32, %arg1: memref<16x32xf32, #tpu.memory_space<vmem>>, %arg2: memref<1x32xf32, #tpu.memory_space<vmem>>, %arg3: memref<1x32xf32, #tpu.memory_space<vmem>>, %arg4: memref<32x64xf32, #tpu.memory_space<vmem>>, %arg5: memref<1x64xf32, #tpu.memory_space<vmem>>, %arg6: memref<64x32xf32, #tpu.memory_space<vmem>>, %arg7: memref<1x32xf32, #tpu.memory_space<vmem>>, %arg8: memref<16x32xf32, #tpu.memory_space<vmem>>) attributes {dimension_semantics = [#tpu.dimension_semantics<parallel>], iteration_bounds = array<i64: 1>, scalar_prefetch = 0 : i64, scratch_operands = 0 : i64, tpu.core_type = #tpu.core_type<tc>, window_params = [{transform_indices = @transform_0, window_bounds = array<i64: 16, 32>}, {pipeline_mode = #tpu.pipeline_mode<synchronous>, transform_indices = @transform_1, window_bounds = array<i64: 1, 32>}, {pipeline_mode = #tpu.pipeline_mode<synchronous>, transform_indices = @transform_2, window_bounds = array<i64: 1, 32>}, {pipeline_mode = #tpu.pipeline_mode<synchronous>, transform_indices = @transform_3, window_bounds = array<i64: 32, 64>}, {pipeline_mode = #tpu.pipeline_mode<synchronous>, transform_indices = @transform_4, window_bounds = array<i64: 1, 64>}, {pipeline_mode = #tpu.pipeline_mode<synchronous>, transform_indices = @transform_5, window_bounds = array<i64: 64, 32>}, {pipeline_mode = #tpu.pipeline_mode<synchronous>, transform_indices = @transform_6, window_bounds = array<i64: 1, 32>}, {transform_indices = @transform_7, window_bounds = array<i64: 16, 32>}]} {
    %c0 = arith.constant 0 : index
    %c0_0 = arith.constant 0 : index
    %0 = vector.load %arg1[%c0, %c0_0] : memref<16x32xf32, #tpu.memory_space<vmem>>, vector<16x32xf32>
    %c0_1 = arith.constant 0 : index
    %c0_2 = arith.constant 0 : index
    %1 = vector.load %arg2[%c0_1, %c0_2] : memref<1x32xf32, #tpu.memory_space<vmem>>, vector<1x32xf32>
    %c0_3 = arith.constant 0 : index
    %c0_4 = arith.constant 0 : index
    %2 = vector.load %arg3[%c0_3, %c0_4] : memref<1x32xf32, #tpu.memory_space<vmem>>, vector<1x32xf32>
    %cst = arith.constant dense<0.000000e+00> : vector<16xf32>
    %3 = vector.multi_reduction <add>, %0, %cst [1] : vector<16x32xf32> to vector<16xf32>
    %4 = vector.shape_cast %3 : vector<16xf32> to vector<16x1xf32>
    %cst_5 = arith.constant 3.200000e+01 : f32
    %5 = vector.broadcast %cst_5 : f32 to vector<16x1xf32>
    %6 = arith.divf %4, %5 : vector<16x1xf32>
    %7 = vector.broadcast %6 : vector<16x1xf32> to vector<16x32xf32>
    %8 = arith.subf %0, %7 : vector<16x32xf32>
    %9 = arith.mulf %8, %8 : vector<16x32xf32>
    %cst_6 = arith.constant dense<0.000000e+00> : vector<16xf32>
    %10 = vector.multi_reduction <add>, %9, %cst_6 [1] : vector<16x32xf32> to vector<16xf32>
    %11 = vector.shape_cast %10 : vector<16xf32> to vector<16x1xf32>
    %cst_7 = arith.constant 3.100000e+01 : f32
    %12 = vector.broadcast %cst_7 : f32 to vector<16x1xf32>
    %13 = arith.divf %11, %12 : vector<16x1xf32>
    %14 = math.sqrt %13 : vector<16x1xf32>
    %15 = vector.broadcast %1 : vector<1x32xf32> to vector<16x32xf32>
    %16 = arith.mulf %15, %8 : vector<16x32xf32>
    %cst_8 = arith.constant 9.99999997E-7 : f32
    %17 = vector.broadcast %cst_8 : f32 to vector<16x1xf32>
    %18 = arith.addf %14, %17 : vector<16x1xf32>
    %19 = vector.broadcast %18 : vector<16x1xf32> to vector<16x32xf32>
    %20 = arith.divf %16, %19 : vector<16x32xf32>
    %21 = vector.broadcast %2 : vector<1x32xf32> to vector<16x32xf32>
    %22 = arith.addf %20, %21 : vector<16x32xf32>
    %c0_9 = arith.constant 0 : index
    %c0_10 = arith.constant 0 : index
    %23 = vector.load %arg4[%c0_9, %c0_10] : memref<32x64xf32, #tpu.memory_space<vmem>>, vector<32x64xf32>
    %cst_11 = arith.constant dense<0.000000e+00> : vector<16x64xf32>
    %24 = tpu.matmul %22, %23, %cst_11 {dimension_numbers = #tpu.dot_dimension_numbers<[1], [0], [0], [1], [0, 0, 1, 1], [], []>} : vector<16x32xf32>, vector<32x64xf32>, vector<16x64xf32> -> vector<16x64xf32>
    %c0_12 = arith.constant 0 : index
    %c0_13 = arith.constant 0 : index
    %25 = vector.load %arg5[%c0_12, %c0_13] : memref<1x64xf32, #tpu.memory_space<vmem>>, vector<1x64xf32>
    %26 = vector.broadcast %25 : vector<1x64xf32> to vector<16x64xf32>
    %27 = arith.addf %24, %26 : vector<16x64xf32>
    %cst_14 = arith.constant 0.000000e+00 : f32
    %28 = vector.broadcast %cst_14 : f32 to vector<16x64xf32>
    %29 = arith.maximumf %27, %28 : vector<16x64xf32>
    %c0_15 = arith.constant 0 : index
    %c0_16 = arith.constant 0 : index
    %30 = vector.load %arg6[%c0_15, %c0_16] : memref<64x32xf32, #tpu.memory_space<vmem>>, vector<64x32xf32>
    %cst_17 = arith.constant dense<0.000000e+00> : vector<16x32xf32>
    %31 = tpu.matmul %29, %30, %cst_17 {dimension_numbers = #tpu.dot_dimension_numbers<[1], [0], [0], [1], [0, 0, 1, 1], [], []>} : vector<16x64xf32>, vector<64x32xf32>, vector<16x32xf32> -> vector<16x32xf32>
    %32 = arith.addf %0, %31 : vector<16x32xf32>
    %c0_18 = arith.constant 0 : index
    %c0_19 = arith.constant 0 : index
    %33 = vector.load %arg7[%c0_18, %c0_19] : memref<1x32xf32, #tpu.memory_space<vmem>>, vector<1x32xf32>
    %34 = vector.broadcast %33 : vector<1x32xf32> to vector<16x32xf32>
    %35 = arith.addf %32, %34 : vector<16x32xf32>
    %c0_20 = arith.constant 0 : index
    %c0_21 = arith.constant 0 : index
    %36 = vector.load %arg8[%c0_20, %c0_21] : memref<16x32xf32, #tpu.memory_space<vmem>>, vector<16x32xf32>
    tpu.vector_store %arg8[%c0_20, %c0_21], %35 {strides = array<i32>} : memref<16x32xf32, #tpu.memory_space<vmem>>, vector<16x32xf32>,
    return
  }
  func.func @transform_0(%arg0: i32) -> (i32, i32) {
    %c0_i32 = arith.constant 0 : i32
    %c0_i32_0 = arith.constant 0 : i32
    return %arg0, %c0_i32 : i32, i32
  }
  func.func @transform_1(%arg0: i32) -> (i32, i32) {
    %c0_i32 = arith.constant 0 : i32
    %c0_i32_0 = arith.constant 0 : i32
    %c0_i32_1 = arith.constant 0 : i32
    return %c0_i32, %c0_i32_0 : i32, i32
  }
  func.func @transform_2(%arg0: i32) -> (i32, i32) {
    %c0_i32 = arith.constant 0 : i32
    %c0_i32_0 = arith.constant 0 : i32
    %c0_i32_1 = arith.constant 0 : i32
    return %c0_i32, %c0_i32_0 : i32, i32
  }
  func.func @transform_3(%arg0: i32) -> (i32, i32) {
    %c0_i32 = arith.constant 0 : i32
    %c0_i32_0 = arith.constant 0 : i32
    %c0_i32_1 = arith.constant 0 : i32
    return %c0_i32, %c0_i32_0 : i32, i32
  }
  func.func @transform_4(%arg0: i32) -> (i32, i32) {
    %c0_i32 = arith.constant 0 : i32
    %c0_i32_0 = arith.constant 0 : i32
    %c0_i32_1 = arith.constant 0 : i32
    return %c0_i32, %c0_i32_0 : i32, i32
  }
  func.func @transform_5(%arg0: i32) -> (i32, i32) {
    %c0_i32 = arith.constant 0 : i32
    %c0_i32_0 = arith.constant 0 : i32
    %c0_i32_1 = arith.constant 0 : i32
    return %c0_i32, %c0_i32_0 : i32, i32
  }
  func.func @transform_6(%arg0: i32) -> (i32, i32) {
    %c0_i32 = arith.constant 0 : i32
    %c0_i32_0 = arith.constant 0 : i32
    %c0_i32_1 = arith.constant 0 : i32
    return %c0_i32, %c0_i32_0 : i32, i32
  }
  func.func @transform_7(%arg0: i32) -> (i32, i32) {
    %c0_i32 = arith.constant 0 : i32
    %c0_i32_0 = arith.constant 0 : i32
    return %arg0, %c0_i32 : i32, i32
  }
}

module attributes {stable_mosaic.version = 11 : i64} {
  func.func @_ln_matmul_kernel(%arg0: i32, %arg1: memref<16x32xf32, #tpu.memory_space<vmem>>, %arg2: memref<1x32xf32, #tpu.memory_space<vmem>>, %arg3: memref<1x32xf32, #tpu.memory_space<vmem>>, %arg4: memref<32x32xf32, #tpu.memory_space<vmem>>, %arg5: memref<1x32xf32, #tpu.memory_space<vmem>>, %arg6: memref<16x32xf32, #tpu.memory_space<vmem>>) attributes {dimension_semantics = [#tpu.dimension_semantics<parallel>], iteration_bounds = array<i64: 1>, scalar_prefetch = 0 : i64, scratch_operands = 0 : i64, tpu.core_type = #tpu.core_type<tc>, window_params = [{transform_indices = @transform_0, window_bounds = array<i64: 16, 32>}, {pipeline_mode = #tpu.pipeline_mode<synchronous>, transform_indices = @transform_1, window_bounds = array<i64: 1, 32>}, {pipeline_mode = #tpu.pipeline_mode<synchronous>, transform_indices = @transform_2, window_bounds = array<i64: 1, 32>}, {pipeline_mode = #tpu.pipeline_mode<synchronous>, transform_indices = @transform_3, window_bounds = array<i64: 32, 32>}, {pipeline_mode = #tpu.pipeline_mode<synchronous>, transform_indices = @transform_4, window_bounds = array<i64: 1, 32>}, {transform_indices = @transform_5, window_bounds = array<i64: 16, 32>}]} {
    %c0 = arith.constant 0 : index
    %c0_0 = arith.constant 0 : index
    %0 = vector.load %arg1[%c0, %c0_0] : memref<16x32xf32, #tpu.memory_space<vmem>>, vector<16x32xf32>
    %c0_1 = arith.constant 0 : index
    %c0_2 = arith.constant 0 : index
    %1 = vector.load %arg2[%c0_1, %c0_2] : memref<1x32xf32, #tpu.memory_space<vmem>>, vector<1x32xf32>
    %c0_3 = arith.constant 0 : index
    %c0_4 = arith.constant 0 : index
    %2 = vector.load %arg3[%c0_3, %c0_4] : memref<1x32xf32, #tpu.memory_space<vmem>>, vector<1x32xf32>
    %cst = arith.constant dense<0.000000e+00> : vector<16xf32>
    %3 = vector.multi_reduction <add>, %0, %cst [1] : vector<16x32xf32> to vector<16xf32>
    %4 = vector.shape_cast %3 : vector<16xf32> to vector<16x1xf32>
    %cst_5 = arith.constant 3.200000e+01 : f32
    %5 = vector.broadcast %cst_5 : f32 to vector<16x1xf32>
    %6 = arith.divf %4, %5 : vector<16x1xf32>
    %7 = vector.broadcast %6 : vector<16x1xf32> to vector<16x32xf32>
    %8 = arith.subf %0, %7 : vector<16x32xf32>
    %9 = arith.mulf %8, %8 : vector<16x32xf32>
    %cst_6 = arith.constant dense<0.000000e+00> : vector<16xf32>
    %10 = vector.multi_reduction <add>, %9, %cst_6 [1] : vector<16x32xf32> to vector<16xf32>
    %11 = vector.shape_cast %10 : vector<16xf32> to vector<16x1xf32>
    %cst_7 = arith.constant 3.100000e+01 : f32
    %12 = vector.broadcast %cst_7 : f32 to vector<16x1xf32>
    %13 = arith.divf %11, %12 : vector<16x1xf32>
    %14 = math.sqrt %13 : vector<16x1xf32>
    %15 = vector.broadcast %1 : vector<1x32xf32> to vector<16x32xf32>
    %16 = arith.mulf %15, %8 : vector<16x32xf32>
    %cst_8 = arith.constant 9.99999997E-7 : f32
    %17 = vector.broadcast %cst_8 : f32 to vector<16x1xf32>
    %18 = arith.addf %14, %17 : vector<16x1xf32>
    %19 = vector.broadcast %18 : vector<16x1xf32> to vector<16x32xf32>
    %20 = arith.divf %16, %19 : vector<16x32xf32>
    %21 = vector.broadcast %2 : vector<1x32xf32> to vector<16x32xf32>
    %22 = arith.addf %20, %21 : vector<16x32xf32>
    %c0_9 = arith.constant 0 : index
    %c0_10 = arith.constant 0 : index
    %23 = vector.load %arg4[%c0_9, %c0_10] : memref<32x32xf32, #tpu.memory_space<vmem>>, vector<32x32xf32>
    %cst_11 = arith.constant dense<0.000000e+00> : vector<16x32xf32>
    %24 = tpu.matmul %22, %23, %cst_11 {dimension_numbers = #tpu.dot_dimension_numbers<[1], [0], [0], [1], [0, 0, 1, 1], [], []>} : vector<16x32xf32>, vector<32x32xf32>, vector<16x32xf32> -> vector<16x32xf32>
    %c0_12 = arith.constant 0 : index
    %c0_13 = arith.constant 0 : index
    %25 = vector.load %arg5[%c0_12, %c0_13] : memref<1x32xf32, #tpu.memory_space<vmem>>, vector<1x32xf32>
    %26 = vector.broadcast %25 : vector<1x32xf32> to vector<16x32xf32>
    %27 = arith.addf %24, %26 : vector<16x32xf32>
    %c0_14 = arith.constant 0 : index
    %c0_15 = arith.constant 0 : index
    %28 = vector.load %arg6[%c0_14, %c0_15] : memref<16x32xf32, #tpu.memory_space<vmem>>, vector<16x32xf32>
    tpu.vector_store %arg6[%c0_14, %c0_15], %27 {strides = array<i32>} : memref<16x32xf32, #tpu.memory_space<vmem>>, vector<16x32xf32>,
    return
  }
  func.func @transform_0(%arg0: i32) -> (i32, i32) {
    %c0_i32 = arith.constant 0 : i32
    %c0_i32_0 = arith.constant 0 : i32
    return %arg0, %c0_i32 : i32, i32
  }
  func.func @transform_1(%arg0: i32) -> (i32, i32) {
    %c0_i32 = arith.constant 0 : i32
    %c0_i32_0 = arith.constant 0 : i32
    %c0_i32_1 = arith.constant 0 : i32
    return %c0_i32, %c0_i32_0 : i32, i32
  }
  func.func @transform_2(%arg0: i32) -> (i32, i32) {
    %c0_i32 = arith.constant 0 : i32
    %c0_i32_0 = arith.constant 0 : i32
    %c0_i32_1 = arith.constant 0 : i32
    return %c0_i32, %c0_i32_0 : i32, i32
  }
  func.func @transform_3(%arg0: i32) -> (i32, i32) {
    %c0_i32 = arith.constant 0 : i32
    %c0_i32_0 = arith.constant 0 : i32
    %c0_i32_1 = arith.constant 0 : i32
    return %c0_i32, %c0_i32_0 : i32, i32
  }
  func.func @transform_4(%arg0: i32) -> (i32, i32) {
    %c0_i32 = arith.constant 0 : i32
    %c0_i32_0 = arith.constant 0 : i32
    %c0_i32_1 = arith.constant 0 : i32
    return %c0_i32, %c0_i32_0 : i32, i32
  }
  func.func @transform_5(%arg0: i32) -> (i32, i32) {
    %c0_i32 = arith.constant 0 : i32
    %c0_i32_0 = arith.constant 0 : i32
    return %arg0, %c0_i32 : i32, i32
  }
}

module attributes {stable_mosaic.version = 11 : i64} {
  func.func @_layernorm_kernel(%arg0: i32, %arg1: memref<16x32xf32, #tpu.memory_space<vmem>>, %arg2: memref<1x32xf32, #tpu.memory_space<vmem>>, %arg3: memref<1x32xf32, #tpu.memory_space<vmem>>, %arg4: memref<16x32xf32, #tpu.memory_space<vmem>>) attributes {dimension_semantics = [#tpu.dimension_semantics<parallel>], iteration_bounds = array<i64: 1>, scalar_prefetch = 0 : i64, scratch_operands = 0 : i64, tpu.core_type = #tpu.core_type<tc>, window_params = [{transform_indices = @transform_0, window_bounds = array<i64: 16, 32>}, {pipeline_mode = #tpu.pipeline_mode<synchronous>, transform_indices = @transform_1, window_bounds = array<i64: 1, 32>}, {pipeline_mode = #tpu.pipeline_mode<synchronous>, transform_indices = @transform_2, window_bounds = array<i64: 1, 32>}, {transform_indices = @transform_3, window_bounds = array<i64: 16, 32>}]} {
    %c0 = arith.constant 0 : index
    %c0_0 = arith.constant 0 : index
    %0 = vector.load %arg1[%c0, %c0_0] : memref<16x32xf32, #tpu.memory_space<vmem>>, vector<16x32xf32>
    %c0_1 = arith.constant 0 : index
    %c0_2 = arith.constant 0 : index
    %1 = vector.load %arg2[%c0_1, %c0_2] : memref<1x32xf32, #tpu.memory_space<vmem>>, vector<1x32xf32>
    %c0_3 = arith.constant 0 : index
    %c0_4 = arith.constant 0 : index
    %2 = vector.load %arg3[%c0_3, %c0_4] : memref<1x32xf32, #tpu.memory_space<vmem>>, vector<1x32xf32>
    %cst = arith.constant dense<0.000000e+00> : vector<16xf32>
    %3 = vector.multi_reduction <add>, %0, %cst [1] : vector<16x32xf32> to vector<16xf32>
    %4 = vector.shape_cast %3 : vector<16xf32> to vector<16x1xf32>
    %cst_5 = arith.constant 3.200000e+01 : f32
    %5 = vector.broadcast %cst_5 : f32 to vector<16x1xf32>
    %6 = arith.divf %4, %5 : vector<16x1xf32>
    %7 = vector.broadcast %6 : vector<16x1xf32> to vector<16x32xf32>
    %8 = arith.subf %0, %7 : vector<16x32xf32>
    %9 = arith.mulf %8, %8 : vector<16x32xf32>
    %cst_6 = arith.constant dense<0.000000e+00> : vector<16xf32>
    %10 = vector.multi_reduction <add>, %9, %cst_6 [1] : vector<16x32xf32> to vector<16xf32>
    %11 = vector.shape_cast %10 : vector<16xf32> to vector<16x1xf32>
    %cst_7 = arith.constant 3.100000e+01 : f32
    %12 = vector.broadcast %cst_7 : f32 to vector<16x1xf32>
    %13 = arith.divf %11, %12 : vector<16x1xf32>
    %14 = math.sqrt %13 : vector<16x1xf32>
    %15 = vector.broadcast %1 : vector<1x32xf32> to vector<16x32xf32>
    %16 = arith.mulf %15, %8 : vector<16x32xf32>
    %cst_8 = arith.constant 9.99999997E-7 : f32
    %17 = vector.broadcast %cst_8 : f32 to vector<16x1xf32>
    %18 = arith.addf %14, %17 : vector<16x1xf32>
    %19 = vector.broadcast %18 : vector<16x1xf32> to vector<16x32xf32>
    %20 = arith.divf %16, %19 : vector<16x32xf32>
    %21 = vector.broadcast %2 : vector<1x32xf32> to vector<16x32xf32>
    %22 = arith.addf %20, %21 : vector<16x32xf32>
    %c0_9 = arith.constant 0 : index
    %c0_10 = arith.constant 0 : index
    %23 = vector.load %arg4[%c0_9, %c0_10] : memref<16x32xf32, #tpu.memory_space<vmem>>, vector<16x32xf32>
    tpu.vector_store %arg4[%c0_9, %c0_10], %22 {strides = array<i32>} : memref<16x32xf32, #tpu.memory_space<vmem>>, vector<16x32xf32>,
    return
  }
  func.func @transform_0(%arg0: i32) -> (i32, i32) {
    %c0_i32 = arith.constant 0 : i32
    %c0_i32_0 = arith.constant 0 : i32
    return %arg0, %c0_i32 : i32, i32
  }
  func.func @transform_1(%arg0: i32) -> (i32, i32) {
    %c0_i32 = arith.constant 0 : i32
    %c0_i32_0 = arith.constant 0 : i32
    %c0_i32_1 = arith.constant 0 : i32
    return %c0_i32, %c0_i32_0 : i32, i32
  }
  func.func @transform_2(%arg0: i32) -> (i32, i32) {
    %c0_i32 = arith.constant 0 : i32
    %c0_i32_0 = arith.constant 0 : i32
    %c0_i32_1 = arith.constant 0 : i32
    return %c0_i32, %c0_i32_0 : i32, i32
  }
  func.func @transform_3(%arg0: i32) -> (i32, i32) {
    %c0_i32 = arith.constant 0 : i32
    %c0_i32_0 = arith.constant 0 : i32
    return %arg0, %c0_i32 : i32, i32
  }
}

</mosaic_0001>

<llo_original>
// kernel: decoder_forward.20
$region0: #{decoder_forward.20}
  #allocation0 [shape = 'u32[]', space=smem, size = 0x4, offset = 0x4, fixed_abs, tag = 'smem constant byte address 0x4 - core index']
  #allocation1 [shape = 'u32[72,128]{1,0:T(1,128)}', space=vmem, size = 0x9000, scoped, tag = 'internal scratch']
  %s0 = inlined_call_operand.vmem [shape: f32[16,32], index: 0, kind: input, shape index: {}]
  %s1 = inlined_call_operand.vmem [shape: f32[1,32], index: 1, kind: input, shape index: {}]
  %s2 = inlined_call_operand.vmem [shape: f32[1,32], index: 2, kind: input, shape index: {}]
  %s3 = inlined_call_operand.hbm [shape: f32[32,32], index: 3, kind: input, shape index: {}]
  %s4 = inlined_call_operand.hbm [shape: f32[1,32], index: 4, kind: input, shape index: {}]
  %s5 = inlined_call_operand.vmem [shape: f32[16,32], index: 5, kind: output, shape index: {}]
  %s6 = sld [smem:[#allocation0]]
  $region38: #{decoder_forward.20} parent=0
    _
  %s8 = ssub.s32 1, %s6
  %s9 = scalar_select 0, %s8, %s6
  $region1: #{decoder_forward.20} parent=0
    #allocation2 [shape = 'u8[16384]{0}', space=vmem, size = 0x4000, scoped, tag = 'input window, operand 3, single buffered']
    #allocation3 [shape = 's32[1]{0}', space=sflag, size = 0x4, scoped, tag = 'scoped memory for decoder_forward.20']
    #allocation4 [shape = 'u8[512]{0}', space=vmem, size = 0x400, scoped, tag = 'input window, operand 4, single buffered']
    #allocation5 [shape = 's32[1]{0}', space=sflag, size = 0x4, scoped, tag = 'scoped memory for decoder_forward.20']
    %10 = vsyncpa [#allocation3], 0
    %11 = vsyncpa [#allocation5], 0
    // Predicated region
    $region2: #{decoder_forward.20} parent=1 // pred_check
      _
    $region3: #{decoder_forward.20} parent=1 // pred_check_branch
      %13 = sbr.rel (0) target = $region5
    $region4: #{decoder_forward.20} parent=1 // pred_region
      _
    $region5: #{decoder_forward.20} parent=1 // pred_fallthru
      _
    // Predicated region
    $region6: #{decoder_forward.20} parent=1 // pred_check
      _
    $region7: #{decoder_forward.20} parent=1 // pred_check_branch
      %15 = sbr.rel (0) target = $region9
    $region8: #{decoder_forward.20} parent=1 // pred_region
      _
    $region9: #{decoder_forward.20} parent=1 // pred_fallthru
      _
    // Predicated region
    $region10: #{decoder_forward.20} parent=1 // pred_check
      _
    $region11: #{decoder_forward.20} parent=1 // pred_check_branch
      %17 = sbr.rel (0) target = $region13
    $region12: #{decoder_forward.20} parent=1 // pred_region
      _
    $region13: #{decoder_forward.20} parent=1 // pred_fallthru
      _
    // Predicated region
    $region14: #{decoder_forward.20} parent=1 // pred_check
      _
    $region15: #{decoder_forward.20} parent=1 // pred_check_branch
      %19 = sbr.rel (0) target = $region17
    $region16: #{decoder_forward.20} parent=1 // pred_region
      %21 = vsyncadd [#allocation3], 0
      %s22 = sshll.u32 %s3, 4
      %s23 = int_to_ptr.hbm [resolvable:$true] %s22
      %s24 = sshll.u32 [#allocation2], 4
      %s25 = int_to_ptr.vmem [resolvable:$true] %s24
      %30 = dma.hbm_to_vmem [thread:$0]  %s23, 512, %s25, [#allocation3], 128, 128, 8
    $region17: #{decoder_forward.20} parent=1 // pred_fallthru
      _
    // Predicated region
    $region18: #{decoder_forward.20} parent=1 // pred_check
      _
    $region19: #{decoder_forward.20} parent=1 // pred_check_branch
      %32 = sbr.rel (0) target = $region21
    $region20: #{decoder_forward.20} parent=1 // pred_region
      %34 = vsyncadd [#allocation5], 0
      %s36 = sshll.u32 %s4, 4
      %s37 = int_to_ptr.hbm [resolvable:$true] %s36
      %s38 = sshll.u32 [#allocation4], 4
      %s39 = int_to_ptr.vmem [resolvable:$true] %s38
      %41 = dma.hbm_to_vmem [thread:$0]  %s37, 16, %s39, [#allocation5]
    $region21: #{decoder_forward.20} parent=1 // pred_fallthru
      _
    // Predicated region
    $region22: #{decoder_forward.20} parent=1 // pred_check
      _
    $region23: #{decoder_forward.20} parent=1 // pred_check_branch
      %43 = sbr.rel (0) target = $region25
    $region24: #{decoder_forward.20} parent=1 // pred_region
      %45 = dma.done [#allocation3], 512
    $region25: #{decoder_forward.20} parent=1 // pred_fallthru
      _
    // Predicated region
    $region26: #{decoder_forward.20} parent=1 // pred_check
      _
    $region27: #{decoder_forward.20} parent=1 // pred_check_branch
      %47 = sbr.rel (0) target = $region29
    $region28: #{decoder_forward.20} parent=1 // pred_region
      %49 = dma.done [#allocation5], 16
    $region29: #{decoder_forward.20} parent=1 // pred_fallthru
      _
    %v50 = vld [vmem:[%s0] sm:$0xff]
    %v51 = vld [vmem:[%s0 + $0x8] sm:$0xff]
    %v52 = vld [vmem:[%s1] sm:$0x1]
    %v53 = vld [vmem:[%s2] sm:$0x1]
    %vm54 = vcmask 261120
    %v55 = vsel %vm54, %v50, 0.0
    %56 = vadd.xlane.f32.xlu0 %v55
    %v57 = vpop.xlane.xlu0 %56
    %v58 = vsel %vm54, %v51, 0.0
    %59 = vadd.xlane.f32.xlu0 %v58
    %v60 = vpop.xlane.xlu0 %59
    %v61 = vrcp.pop 32.0
    %v62 = vmul.f32 32.0, %v61
    %v63 = vsub.f32 1.0, %v62
    %v64 = vmul.f32 %v61, %v63
    %v65 = vadd.f32 %v61, %v64
    %vm66 = vweird.f32 %v61
    %v67 = vsel %vm66, %v61, %v65
    %v68 = vmul.f32 %v57, %v67
    %v69 = vmul.f32 %v60, %v67
    %v70 = vsub.f32 %v50, %v68
    %v71 = vsub.f32 %v51, %v69
    %v72 = vmul.f32 %v70, %v70
    %v73 = vmul.f32 %v71, %v71
    %v74 = vsel %vm54, %v72, 0.0
    %75 = vadd.xlane.f32.xlu0 %v74
    %v76 = vpop.xlane.xlu0 %75
    %v77 = vsel %vm54, %v73, 0.0
    %78 = vadd.xlane.f32.xlu0 %v77
    %v79 = vpop.xlane.xlu0 %78
    %v80 = vrcp.pop 31.0
    %v81 = vmul.f32 31.0, %v80
    %v82 = vsub.f32 1.0, %v81
    %v83 = vmul.f32 %v80, %v82
    %v84 = vadd.f32 %v80, %v83
    %vm85 = vweird.f32 %v80
    %v86 = vsel %vm85, %v80, %v84
    %v87 = vmul.f32 %v76, %v86
    %v88 = vmul.f32 %v79, %v86
    %v89 = vrsqrt.pop %v87
    %v90 = vmul.f32 %v89, %v87
    %v91 = vmul.f32 %v90, %v89
    %v92 = vmul.f32 0.5, %v91
    %v93 = vsub.f32 1.5, %v92
    %v94 = vmul.f32 %v89, %v93
    %v95 = vmul.f32 %v87, %v94
    %vm96 = vcmp.eq.f32.partialorder %v87, inf
    %v97 = vsel %vm96, %v87, %v95
    %vm98 = vcmp.eq.f32.partialorder %v87, 0.0
    %v99 = vand.u32 %v87, 2147483648
    %v100 = vsel %vm98, %v99, %v97
    %v101 = vrsqrt.pop %v88
    %v102 = vmul.f32 %v101, %v88
    %v103 = vmul.f32 %v102, %v101
    %v104 = vmul.f32 0.5, %v103
    %v105 = vsub.f32 1.5, %v104
    %v106 = vmul.f32 %v101, %v105
    %v107 = vmul.f32 %v88, %v106
    %vm108 = vcmp.eq.f32.partialorder %v88, inf
    %v109 = vsel %vm108, %v88, %v107
    %vm110 = vcmp.eq.f32.partialorder %v88, 0.0
    %v111 = vand.u32 %v88, 2147483648
    %v112 = vsel %vm110, %v111, %v109
    %v114 = vperm.slane %v52, 0
    %v116 = vmul.f32 %v114, %v70
    %v117 = vmul.f32 %v114, %v71
    %v118 = vadd.f32 %v100, 1e-06
    %v119 = vadd.f32 %v112, 1e-06
    %v120 = vrcp.pop %v118
    %v121 = vmul.f32 %v118, %v120
    %v122 = vsub.f32 1.0, %v121
    %v123 = vmul.f32 %v120, %v122
    %v124 = vadd.f32 %v120, %v123
    %vm125 = vweird.f32 %v118
    %vm126 = vweird.f32 %v120
    %vm127 = vmor %vm125, %vm126
    %v128 = vsel %vm127, %v120, %v124
    %v129 = vand.u32 2147483647, %v118
    %vm130 = vcmp.eq.f32.partialorder %v129, 8.507059e+37
    %v131 = vand.u32 %v118, 2147483648
    %v132 = vor.u32 1.1754944e-38, %v131
    %v133 = vsel %vm130, %v132, %v128
    %v134 = vmul.f32 %v116, %v133
    %v135 = vrcp.pop %v119
    %v136 = vmul.f32 %v119, %v135
    %v137 = vsub.f32 1.0, %v136
    %v138 = vmul.f32 %v135, %v137
    %v139 = vadd.f32 %v135, %v138
    %vm140 = vweird.f32 %v119
    %vm141 = vweird.f32 %v135
    %vm142 = vmor %vm140, %vm141
    %v143 = vsel %vm142, %v135, %v139
    %v144 = vand.u32 2147483647, %v119
    %vm145 = vcmp.eq.f32.partialorder %v144, 8.507059e+37
    %v146 = vand.u32 %v119, 2147483648
    %v147 = vor.u32 1.1754944e-38, %v146
    %v148 = vsel %vm145, %v147, %v143
    %v149 = vmul.f32 %v117, %v148
    %v151 = vperm.slane %v53, 0
    %v153 = vadd.f32 %v134, %v151
    %v154 = vadd.f32 %v149, %v151
    %v155 = vld [vmem:[#allocation2] sm:$0xff]
    %v156 = vld [vmem:[#allocation2 + $0x8] sm:$0xff]
    %v157 = vld [vmem:[#allocation2 + $0x10] sm:$0xff]
    %v158 = vld [vmem:[#allocation2 + $0x18] sm:$0xff]
    %v159 = vld [vmem:[#allocation4] sm:$0x1]
    %v161 = vperm.slane %v159, 0
    %v164 = vsel %vm54, %v153, 0
    %v167 = vsel %vm54, %v154, 0
    %169 = vmatpush.msra.mxu0 0.0
    %170 = vmatpush.msra.mxu0 0.0
    %171 = vmatpush.msra.mxu0 0.0
    %172 = vmatpush.msra.mxu0 0.0
    %173 = vmatpush.msra.mxu0 0.0
    %174 = vmatpush.msra.mxu0 0.0
    %175 = vmatpush.msra.mxu0 0.0
    %176 = vmatpush.msra.mxu0 0.0
    %177 = vmatpush.msra.mxu0 0.0
    %178 = vmatpush.msra.mxu0 0.0
    %179 = vmatpush.msra.mxu0 0.0
    %180 = vmatpush.msra.mxu0 0.0
    %181 = vmatpush.msra.mxu0 %v158
    %182 = vmatpush.msra.mxu0 %v157
    %183 = vmatpush.msra.mxu0 %v156
    %184 = vmatpush.msra.mxu0 %v155
    %185 = vmatmul.f32.gmra.mxu0 %v164
    %v186 = vpop.f32.mrf.mxu0
    %v187 = vadd.f32 %v161, %v186
    %188 = vmatmul.f32.gmra.mxu0 %v167
    %v189 = vpop.f32.mrf.mxu0
    %v190 = vadd.f32 %v161, %v189
    %191 = vdwg.mxu0
    %192 = vst.msk [vmem:[%s5] sm:$0xff] %vm54, %v187
    %193 = vst.msk [vmem:[%s5 + $0x8] sm:$0xff] %vm54, %v190
    // Predicated region
    $region30: #{decoder_forward.20} parent=1 // pred_check
      _
    $region31: #{decoder_forward.20} parent=1 // pred_check_branch
      %195 = sbr.rel (0) target = $region33
    $region32: #{decoder_forward.20} parent=1 // pred_region
      _
    $region33: #{decoder_forward.20} parent=1 // pred_fallthru
      _
    // Predicated region
    $region34: #{decoder_forward.20} parent=1 // pred_check
      _
    $region35: #{decoder_forward.20} parent=1 // pred_check_branch
      %197 = sbr.rel (0) target = $region37
    $region36: #{decoder_forward.20} parent=1 // pred_region
      _
    $region37: #{decoder_forward.20} parent=1 // pred_fallthru
      _
    %198 = vsyncpa [#allocation3], 1
    %199 = vsyncpa [#allocation5], 1

// kernel: decoder_forward.17
$region0: #{decoder_forward.17}
  #allocation0 [shape = 'u32[]', space=smem, size = 0x4, offset = 0x4, fixed_abs, tag = 'smem constant byte address 0x4 - core index']
  #allocation1 [shape = 'u32[72,128]{1,0:T(1,128)}', space=vmem, size = 0x9000, scoped, tag = 'internal scratch']
  %s0 = inlined_call_operand.vmem [shape: f32[16,32], index: 0, kind: input, shape index: {}]
  %s1 = inlined_call_operand.vmem [shape: f32[1,32], index: 1, kind: input, shape index: {}]
  %s2 = inlined_call_operand.vmem [shape: f32[1,32], index: 2, kind: input, shape index: {}]
  %s3 = inlined_call_operand.hbm [shape: f32[32,96], index: 3, kind: input, shape index: {}]
  %s4 = inlined_call_operand.vmem [shape: f32[1,96], index: 4, kind: input, shape index: {}]
  %s5 = inlined_call_operand.vmem [shape: f32[16,96], index: 5, kind: output, shape index: {}]
  %s6 = sld [smem:[#allocation0]]
  $region34: #{decoder_forward.17} parent=0
    _
  %s8 = ssub.s32 1, %s6
  %s9 = scalar_select 0, %s8, %s6
  $region1: #{decoder_forward.17} parent=0
    #allocation2 [shape = 'u8[16384]{0}', space=vmem, size = 0x4000, scoped, tag = 'input window, operand 3, single buffered']
    #allocation3 [shape = 's32[1]{0}', space=sflag, size = 0x4, scoped, tag = 'scoped memory for decoder_forward.17']
    %10 = vsyncpa [#allocation3], 0
    // Predicated region
    $region2: #{decoder_forward.17} parent=1 // pred_check
      _
    $region3: #{decoder_forward.17} parent=1 // pred_check_branch
      %12 = sbr.rel (0) target = $region5
    $region4: #{decoder_forward.17} parent=1 // pred_region
      _
    $region5: #{decoder_forward.17} parent=1 // pred_fallthru
      _
    // Predicated region
    $region6: #{decoder_forward.17} parent=1 // pred_check
      _
    $region7: #{decoder_forward.17} parent=1 // pred_check_branch
      %14 = sbr.rel (0) target = $region9
    $region8: #{decoder_forward.17} parent=1 // pred_region
      _
    $region9: #{decoder_forward.17} parent=1 // pred_fallthru
      _
    // Predicated region
    $region10: #{decoder_forward.17} parent=1 // pred_check
      _
    $region11: #{decoder_forward.17} parent=1 // pred_check_branch
      %16 = sbr.rel (0) target = $region13
    $region12: #{decoder_forward.17} parent=1 // pred_region
      _
    $region13: #{decoder_forward.17} parent=1 // pred_fallthru
      _
    // Predicated region
    $region14: #{decoder_forward.17} parent=1 // pred_check
      _
    $region15: #{decoder_forward.17} parent=1 // pred_check_branch
      %18 = sbr.rel (0) target = $region17
    $region16: #{decoder_forward.17} parent=1 // pred_region
      %20 = vsyncadd [#allocation3], 0
      %s21 = sshll.u32 %s3, 4
      %s22 = int_to_ptr.hbm [resolvable:$true] %s21
      %s23 = sshll.u32 [#allocation2], 4
      %s24 = int_to_ptr.vmem [resolvable:$true] %s23
      %29 = dma.hbm_to_vmem [thread:$0]  %s22, 512, %s24, [#allocation3], 128, 128, 8
    $region17: #{decoder_forward.17} parent=1 // pred_fallthru
      _
    // Predicated region
    $region18: #{decoder_forward.17} parent=1 // pred_check
      _
    $region19: #{decoder_forward.17} parent=1 // pred_check_branch
      %31 = sbr.rel (0) target = $region21
    $region20: #{decoder_forward.17} parent=1 // pred_region
      _
    $region21: #{decoder_forward.17} parent=1 // pred_fallthru
      _
    // Predicated region
    $region22: #{decoder_forward.17} parent=1 // pred_check
      _
    $region23: #{decoder_forward.17} parent=1 // pred_check_branch
      %33 = sbr.rel (0) target = $region25
    $region24: #{decoder_forward.17} parent=1 // pred_region
      %35 = dma.done [#allocation3], 512
    $region25: #{decoder_forward.17} parent=1 // pred_fallthru
      _
    %v36 = vld [vmem:[%s0] sm:$0xff]
    %v37 = vld [vmem:[%s0 + $0x8] sm:$0xff]
    %v38 = vld [vmem:[%s1] sm:$0x1]
    %v39 = vld [vmem:[%s2] sm:$0x1]
    %vm40 = vcmask 261120
    %v41 = vsel %vm40, %v36, 0.0
    %42 = vadd.xlane.f32.xlu0 %v41
    %v43 = vpop.xlane.xlu0 %42
    %v44 = vsel %vm40, %v37, 0.0
    %45 = vadd.xlane.f32.xlu0 %v44
    %v46 = vpop.xlane.xlu0 %45
    %v47 = vrcp.pop 32.0
    %v48 = vmul.f32 32.0, %v47
    %v49 = vsub.f32 1.0, %v48
    %v50 = vmul.f32 %v47, %v49
    %v51 = vadd.f32 %v47, %v50
    %vm52 = vweird.f32 %v47
    %v53 = vsel %vm52, %v47, %v51
    %v54 = vmul.f32 %v43, %v53
    %v55 = vmul.f32 %v46, %v53
    %v56 = vsub.f32 %v36, %v54
    %v57 = vsub.f32 %v37, %v55
    %v58 = vmul.f32 %v56, %v56
    %v59 = vmul.f32 %v57, %v57
    %v60 = vsel %vm40, %v58, 0.0
    %61 = vadd.xlane.f32.xlu0 %v60
    %v62 = vpop.xlane.xlu0 %61
    %v63 = vsel %vm40, %v59, 0.0
    %64 = vadd.xlane.f32.xlu0 %v63
    %v65 = vpop.xlane.xlu0 %64
    %v66 = vrcp.pop 31.0
    %v67 = vmul.f32 31.0, %v66
    %v68 = vsub.f32 1.0, %v67
    %v69 = vmul.f32 %v66, %v68
    %v70 = vadd.f32 %v66, %v69
    %vm71 = vweird.f32 %v66
    %v72 = vsel %vm71, %v66, %v70
    %v73 = vmul.f32 %v62, %v72
    %v74 = vmul.f32 %v65, %v72
    %v75 = vrsqrt.pop %v73
    %v76 = vmul.f32 %v75, %v73
    %v77 = vmul.f32 %v76, %v75
    %v78 = vmul.f32 0.5, %v77
    %v79 = vsub.f32 1.5, %v78
    %v80 = vmul.f32 %v75, %v79
    %v81 = vmul.f32 %v73, %v80
    %vm82 = vcmp.eq.f32.partialorder %v73, inf
    %v83 = vsel %vm82, %v73, %v81
    %vm84 = vcmp.eq.f32.partialorder %v73, 0.0
    %v85 = vand.u32 %v73, 2147483648
    %v86 = vsel %vm84, %v85, %v83
    %v87 = vrsqrt.pop %v74
    %v88 = vmul.f32 %v87, %v74
    %v89 = vmul.f32 %v88, %v87
    %v90 = vmul.f32 0.5, %v89
    %v91 = vsub.f32 1.5, %v90
    %v92 = vmul.f32 %v87, %v91
    %v93 = vmul.f32 %v74, %v92
    %vm94 = vcmp.eq.f32.partialorder %v74, inf
    %v95 = vsel %vm94, %v74, %v93
    %vm96 = vcmp.eq.f32.partialorder %v74, 0.0
    %v97 = vand.u32 %v74, 2147483648
    %v98 = vsel %vm96, %v97, %v95
    %v100 = vperm.slane %v38, 0
    %v102 = vmul.f32 %v100, %v56
    %v103 = vmul.f32 %v100, %v57
    %v104 = vadd.f32 %v86, 1e-06
    %v105 = vadd.f32 %v98, 1e-06
    %v106 = vrcp.pop %v104
    %v107 = vmul.f32 %v104, %v106
    %v108 = vsub.f32 1.0, %v107
    %v109 = vmul.f32 %v106, %v108
    %v110 = vadd.f32 %v106, %v109
    %vm111 = vweird.f32 %v104
    %vm112 = vweird.f32 %v106
    %vm113 = vmor %vm111, %vm112
    %v114 = vsel %vm113, %v106, %v110
    %v115 = vand.u32 2147483647, %v104
    %vm116 = vcmp.eq.f32.partialorder %v115, 8.507059e+37
    %v117 = vand.u32 %v104, 2147483648
    %v118 = vor.u32 1.1754944e-38, %v117
    %v119 = vsel %vm116, %v118, %v114
    %v120 = vmul.f32 %v102, %v119
    %v121 = vrcp.pop %v105
    %v122 = vmul.f32 %v105, %v121
    %v123 = vsub.f32 1.0, %v122
    %v124 = vmul.f32 %v121, %v123
    %v125 = vadd.f32 %v121, %v124
    %vm126 = vweird.f32 %v105
    %vm127 = vweird.f32 %v121
    %vm128 = vmor %vm126, %vm127
    %v129 = vsel %vm128, %v121, %v125
    %v130 = vand.u32 2147483647, %v105
    %vm131 = vcmp.eq.f32.partialorder %v130, 8.507059e+37
    %v132 = vand.u32 %v105, 2147483648
    %v133 = vor.u32 1.1754944e-38, %v132
    %v134 = vsel %vm131, %v133, %v129
    %v135 = vmul.f32 %v103, %v134
    %v137 = vperm.slane %v39, 0
    %v139 = vadd.f32 %v120, %v137
    %v140 = vadd.f32 %v135, %v137
    %v141 = vld [vmem:[#allocation2] sm:$0xff]
    %v142 = vld [vmem:[#allocation2 + $0x8] sm:$0xff]
    %v143 = vld [vmem:[#allocation2 + $0x10] sm:$0xff]
    %v144 = vld [vmem:[#allocation2 + $0x18] sm:$0xff]
    %v145 = vld [vmem:[%s4] sm:$0x1]
    %v147 = vperm.slane %v145, 0
    %v150 = vsel %vm40, %v139, 0
    %v153 = vsel %vm40, %v140, 0
    %155 = vmatpush.msra.mxu0 0.0
    %156 = vmatpush.msra.mxu0 0.0
    %157 = vmatpush.msra.mxu0 0.0
    %158 = vmatpush.msra.mxu0 0.0
    %159 = vmatpush.msra.mxu0 0.0
    %160 = vmatpush.msra.mxu0 0.0
    %161 = vmatpush.msra.mxu0 0.0
    %162 = vmatpush.msra.mxu0 0.0
    %163 = vmatpush.msra.mxu0 0.0
    %164 = vmatpush.msra.mxu0 0.0
    %165 = vmatpush.msra.mxu0 0.0
    %166 = vmatpush.msra.mxu0 0.0
    %167 = vmatpush.msra.mxu0 %v144
    %168 = vmatpush.msra.mxu0 %v143
    %169 = vmatpush.msra.mxu0 %v142
    %170 = vmatpush.msra.mxu0 %v141
    %171 = vmatmul.f32.gmra.mxu0 %v150
    %v172 = vpop.f32.mrf.mxu0
    %v173 = vadd.f32 %v147, %v172
    %174 = vmatmul.f32.gmra.mxu0 %v153
    %v175 = vpop.f32.mrf.mxu0
    %v176 = vadd.f32 %v147, %v175
    %177 = vdwg.mxu0
    %vm178 = vcmask 785408
    %179 = vst.msk [vmem:[%s5] sm:$0xff] %vm178, %v173
    %180 = vst.msk [vmem:[%s5 + $0x8] sm:$0xff] %vm178, %v176
    // Predicated region
    $region26: #{decoder_forward.17} parent=1 // pred_check
      _
    $region27: #{decoder_forward.17} parent=1 // pred_check_branch
      %182 = sbr.rel (0) target = $region29
    $region28: #{decoder_forward.17} parent=1 // pred_region
      _
    $region29: #{decoder_forward.17} parent=1 // pred_fallthru
      _
    // Predicated region
    $region30: #{decoder_forward.17} parent=1 // pred_check
      _
    $region31: #{decoder_forward.17} parent=1 // pred_check_branch
      %184 = sbr.rel (0) target = $region33
    $region32: #{decoder_forward.17} parent=1 // pred_region
      _
    $region33: #{decoder_forward.17} parent=1 // pred_fallthru
      _
    %185 = vsyncpa [#allocation3], 1

// kernel: decoder_forward.18
$region0: #{decoder_forward.18}
  #allocation0 [shape = 'u32[]', space=smem, size = 0x4, offset = 0x4, fixed_abs, tag = 'smem constant byte address 0x4 - core index']
  #allocation1 [shape = 'u32[72,128]{1,0:T(1,128)}', space=vmem, size = 0x9000, scoped, tag = 'internal scratch']
  %s0 = inlined_call_operand.vmem [shape: f32[2,8,96], index: 0, kind: input, shape index: {}]
  %s1 = inlined_call_operand.hbm [shape: f32[2,8,8], index: 1, kind: input, shape index: {}]
  %s2 = inlined_call_operand.vmem [shape: f32[2,8,32], index: 2, kind: output, shape index: {}]
  %s3 = sld [smem:[#allocation0]]
  $region45: #{decoder_forward.18} parent=0
    _
  %s5 = ssub.s32 1, %s3
  %s6 = scalar_select 0, %s5, %s3
  $region1: #{decoder_forward.18} parent=0
    #allocation2 [shape = 'u8[8192]{0}', space=vmem, size = 0x2000, scoped, tag = 'input window, operand 1']
    #allocation3 [shape = 's32[2]{0}', space=sflag, size = 0x8, scoped, tag = 'scoped memory for decoder_forward.18']
    %7 = vsyncpa [#allocation3], 0
    %s8 = scalar_lea.sflag [#allocation3], 1
    %9 = vsyncpa %s8, 0
    loop: start=0, step=1, limit=4
    $region2: #{decoder_forward.18} parent=1 // loop_pre_header
      _
    $region3: #{decoder_forward.18} parent=1 // loop_header
      %s11 = sphi 0, %s15
      %p12 = scmp.ge.s32.totalorder %s11, 4
      %s21 = sphi 0, %s23
      %s24 = sphi 0, %s21
      %s25 = sphi 0, %s24
      %s41 = sphi 0, %s25
      %s47 = sphi 0, %s49
      %s50 = sphi 0, %s47
      %s51 = sphi 0, %s50
      %s67 = sphi 0, %s51
      %s73 = sphi 0, %s75
      %s76 = sphi 0, %s73
      %s77 = sphi 0, %s76
      %s93 = sphi 0, %s77
    $region4: #{decoder_forward.18} parent=1 // loop_header_branch
      %14 = sbr.rel (%p12) target = $region8
    $region5: #{decoder_forward.18} parent=1 // loop_body
      %s16 = ssub.s32 %s11, 1
      %s17 = ssub.s32 %s11, 2
      %s18 = sadd.s32 %s11, 1
      %s19 = ssub.s32 %s11, %s18
      %p20 = scmp.eq.s32.totalorder %s19, 0
      %s22 = sadd.s32 %s21, 1
      %s23 = scalar_select %p20, %s21, %s22
      %p26 = pneg %p20
      %p27 = scmp.eq.s32.totalorder %s11, 1
      %p28 = por %p26, %p27
      %p29 = scmp.ne.s32.totalorder %s21, %s24
      %p30 = scmp.eq.s32.totalorder %s11, 0
      %p31 = por %p29, %p30
      %p32 = scmp.ne.s32.totalorder %s21, %s24
      %p33 = scmp.eq.s32.totalorder %s16, 1
      %p34 = por %p32, %p33
      %p35 = scmp.ne.s32.totalorder %s24, %s25
      %p36 = scmp.eq.s32.totalorder %s16, 0
      %p37 = por %p35, %p36
      %p38 = scmp.ne.s32.totalorder %s24, %s25
      %p39 = scmp.eq.s32.totalorder %s17, 1
      %p40 = por %p38, %p39
      %p42 = scmp.ne.s32.totalorder %s25, %s41
      %p43 = scmp.eq.s32.totalorder %s17, 0
      %p44 = por %p42, %p43
      %s45 = ssub.s32 %s11, %s18
      %p46 = scmp.eq.s32.totalorder %s45, 0
      %s48 = sadd.s32 %s47, 1
      %s49 = scalar_select %p46, %s47, %s48
      %p52 = pneg %p46
      %p53 = scmp.eq.s32.totalorder %s11, 1
      %p54 = por %p52, %p53
      %p55 = scmp.ne.s32.totalorder %s47, %s50
      %p56 = scmp.eq.s32.totalorder %s11, 0
      %p57 = por %p55, %p56
      %p58 = scmp.ne.s32.totalorder %s47, %s50
      %p59 = scmp.eq.s32.totalorder %s16, 1
      %p60 = por %p58, %p59
      %p61 = scmp.ne.s32.totalorder %s50, %s51
      %p62 = scmp.eq.s32.totalorder %s16, 0
      %p63 = por %p61, %p62
      %p64 = scmp.ne.s32.totalorder %s50, %s51
      %p65 = scmp.eq.s32.totalorder %s17, 1
      %p66 = por %p64, %p65
      %p68 = scmp.ne.s32.totalorder %s51, %s67
      %p69 = scmp.eq.s32.totalorder %s17, 0
      %p70 = por %p68, %p69
      %s71 = ssub.s32 %s11, %s18
      %p72 = scmp.eq.s32.totalorder %s71, 0
      %s74 = sadd.s32 %s73, 1
      %s75 = scalar_select %p72, %s73, %s74
      %p78 = pneg %p72
      %p79 = scmp.eq.s32.totalorder %s11, 1
      %p80 = por %p78, %p79
      %p81 = scmp.ne.s32.totalorder %s73, %s76
      %p82 = scmp.eq.s32.totalorder %s11, 0
      %p83 = por %p81, %p82
      %p84 = scmp.ne.s32.totalorder %s73, %s76
      %p85 = scmp.eq.s32.totalorder %s16, 1
      %p86 = por %p84, %p85
      %p87 = scmp.ne.s32.totalorder %s76, %s77
      %p88 = scmp.eq.s32.totalorder %s16, 0
      %p89 = por %p87, %p88
      %p90 = scmp.ne.s32.totalorder %s76, %s77
      %p91 = scmp.eq.s32.totalorder %s17, 1
      %p92 = por %p90, %p91
      %p94 = scmp.ne.s32.totalorder %s77, %s93
      %p95 = scmp.eq.s32.totalorder %s17, 0
      %p96 = por %p94, %p95
      %p97 = scmp.le.s32.totalorder 1, %s11
      %p98 = scmp.lt.s32.totalorder %s11, 3
      %p99 = pnand %p97, %p98
      %p100 = pneg %p99
      // Predicated region
      $region9: #{decoder_forward.18} parent=5 // pred_check
        _
      $region10: #{decoder_forward.18} parent=5 // pred_check_branch
        %102 = sbr.rel (%p99) target = $region12
      $region11: #{decoder_forward.18} parent=5 // pred_region
        %s103 = ssub.s32 %s11, 1
      $region12: #{decoder_forward.18} parent=5 // pred_fallthru
        _
      %p104 = scmp.lt.s32.totalorder %s11, 2
      // Predicated region
      $region13: #{decoder_forward.18} parent=5 // pred_check
        %p105 = pneg %p104
      $region14: #{decoder_forward.18} parent=5 // pred_check_branch
        %107 = sbr.rel (%p105) target = $region16
      $region15: #{decoder_forward.18} parent=5 // pred_region
        // Predicated region
        $region17: #{decoder_forward.18} parent=15 // pred_check
          %p108 = pneg %p31
        $region18: #{decoder_forward.18} parent=15 // pred_check_branch
          %110 = sbr.rel (%p108) target = $region20
        $region19: #{decoder_forward.18} parent=15 // pred_region
          %p111 = scmp.lt.s32.totalorder %s11, 1
          %s112 = scalar_select %p111, %s11, 1
          %s113 = smul.addr %s112, 8
          %s114 = scalar_lea.vmem %s0, %s113
        $region20: #{decoder_forward.18} parent=15 // pred_fallthru
          _
        // Predicated region
        $region21: #{decoder_forward.18} parent=15 // pred_check
          %p115 = pneg %p57
        $region22: #{decoder_forward.18} parent=15 // pred_check_branch
          %117 = sbr.rel (%p115) target = $region24
        $region23: #{decoder_forward.18} parent=15 // pred_region
          %s118 = sand.u32 %s47, 1
          %s119 = scalar_lea.sflag [#allocation3], %s118
          %s120 = sand.u32 %s47, 1
          %s121 = smul.addr %s120, 8
          %s122 = scalar_lea.vmem [#allocation2], %s121
          %124 = vsyncadd %s119, 0
          %s125 = smul.addr %s11, 8
          %s126 = scalar_lea.hbm %s1, %s125
          %s128 = sshll.u32 %s126, 4
          %s129 = int_to_ptr.hbm [resolvable:$true] %s128
          %s130 = sshll.u32 %s122, 4
          %s131 = int_to_ptr.vmem [resolvable:$true] %s130
          %133 = dma.hbm_to_vmem [thread:$0]  %s129, 128, %s131, %s119
        $region24: #{decoder_forward.18} parent=15 // pred_fallthru
          _
      $region16: #{decoder_forward.18} parent=5 // pred_fallthru
        _
      %p134 = scmp.le.s32.totalorder 1, %s11
      %p135 = scmp.lt.s32.totalorder %s11, 3
      %p136 = pnand %p134, %p135
      %p137 = pneg %p136
      // Predicated region
      $region25: #{decoder_forward.18} parent=5 // pred_check
        _
      $region26: #{decoder_forward.18} parent=5 // pred_check_branch
        %139 = sbr.rel (%p136) target = $region28
      $region27: #{decoder_forward.18} parent=5 // pred_region
        %s140 = ssub.s32 %s11, 1
        %s141 = sand.u32 %s50, 1
        %s142 = scalar_lea.sflag [#allocation3], %s141
        %s143 = sand.u32 %s50, 1
        %s144 = smul.addr %s143, 8
        %s145 = scalar_lea.vmem [#allocation2], %s144
        // Predicated region
        $region29: #{decoder_forward.18} parent=27 // pred_check
          %p146 = pneg %p63
        $region30: #{decoder_forward.18} parent=27 // pred_check_branch
          %148 = sbr.rel (%p146) target = $region32
        $region31: #{decoder_forward.18} parent=27 // pred_region
          %150 = dma.done %s142, 128
        $region32: #{decoder_forward.18} parent=27 // pred_fallthru
          _
        %p151 = scmp.lt.s32.totalorder %s16, 1
        %s152 = scalar_select %p151, %s16, 1
        %s153 = smul.addr %s152, 8
        %s154 = scalar_lea.vmem %s0, %s153
        %p155 = pneg %p37
        %p156 = pneg %p34
        %s157 = sand.u32 %s50, 1
        %s158 = scalar_lea.sflag [#allocation3], %s157
        %s159 = sand.u32 %s50, 1
        %s160 = smul.addr %s159, 8
        %s161 = scalar_lea.vmem [#allocation2], %s160
        %p162 = pneg %p63
        %p163 = pneg %p60
        %p164 = pneg %p89
        %p165 = pneg %p86
        %p166 = scmp.lt.s32.totalorder %s16, 1
        %s167 = scalar_select %p166, %s16, 1
        %s168 = smul.addr %s167, 8
        %s169 = scalar_lea.vmem %s2, %s168
        %p170 = scmp.lt.s32.totalorder %s16, 1
        %s171 = scalar_select %p170, %s16, 1
        %s172 = smul.addr %s171, 8
        %s173 = scalar_lea.vmem %s0, %s172
        %p174 = scmp.lt.s32.totalorder %s16, 1
        %s175 = scalar_select %p174, %s16, 1
        %s176 = smul.addr %s175, 8
        %s177 = scalar_lea.vmem %s2, %s176
        %v178 = vld [vmem:[%s173] sm:$0xff]
        %v179 = vld [vmem:[%s145] sm:$0xff]
        %vm180 = vcmp.eq.f32.partialorder %v179, 0.0
        %182 = vrot.lane.b32.xlu0 %v178, 96
        %v183 = vpop.permute.xlu0 %182
        %vm184 = vcmask 64512
        %v185 = vsel %vm184, %v178, 0
        %v187 = vsel %vm184, %v183, 0
        %189 = vmatpush.xpose.msra.mxu0 0.0
        %190 = vmatpush.xpose.msra.mxu0 0.0
        %191 = vmatpush.xpose.msra.mxu0 0.0
        %192 = vmatpush.xpose.msra.mxu0 0.0
        %193 = vmatpush.xpose.msra.mxu0 0.0
        %194 = vmatpush.xpose.msra.mxu0 0.0
        %195 = vmatpush.xpose.msra.mxu0 0.0
        %196 = vmatpush.xpose.msra.mxu0 0.0
        %197 = vmatpush.xpose.msra.mxu0 0.0
        %198 = vmatpush.xpose.msra.mxu0 0.0
        %199 = vmatpush.xpose.msra.mxu0 0.0
        %200 = vmatpush.xpose.msra.mxu0 0.0
        %201 = vmatpush.xpose.msra.mxu0 0.0
        %202 = vmatpush.xpose.msra.mxu0 0.0
        %203 = vmatpush.xpose.msra.mxu0 0.0
        %204 = vmatpush.xpose.msra.mxu0 %v187
        %205 = vmatmul.f32.gmra.mxu0 %v185
        %v206 = vpop.f32.mrf.mxu0
        %v207 = vadd.f32 0.0, %v206
        %208 = vdwg.mxu0
        %v209 = vmul.f32 %v207, 0.35355338
        %v210 = vsel %vm180, -1e+09, %v209
        %v211 = vsel %vm184, %v210, -inf
        %212 = vmax.xlane.f32.xlu0 %v211
        %v213 = vpop.xlane.xlu0 %212
        %v214 = vsub.f32 %v210, %v213
        %v215 = vmul.f32 %v214, 1.442695
        %v216 = vpow.pop %v215
        %v217 = vsel %vm184, %v216, 0.0
        %218 = vadd.xlane.f32.xlu0 %v217
        %v219 = vpop.xlane.xlu0 %218
        %v220 = vrcp.pop %v219
        %v221 = vmul.f32 %v216, %v220
        %222 = vrot.lane.b32.xlu0 %v178, 64
        %v223 = vpop.permute.xlu0 %222
        %v226 = vsel %vm184, %v221, 0
        %228 = vmatpush.msra.mxu0 0.0
        %229 = vmatpush.msra.mxu0 0.0
        %230 = vmatpush.msra.mxu0 0.0
        %231 = vmatpush.msra.mxu0 0.0
        %232 = vmatpush.msra.mxu0 0.0
        %233 = vmatpush.msra.mxu0 0.0
        %234 = vmatpush.msra.mxu0 0.0
        %235 = vmatpush.msra.mxu0 0.0
        %236 = vmatpush.msra.mxu0 0.0
        %237 = vmatpush.msra.mxu0 0.0
        %238 = vmatpush.msra.mxu0 0.0
        %239 = vmatpush.msra.mxu0 0.0
        %240 = vmatpush.msra.mxu0 0.0
        %241 = vmatpush.msra.mxu0 0.0
        %242 = vmatpush.msra.mxu0 0.0
        %243 = vmatpush.msra.mxu0 %v223
        %244 = vmatmul.f32.gmra.mxu0 %v226
        %v245 = vpop.f32.mrf.mxu0
        %v246 = vadd.f32 0.0, %v245
        %247 = vdwg.mxu0
        %248 = vrot.lane.b32.xlu0 %v178, 120
        %v249 = vpop.permute.xlu0 %248
        %250 = vrot.lane.b32.xlu0 %v178, 88
        %v251 = vpop.permute.xlu0 %250
        %v252 = vsel %vm184, %v249, 0
        %v254 = vsel %vm184, %v251, 0
        %256 = vmatpush.xpose.msra.mxu0 0.0
        %257 = vmatpush.xpose.msra.mxu0 0.0
        %258 = vmatpush.xpose.msra.mxu0 0.0
        %259 = vmatpush.xpose.msra.mxu0 0.0
        %260 = vmatpush.xpose.msra.mxu0 0.0
        %261 = vmatpush.xpose.msra.mxu0 0.0
        %262 = vmatpush.xpose.msra.mxu0 0.0
        %263 = vmatpush.xpose.msra.mxu0 0.0
        %264 = vmatpush.xpose.msra.mxu0 0.0
        %265 = vmatpush.xpose.msra.mxu0 0.0
        %266 = vmatpush.xpose.msra.mxu0 0.0
        %267 = vmatpush.xpose.msra.mxu0 0.0
        %268 = vmatpush.xpose.msra.mxu0 0.0
        %269 = vmatpush.xpose.msra.mxu0 0.0
        %270 = vmatpush.xpose.msra.mxu0 0.0
        %271 = vmatpush.xpose.msra.mxu0 %v254
        %272 = vmatmul.f32.gmra.mxu0 %v252
        %v273 = vpop.f32.mrf.mxu0
        %v274 = vadd.f32 0.0, %v273
        %275 = vdwg.mxu0
        %v276 = vmul.f32 %v274, 0.35355338
        %v277 = vsel %vm180, -1e+09, %v276
        %v278 = vsel %vm184, %v277, -inf
        %279 = vmax.xlane.f32.xlu0 %v278
        %v280 = vpop.xlane.xlu0 %279
        %v281 = vsub.f32 %v277, %v280
        %v282 = vmul.f32 %v281, 1.442695
        %v283 = vpow.pop %v282
        %v284 = vsel %vm184, %v283, 0.0
        %285 = vadd.xlane.f32.xlu0 %v284
        %v286 = vpop.xlane.xlu0 %285
        %v287 = vrcp.pop %v286
        %v288 = vmul.f32 %v283, %v287
        %289 = vrot.lane.b32.xlu0 %v178, 56
        %v290 = vpop.permute.xlu0 %289
        %v293 = vsel %vm184, %v288, 0
        %295 = vmatpush.msra.mxu0 0.0
        %296 = vmatpush.msra.mxu0 0.0
        %297 = vmatpush.msra.mxu0 0.0
        %298 = vmatpush.msra.mxu0 0.0
        %299 = vmatpush.msra.mxu0 0.0
        %300 = vmatpush.msra.mxu0 0.0
        %301 = vmatpush.msra.mxu0 0.0
        %302 = vmatpush.msra.mxu0 0.0
        %303 = vmatpush.msra.mxu0 0.0
        %304 = vmatpush.msra.mxu0 0.0
        %305 = vmatpush.msra.mxu0 0.0
        %306 = vmatpush.msra.mxu0 0.0
        %307 = vmatpush.msra.mxu0 0.0
        %308 = vmatpush.msra.mxu0 0.0
        %309 = vmatpush.msra.mxu0 0.0
        %310 = vmatpush.msra.mxu0 %v290
        %311 = vmatmul.f32.gmra.mxu0 %v293
        %v312 = vpop.f32.mrf.mxu0
        %v313 = vadd.f32 0.0, %v312
        %314 = vdwg.mxu0
        %315 = vrot.lane.b32.xlu0 %v178, 112
        %v316 = vpop.permute.xlu0 %315
        %317 = vrot.lane.b32.xlu0 %v178, 80
        %v318 = vpop.permute.xlu0 %317
        %v319 = vsel %vm184, %v316, 0
        %v321 = vsel %vm184, %v318, 0
        %323 = vmatpush.xpose.msra.mxu0 0.0
        %324 = vmatpush.xpose.msra.mxu0 0.0
        %325 = vmatpush.xpose.msra.mxu0 0.0
        %326 = vmatpush.xpose.msra.mxu0 0.0
        %327 = vmatpush.xpose.msra.mxu0 0.0
        %328 = vmatpush.xpose.msra.mxu0 0.0
        %329 = vmatpush.xpose.msra.mxu0 0.0
        %330 = vmatpush.xpose.msra.mxu0 0.0
        %331 = vmatpush.xpose.msra.mxu0 0.0
        %332 = vmatpush.xpose.msra.mxu0 0.0
        %333 = vmatpush.xpose.msra.mxu0 0.0
        %334 = vmatpush.xpose.msra.mxu0 0.0
        %335 = vmatpush.xpose.msra.mxu0 0.0
        %336 = vmatpush.xpose.msra.mxu0 0.0
        %337 = vmatpush.xpose.msra.mxu0 0.0
        %338 = vmatpush.xpose.msra.mxu0 %v321
        %339 = vmatmul.f32.gmra.mxu0 %v319
        %v340 = vpop.f32.mrf.mxu0
        %v341 = vadd.f32 0.0, %v340
        %342 = vdwg.mxu0
        %v343 = vmul.f32 %v341, 0.35355338
        %v344 = vsel %vm180, -1e+09, %v343
        %v345 = vsel %vm184, %v344, -inf
        %346 = vmax.xlane.f32.xlu0 %v345
        %v347 = vpop.xlane.xlu0 %346
        %v348 = vsub.f32 %v344, %v347
        %v349 = vmul.f32 %v348, 1.442695
        %v350 = vpow.pop %v349
        %v351 = vsel %vm184, %v350, 0.0
        %352 = vadd.xlane.f32.xlu0 %v351
        %v353 = vpop.xlane.xlu0 %352
        %v354 = vrcp.pop %v353
        %v355 = vmul.f32 %v350, %v354
        %356 = vrot.lane.b32.xlu0 %v178, 48
        %v357 = vpop.permute.xlu0 %356
        %v360 = vsel %vm184, %v355, 0
        %362 = vmatpush.msra.mxu0 0.0
        %363 = vmatpush.msra.mxu0 0.0
        %364 = vmatpush.msra.mxu0 0.0
        %365 = vmatpush.msra.mxu0 0.0
        %366 = vmatpush.msra.mxu0 0.0
        %367 = vmatpush.msra.mxu0 0.0
        %368 = vmatpush.msra.mxu0 0.0
        %369 = vmatpush.msra.mxu0 0.0
        %370 = vmatpush.msra.mxu0 0.0
        %371 = vmatpush.msra.mxu0 0.0
        %372 = vmatpush.msra.mxu0 0.0
        %373 = vmatpush.msra.mxu0 0.0
        %374 = vmatpush.msra.mxu0 0.0
        %375 = vmatpush.msra.mxu0 0.0
        %376 = vmatpush.msra.mxu0 0.0
        %377 = vmatpush.msra.mxu0 %v357
        %378 = vmatmul.f32.gmra.mxu0 %v360
        %v379 = vpop.f32.mrf.mxu0
        %v380 = vadd.f32 0.0, %v379
        %381 = vdwg.mxu0
        %382 = vrot.lane.b32.xlu0 %v178, 104
        %v383 = vpop.permute.xlu0 %382
        %384 = vrot.lane.b32.xlu0 %v178, 72
        %v385 = vpop.permute.xlu0 %384
        %v386 = vsel %vm184, %v383, 0
        %v388 = vsel %vm184, %v385, 0
        %390 = vmatpush.xpose.msra.mxu0 0.0
        %391 = vmatpush.xpose.msra.mxu0 0.0
        %392 = vmatpush.xpose.msra.mxu0 0.0
        %393 = vmatpush.xpose.msra.mxu0 0.0
        %394 = vmatpush.xpose.msra.mxu0 0.0
        %395 = vmatpush.xpose.msra.mxu0 0.0
        %396 = vmatpush.xpose.msra.mxu0 0.0
        %397 = vmatpush.xpose.msra.mxu0 0.0
        %398 = vmatpush.xpose.msra.mxu0 0.0
        %399 = vmatpush.xpose.msra.mxu0 0.0
        %400 = vmatpush.xpose.msra.mxu0 0.0
        %401 = vmatpush.xpose.msra.mxu0 0.0
        %402 = vmatpush.xpose.msra.mxu0 0.0
        %403 = vmatpush.xpose.msra.mxu0 0.0
        %404 = vmatpush.xpose.msra.mxu0 0.0
        %405 = vmatpush.xpose.msra.mxu0 %v388
        %406 = vmatmul.f32.gmra.mxu0 %v386
        %v407 = vpop.f32.mrf.mxu0
        %v408 = vadd.f32 0.0, %v407
        %409 = vdwg.mxu0
        %v410 = vmul.f32 %v408, 0.35355338
        %v411 = vsel %vm180, -1e+09, %v410
        %v412 = vsel %vm184, %v411, -inf
        %413 = vmax.xlane.f32.xlu0 %v412
        %v414 = vpop.xlane.xlu0 %413
        %v415 = vsub.f32 %v411, %v414
        %v416 = vmul.f32 %v415, 1.442695
        %v417 = vpow.pop %v416
        %v418 = vsel %vm184, %v417, 0.0
        %419 = vadd.xlane.f32.xlu0 %v418
        %v420 = vpop.xlane.xlu0 %419
        %v421 = vrcp.pop %v420
        %v422 = vmul.f32 %v417, %v421
        %423 = vrot.lane.b32.xlu0 %v178, 40
        %v424 = vpop.permute.xlu0 %423
        %v427 = vsel %vm184, %v422, 0
        %429 = vmatpush.msra.mxu0 0.0
        %430 = vmatpush.msra.mxu0 0.0
        %431 = vmatpush.msra.mxu0 0.0
        %432 = vmatpush.msra.mxu0 0.0
        %433 = vmatpush.msra.mxu0 0.0
        %434 = vmatpush.msra.mxu0 0.0
        %435 = vmatpush.msra.mxu0 0.0
        %436 = vmatpush.msra.mxu0 0.0
        %437 = vmatpush.msra.mxu0 0.0
        %438 = vmatpush.msra.mxu0 0.0
        %439 = vmatpush.msra.mxu0 0.0
        %440 = vmatpush.msra.mxu0 0.0
        %441 = vmatpush.msra.mxu0 0.0
        %442 = vmatpush.msra.mxu0 0.0
        %443 = vmatpush.msra.mxu0 0.0
        %444 = vmatpush.msra.mxu0 %v424
        %445 = vmatmul.f32.gmra.mxu0 %v427
        %v446 = vpop.f32.mrf.mxu0
        %v447 = vadd.f32 0.0, %v446
        %448 = vdwg.mxu0
        %450 = vrot.lane.b32.xlu0 %v313, 8
        %v451 = vpop.permute.xlu0 %450
        %454 = vrot.lane.b32.xlu0 %v380, 16
        %v455 = vpop.permute.xlu0 %454
        %458 = vrot.lane.b32.xlu0 %v447, 24
        %v459 = vpop.permute.xlu0 %458
        %v461 = vsel %vm184, %v246, %v451
        %vm462 = vcmask 130048
        %v463 = vsel %vm462, %v461, %v455
        %vm464 = vcmask 195584
        %v465 = vsel %vm464, %v463, %v459
        %vm466 = vcmask 261120
        %467 = vst.msk [vmem:[%s177] sm:$0xff] %vm466, %v465
        %p468 = scmp.lt.s32.totalorder %s16, 1
        %s469 = scalar_select %p468, %s16, 1
        %s470 = smul.addr %s469, 8
        %s471 = scalar_lea.vmem %s2, %s470
        // Predicated region
        $region33: #{decoder_forward.18} parent=27 // pred_check
          %p472 = pneg %p86
        $region34: #{decoder_forward.18} parent=27 // pred_check_branch
          %474 = sbr.rel (%p472) target = $region36
        $region35: #{decoder_forward.18} parent=27 // pred_region
          _
        $region36: #{decoder_forward.18} parent=27 // pred_fallthru
          _
      $region28: #{decoder_forward.18} parent=5 // pred_fallthru
        _
      %p475 = scmp.le.s32.totalorder 2, %s11
      // Predicated region
      $region37: #{decoder_forward.18} parent=5 // pred_check
        %p476 = pneg %p475
      $region38: #{decoder_forward.18} parent=5 // pred_check_branch
        %478 = sbr.rel (%p476) target = $region40
      $region39: #{decoder_forward.18} parent=5 // pred_region
        %s479 = ssub.s32 %s11, 2
        // Predicated region
        $region41: #{decoder_forward.18} parent=39 // pred_check
          %p480 = pneg %p92
        $region42: #{decoder_forward.18} parent=39 // pred_check_branch
          %482 = sbr.rel (%p480) target = $region44
        $region43: #{decoder_forward.18} parent=39 // pred_region
          %p483 = scmp.lt.s32.totalorder %s17, 1
          %s484 = scalar_select %p483, %s17, 1
          %s485 = smul.addr %s484, 8
          %s486 = scalar_lea.vmem %s2, %s485
        $region44: #{decoder_forward.18} parent=39 // pred_fallthru
          _
      $region40: #{decoder_forward.18} parent=5 // pred_fallthru
        _
    $region6: #{decoder_forward.18} parent=1 // loop_footer
      %s15 = sadd.s32 1, %s11
    $region7: #{decoder_forward.18} parent=1 // loop_footer_branch
      %10 = sbr.rel target = $region3
    $region8: #{decoder_forward.18} parent=1 // loop_exit
      _
    %487 = vsyncpa [#allocation3], 1
    %s488 = scalar_lea.sflag [#allocation3], 1
    %489 = vsyncpa %s488, 1

// kernel: decoder_forward.19
$region0: #{decoder_forward.19}
  #allocation0 [shape = 'u32[]', space=smem, size = 0x4, offset = 0x4, fixed_abs, tag = 'smem constant byte address 0x4 - core index']
  #allocation1 [shape = 'u32[72,128]{1,0:T(1,128)}', space=vmem, size = 0x9000, scoped, tag = 'internal scratch']
  %s0 = inlined_call_operand.vmem [shape: f32[16,32], index: 0, kind: input, shape index: {}]
  %s1 = inlined_call_operand.hbm [shape: f32[32,32], index: 1, kind: input, shape index: {}]
  %s2 = inlined_call_operand.vmem [shape: f32[1,32], index: 2, kind: input, shape index: {}]
  %s3 = inlined_call_operand.vmem [shape: f32[16,32], index: 3, kind: input, shape index: {}]
  %s4 = inlined_call_operand.vmem [shape: f32[16,32], index: 4, kind: output, shape index: {}]
  %s5 = sld [smem:[#allocation0]]
  $region30: #{decoder_forward.19} parent=0
    _
  %s7 = ssub.s32 1, %s5
  %s8 = scalar_select 0, %s7, %s5
  $region1: #{decoder_forward.19} parent=0
    #allocation2 [shape = 'u8[16384]{0}', space=vmem, size = 0x4000, scoped, tag = 'input window, operand 1, single buffered']
    #allocation3 [shape = 's32[1]{0}', space=sflag, size = 0x4, scoped, tag = 'scoped memory for decoder_forward.19']
    %9 = vsyncpa [#allocation3], 0
    // Predicated region
    $region2: #{decoder_forward.19} parent=1 // pred_check
      _
    $region3: #{decoder_forward.19} parent=1 // pred_check_branch
      %11 = sbr.rel (0) target = $region5
    $region4: #{decoder_forward.19} parent=1 // pred_region
      _
    $region5: #{decoder_forward.19} parent=1 // pred_fallthru
      _
    // Predicated region
    $region6: #{decoder_forward.19} parent=1 // pred_check
      _
    $region7: #{decoder_forward.19} parent=1 // pred_check_branch
      %13 = sbr.rel (0) target = $region9
    $region8: #{decoder_forward.19} parent=1 // pred_region
      %15 = vsyncadd [#allocation3], 0
      %s16 = sshll.u32 %s1, 4
      %s17 = int_to_ptr.hbm [resolvable:$true] %s16
      %s18 = sshll.u32 [#allocation2], 4
      %s19 = int_to_ptr.vmem [resolvable:$true] %s18
      %24 = dma.hbm_to_vmem [thread:$0]  %s17, 512, %s19, [#allocation3], 128, 128, 8
    $region9: #{decoder_forward.19} parent=1 // pred_fallthru
      _
    // Predicated region
    $region10: #{decoder_forward.19} parent=1 // pred_check
      _
    $region11: #{decoder_forward.19} parent=1 // pred_check_branch
      %26 = sbr.rel (0) target = $region13
    $region12: #{decoder_forward.19} parent=1 // pred_region
      _
    $region13: #{decoder_forward.19} parent=1 // pred_fallthru
      _
    // Predicated region
    $region14: #{decoder_forward.19} parent=1 // pred_check
      _
    $region15: #{decoder_forward.19} parent=1 // pred_check_branch
      %28 = sbr.rel (0) target = $region17
    $region16: #{decoder_forward.19} parent=1 // pred_region
      _
    $region17: #{decoder_forward.19} parent=1 // pred_fallthru
      _
    // Predicated region
    $region18: #{decoder_forward.19} parent=1 // pred_check
      _
    $region19: #{decoder_forward.19} parent=1 // pred_check_branch
      %30 = sbr.rel (0) target = $region21
    $region20: #{decoder_forward.19} parent=1 // pred_region
      %32 = dma.done [#allocation3], 512
    $region21: #{decoder_forward.19} parent=1 // pred_fallthru
      _
    %v33 = vld [vmem:[%s3] sm:$0xff]
    %v34 = vld [vmem:[%s3 + $0x8] sm:$0xff]
    %v35 = vld [vmem:[%s0] sm:$0xff]
    %v36 = vld [vmem:[%s0 + $0x8] sm:$0xff]
    %v37 = vld [vmem:[#allocation2] sm:$0xff]
    %v38 = vld [vmem:[#allocation2 + $0x8] sm:$0xff]
    %v39 = vld [vmem:[#allocation2 + $0x10] sm:$0xff]
    %v40 = vld [vmem:[#allocation2 + $0x18] sm:$0xff]
    %vm41 = vcmask 261120
    %v43 = vsel %vm41, %v35, 0
    %v46 = vsel %vm41, %v36, 0
    %48 = vmatpush.msra.mxu0 0.0
    %49 = vmatpush.msra.mxu0 0.0
    %50 = vmatpush.msra.mxu0 0.0
    %51 = vmatpush.msra.mxu0 0.0
    %52 = vmatpush.msra.mxu0 0.0
    %53 = vmatpush.msra.mxu0 0.0
    %54 = vmatpush.msra.mxu0 0.0
    %55 = vmatpush.msra.mxu0 0.0
    %56 = vmatpush.msra.mxu0 0.0
    %57 = vmatpush.msra.mxu0 0.0
    %58 = vmatpush.msra.mxu0 0.0
    %59 = vmatpush.msra.mxu0 0.0
    %60 = vmatpush.msra.mxu0 %v40
    %61 = vmatpush.msra.mxu0 %v39
    %62 = vmatpush.msra.mxu0 %v38
    %63 = vmatpush.msra.mxu0 %v37
    %64 = vmatmul.f32.gmra.mxu0 %v43
    %v65 = vpop.f32.mrf.mxu0
    %v66 = vadd.f32 0.0, %v65
    %67 = vmatmul.f32.gmra.mxu0 %v46
    %v68 = vpop.f32.mrf.mxu0
    %v69 = vadd.f32 0.0, %v68
    %70 = vdwg.mxu0
    %v71 = vadd.f32 %v33, %v66
    %v72 = vadd.f32 %v34, %v69
    %v73 = vld [vmem:[%s2] sm:$0x1]
    %v75 = vperm.slane %v73, 0
    %v77 = vadd.f32 %v71, %v75
    %v78 = vadd.f32 %v72, %v75
    %79 = vst.msk [vmem:[%s4] sm:$0xff] %vm41, %v77
    %80 = vst.msk [vmem:[%s4 + $0x8] sm:$0xff] %vm41, %v78
    // Predicated region
    $region22: #{decoder_forward.19} parent=1 // pred_check
      _
    $region23: #{decoder_forward.19} parent=1 // pred_check_branch
      %82 = sbr.rel (0) target = $region25
    $region24: #{decoder_forward.19} parent=1 // pred_region
      _
    $region25: #{decoder_forward.19} parent=1 // pred_fallthru
      _
    // Predicated region
    $region26: #{decoder_forward.19} parent=1 // pred_check
      _
    $region27: #{decoder_forward.19} parent=1 // pred_check_branch
      %84 = sbr.rel (0) target = $region29
    $region28: #{decoder_forward.19} parent=1 // pred_region
      _
    $region29: #{decoder_forward.19} parent=1 // pred_fallthru
      _
    %85 = vsyncpa [#allocation3], 1

// kernel: decoder_forward.21
$region0: #{decoder_forward.21}
  #allocation0 [shape = 'u32[]', space=smem, size = 0x4, offset = 0x4, fixed_abs, tag = 'smem constant byte address 0x4 - core index']
  #allocation1 [shape = 'u32[72,128]{1,0:T(1,128)}', space=vmem, size = 0x9000, scoped, tag = 'internal scratch']
  %s0 = inlined_call_operand.hbm [shape: f32[16,32], index: 0, kind: input, shape index: {}]
  %s1 = inlined_call_operand.hbm [shape: f32[32,64], index: 1, kind: input, shape index: {}]
  %s2 = inlined_call_operand.hbm [shape: f32[1,64], index: 2, kind: input, shape index: {}]
  %s3 = inlined_call_operand.vmem [shape: f32[16,64], index: 3, kind: output, shape index: {}]
  %s4 = sld [smem:[#allocation0]]
  $region34: #{decoder_forward.21} parent=0
    _
  %s6 = ssub.s32 1, %s4
  %s7 = scalar_select 0, %s6, %s4
  $region1: #{decoder_forward.21} parent=0
    #allocation2 [shape = 'u8[8192]{0}', space=vmem, size = 0x2000, scoped, tag = 'input window, operand 0, single buffered']
    #allocation3 [shape = 's32[1]{0}', space=sflag, size = 0x4, scoped, tag = 'scoped memory for decoder_forward.21']
    #allocation4 [shape = 'u8[16384]{0}', space=vmem, size = 0x4000, scoped, tag = 'input window, operand 1, single buffered']
    #allocation5 [shape = 's32[1]{0}', space=sflag, size = 0x4, scoped, tag = 'scoped memory for decoder_forward.21']
    #allocation6 [shape = 'u8[512]{0}', space=vmem, size = 0x400, scoped, tag = 'input window, operand 2, single buffered']
    %8 = vsyncpa [#allocation3], 0
    %9 = vsyncpa [#allocation5], 0
    // Predicated region
    $region2: #{decoder_forward.21} parent=1 // pred_check
      _
    $region3: #{decoder_forward.21} parent=1 // pred_check_branch
      %11 = sbr.rel (0) target = $region5
    $region4: #{decoder_forward.21} parent=1 // pred_region
      %13 = vsyncadd [#allocation3], 0
      %s14 = sshll.u32 %s0, 4
      %s15 = int_to_ptr.hbm [resolvable:$true] %s14
      %s16 = sshll.u32 [#allocation2], 4
      %s17 = int_to_ptr.vmem [resolvable:$true] %s16
      %22 = dma.hbm_to_vmem [thread:$0]  %s15, 256, %s17, [#allocation3], 128, 128, 8
    $region5: #{decoder_forward.21} parent=1 // pred_fallthru
      _
    // Predicated region
    $region6: #{decoder_forward.21} parent=1 // pred_check
      _
    $region7: #{decoder_forward.21} parent=1 // pred_check_branch
      %24 = sbr.rel (0) target = $region9
    $region8: #{decoder_forward.21} parent=1 // pred_region
      %26 = vsyncadd [#allocation5], 0
      %s27 = sshll.u32 %s1, 4
      %s28 = int_to_ptr.hbm [resolvable:$true] %s27
      %s29 = sshll.u32 [#allocation4], 4
      %s30 = int_to_ptr.vmem [resolvable:$true] %s29
      %35 = dma.hbm_to_vmem [thread:$0]  %s28, 512, %s30, [#allocation5], 128, 128, 8
    $region9: #{decoder_forward.21} parent=1 // pred_fallthru
      _
    // Predicated region
    $region10: #{decoder_forward.21} parent=1 // pred_check
      _
    $region11: #{decoder_forward.21} parent=1 // pred_check_branch
      %37 = sbr.rel (0) target = $region13
    $region12: #{decoder_forward.21} parent=1 // pred_region
      %39 = vsyncadd [#allocation5], 0
      %s41 = sshll.u32 %s2, 4
      %s42 = int_to_ptr.hbm [resolvable:$true] %s41
      %s43 = sshll.u32 [#allocation6], 4
      %s44 = int_to_ptr.vmem [resolvable:$true] %s43
      %46 = dma.hbm_to_vmem [thread:$0]  %s42, 16, %s44, [#allocation5]
    $region13: #{decoder_forward.21} parent=1 // pred_fallthru
      _
    // Predicated region
    $region14: #{decoder_forward.21} parent=1 // pred_check
      _
    $region15: #{decoder_forward.21} parent=1 // pred_check_branch
      %48 = sbr.rel (0) target = $region17
    $region16: #{decoder_forward.21} parent=1 // pred_region
      %50 = dma.done [#allocation3], 256
    $region17: #{decoder_forward.21} parent=1 // pred_fallthru
      _
    // Predicated region
    $region18: #{decoder_forward.21} parent=1 // pred_check
      _
    $region19: #{decoder_forward.21} parent=1 // pred_check_branch
      %52 = sbr.rel (0) target = $region21
    $region20: #{decoder_forward.21} parent=1 // pred_region
      %54 = dma.done [#allocation5], 512
    $region21: #{decoder_forward.21} parent=1 // pred_fallthru
      _
    // Predicated region
    $region22: #{decoder_forward.21} parent=1 // pred_check
      _
    $region23: #{decoder_forward.21} parent=1 // pred_check_branch
      %56 = sbr.rel (0) target = $region25
    $region24: #{decoder_forward.21} parent=1 // pred_region
      %58 = dma.done [#allocation5], 16
    $region25: #{decoder_forward.21} parent=1 // pred_fallthru
      _
    %v59 = vld [vmem:[#allocation2] sm:$0xff]
    %v60 = vld [vmem:[#allocation2 + $0x8] sm:$0xff]
    %v61 = vld [vmem:[#allocation4] sm:$0xff]
    %v62 = vld [vmem:[#allocation4 + $0x8] sm:$0xff]
    %v63 = vld [vmem:[#allocation4 + $0x10] sm:$0xff]
    %v64 = vld [vmem:[#allocation4 + $0x18] sm:$0xff]
    %v65 = vld [vmem:[#allocation6] sm:$0x1]
    %v67 = vperm.slane %v65, 0
    %vm69 = vcmask 261120
    %v71 = vsel %vm69, %v59, 0
    %v74 = vsel %vm69, %v60, 0
    %76 = vmatpush.msra.mxu0 0.0
    %77 = vmatpush.msra.mxu0 0.0
    %78 = vmatpush.msra.mxu0 0.0
    %79 = vmatpush.msra.mxu0 0.0
    %80 = vmatpush.msra.mxu0 0.0
    %81 = vmatpush.msra.mxu0 0.0
    %82 = vmatpush.msra.mxu0 0.0
    %83 = vmatpush.msra.mxu0 0.0
    %84 = vmatpush.msra.mxu0 0.0
    %85 = vmatpush.msra.mxu0 0.0
    %86 = vmatpush.msra.mxu0 0.0
    %87 = vmatpush.msra.mxu0 0.0
    %88 = vmatpush.msra.mxu0 %v64
    %89 = vmatpush.msra.mxu0 %v63
    %90 = vmatpush.msra.mxu0 %v62
    %91 = vmatpush.msra.mxu0 %v61
    %92 = vmatmul.f32.gmra.mxu0 %v71
    %v93 = vpop.f32.mrf.mxu0
    %v94 = vadd.f32 %v67, %v93
    %95 = vmatmul.f32.gmra.mxu0 %v74
    %v96 = vpop.f32.mrf.mxu0
    %v97 = vadd.f32 %v67, %v96
    %98 = vdwg.mxu0
    %vm99 = vcmask 523264
    %100 = vst.msk [vmem:[%s3] sm:$0xff] %vm99, %v94
    %101 = vst.msk [vmem:[%s3 + $0x8] sm:$0xff] %vm99, %v97
    // Predicated region
    $region26: #{decoder_forward.21} parent=1 // pred_check
      _
    $region27: #{decoder_forward.21} parent=1 // pred_check_branch
      %103 = sbr.rel (0) target = $region29
    $region28: #{decoder_forward.21} parent=1 // pred_region
      _
    $region29: #{decoder_forward.21} parent=1 // pred_fallthru
      _
    // Predicated region
    $region30: #{decoder_forward.21} parent=1 // pred_check
      _
    $region31: #{decoder_forward.21} parent=1 // pred_check_branch
      %105 = sbr.rel (0) target = $region33
    $region32: #{decoder_forward.21} parent=1 // pred_region
      _
    $region33: #{decoder_forward.21} parent=1 // pred_fallthru
      _
    %106 = vsyncpa [#allocation3], 1
    %107 = vsyncpa [#allocation5], 1

// kernel: decoder_forward.23
$region0: #{decoder_forward.23}
  #allocation0 [shape = 'u32[]', space=smem, size = 0x4, offset = 0x4, fixed_abs, tag = 'smem constant byte address 0x4 - core index']
  #allocation1 [shape = 'u32[72,128]{1,0:T(1,128)}', space=vmem, size = 0x9000, scoped, tag = 'internal scratch']
  %s0 = inlined_call_operand.vmem [shape: f32[16,32], index: 0, kind: input, shape index: {}]
  %s1 = inlined_call_operand.hbm [shape: f32[32,32], index: 1, kind: input, shape index: {}]
  %s2 = inlined_call_operand.hbm [shape: f32[1,32], index: 2, kind: input, shape index: {}]
  %s3 = inlined_call_operand.vmem [shape: f32[16,32], index: 3, kind: input, shape index: {}]
  %s4 = inlined_call_operand.vmem [shape: f32[16,32], index: 4, kind: output, shape index: {}]
  %s5 = sld [smem:[#allocation0]]
  $region34: #{decoder_forward.23} parent=0
    _
  %s7 = ssub.s32 1, %s5
  %s8 = scalar_select 0, %s7, %s5
  $region1: #{decoder_forward.23} parent=0
    #allocation2 [shape = 'u8[16384]{0}', space=vmem, size = 0x4000, scoped, tag = 'input window, operand 1, single buffered']
    #allocation3 [shape = 's32[1]{0}', space=sflag, size = 0x4, scoped, tag = 'scoped memory for decoder_forward.23']
    #allocation4 [shape = 'u8[512]{0}', space=vmem, size = 0x400, scoped, tag = 'input window, operand 2, single buffered']
    #allocation5 [shape = 's32[1]{0}', space=sflag, size = 0x4, scoped, tag = 'scoped memory for decoder_forward.23']
    %9 = vsyncpa [#allocation3], 0
    %10 = vsyncpa [#allocation5], 0
    // Predicated region
    $region2: #{decoder_forward.23} parent=1 // pred_check
      _
    $region3: #{decoder_forward.23} parent=1 // pred_check_branch
      %12 = sbr.rel (0) target = $region5
    $region4: #{decoder_forward.23} parent=1 // pred_region
      _
    $region5: #{decoder_forward.23} parent=1 // pred_fallthru
      _
    // Predicated region
    $region6: #{decoder_forward.23} parent=1 // pred_check
      _
    $region7: #{decoder_forward.23} parent=1 // pred_check_branch
      %14 = sbr.rel (0) target = $region9
    $region8: #{decoder_forward.23} parent=1 // pred_region
      %16 = vsyncadd [#allocation3], 0
      %s17 = sshll.u32 %s1, 4
      %s18 = int_to_ptr.hbm [resolvable:$true] %s17
      %s19 = sshll.u32 [#allocation2], 4
      %s20 = int_to_ptr.vmem [resolvable:$true] %s19
      %25 = dma.hbm_to_vmem [thread:$0]  %s18, 512, %s20, [#allocation3], 128, 128, 8
    $region9: #{decoder_forward.23} parent=1 // pred_fallthru
      _
    // Predicated region
    $region10: #{decoder_forward.23} parent=1 // pred_check
      _
    $region11: #{decoder_forward.23} parent=1 // pred_check_branch
      %27 = sbr.rel (0) target = $region13
    $region12: #{decoder_forward.23} parent=1 // pred_region
      %29 = vsyncadd [#allocation5], 0
      %s31 = sshll.u32 %s2, 4
      %s32 = int_to_ptr.hbm [resolvable:$true] %s31
      %s33 = sshll.u32 [#allocation4], 4
      %s34 = int_to_ptr.vmem [resolvable:$true] %s33
      %36 = dma.hbm_to_vmem [thread:$0]  %s32, 16, %s34, [#allocation5]
    $region13: #{decoder_forward.23} parent=1 // pred_fallthru
      _
    // Predicated region
    $region14: #{decoder_forward.23} parent=1 // pred_check
      _
    $region15: #{decoder_forward.23} parent=1 // pred_check_branch
      %38 = sbr.rel (0) target = $region17
    $region16: #{decoder_forward.23} parent=1 // pred_region
      _
    $region17: #{decoder_forward.23} parent=1 // pred_fallthru
      _
    // Predicated region
    $region18: #{decoder_forward.23} parent=1 // pred_check
      _
    $region19: #{decoder_forward.23} parent=1 // pred_check_branch
      %40 = sbr.rel (0) target = $region21
    $region20: #{decoder_forward.23} parent=1 // pred_region
      %42 = dma.done [#allocation3], 512
    $region21: #{decoder_forward.23} parent=1 // pred_fallthru
      _
    // Predicated region
    $region22: #{decoder_forward.23} parent=1 // pred_check
      _
    $region23: #{decoder_forward.23} parent=1 // pred_check_branch
      %44 = sbr.rel (0) target = $region25
    $region24: #{decoder_forward.23} parent=1 // pred_region
      %46 = dma.done [#allocation5], 16
    $region25: #{decoder_forward.23} parent=1 // pred_fallthru
      _
    %v47 = vld [vmem:[%s3] sm:$0xff]
    %v48 = vld [vmem:[%s3 + $0x8] sm:$0xff]
    %v49 = vld [vmem:[%s0] sm:$0xff]
    %v50 = vld [vmem:[%s0 + $0x8] sm:$0xff]
    %v51 = vld [vmem:[#allocation2] sm:$0xff]
    %v52 = vld [vmem:[#allocation2 + $0x8] sm:$0xff]
    %v53 = vld [vmem:[#allocation2 + $0x10] sm:$0xff]
    %v54 = vld [vmem:[#allocation2 + $0x18] sm:$0xff]
    %vm55 = vcmask 261120
    %v57 = vsel %vm55, %v49, 0
    %v60 = vsel %vm55, %v50, 0
    %62 = vmatpush.msra.mxu0 0.0
    %63 = vmatpush.msra.mxu0 0.0
    %64 = vmatpush.msra.mxu0 0.0
    %65 = vmatpush.msra.mxu0 0.0
    %66 = vmatpush.msra.mxu0 0.0
    %67 = vmatpush.msra.mxu0 0.0
    %68 = vmatpush.msra.mxu0 0.0
    %69 = vmatpush.msra.mxu0 0.0
    %70 = vmatpush.msra.mxu0 0.0
    %71 = vmatpush.msra.mxu0 0.0
    %72 = vmatpush.msra.mxu0 0.0
    %73 = vmatpush.msra.mxu0 0.0
    %74 = vmatpush.msra.mxu0 %v54
    %75 = vmatpush.msra.mxu0 %v53
    %76 = vmatpush.msra.mxu0 %v52
    %77 = vmatpush.msra.mxu0 %v51
    %78 = vmatmul.f32.gmra.mxu0 %v57
    %v79 = vpop.f32.mrf.mxu0
    %v80 = vadd.f32 0.0, %v79
    %81 = vmatmul.f32.gmra.mxu0 %v60
    %v82 = vpop.f32.mrf.mxu0
    %v83 = vadd.f32 0.0, %v82
    %84 = vdwg.mxu0
    %v85 = vadd.f32 %v47, %v80
    %v86 = vadd.f32 %v48, %v83
    %v87 = vld [vmem:[#allocation4] sm:$0x1]
    %v89 = vperm.slane %v87, 0
    %v91 = vadd.f32 %v85, %v89
    %v92 = vadd.f32 %v86, %v89
    %93 = vst.msk [vmem:[%s4] sm:$0xff] %vm55, %v91
    %94 = vst.msk [vmem:[%s4 + $0x8] sm:$0xff] %vm55, %v92
    // Predicated region
    $region26: #{decoder_forward.23} parent=1 // pred_check
      _
    $region27: #{decoder_forward.23} parent=1 // pred_check_branch
      %96 = sbr.rel (0) target = $region29
    $region28: #{decoder_forward.23} parent=1 // pred_region
      _
    $region29: #{decoder_forward.23} parent=1 // pred_fallthru
      _
    // Predicated region
    $region30: #{decoder_forward.23} parent=1 // pred_check
      _
    $region31: #{decoder_forward.23} parent=1 // pred_check_branch
      %98 = sbr.rel (0) target = $region33
    $region32: #{decoder_forward.23} parent=1 // pred_region
      _
    $region33: #{decoder_forward.23} parent=1 // pred_fallthru
      _
    %99 = vsyncpa [#allocation3], 1
    %100 = vsyncpa [#allocation5], 1

// kernel: decoder_forward.24
$region0: #{decoder_forward.24}
  #allocation0 [shape = 'u32[]', space=smem, size = 0x4, offset = 0x4, fixed_abs, tag = 'smem constant byte address 0x4 - core index']
  #allocation1 [shape = 'u32[72,128]{1,0:T(1,128)}', space=vmem, size = 0x9000, scoped, tag = 'internal scratch']
  %s0 = inlined_call_operand.vmem [shape: f32[16,32], index: 0, kind: input, shape index: {}]
  %s1 = inlined_call_operand.vmem [shape: f32[1,32], index: 1, kind: input, shape index: {}]
  %s2 = inlined_call_operand.vmem [shape: f32[1,32], index: 2, kind: input, shape index: {}]
  %s3 = inlined_call_operand.vmem [shape: f32[32,64], index: 3, kind: input, shape index: {}]
  %s4 = inlined_call_operand.vmem [shape: f32[1,64], index: 4, kind: input, shape index: {}]
  %s5 = inlined_call_operand.vmem [shape: f32[64,32], index: 5, kind: input, shape index: {}]
  %s6 = inlined_call_operand.hbm [shape: f32[1,32], index: 6, kind: input, shape index: {}]
  %s7 = inlined_call_operand.vmem [shape: f32[16,32], index: 7, kind: output, shape index: {}]
  %s8 = sld [smem:[#allocation0]]
  $region42: #{decoder_forward.24} parent=0
    _
  %s10 = ssub.s32 1, %s8
  %s11 = scalar_select 0, %s10, %s8
  $region1: #{decoder_forward.24} parent=0
    #allocation2 [shape = 'u8[512]{0}', space=vmem, size = 0x400, scoped, tag = 'input window, operand 6, single buffered']
    #allocation3 [shape = 's32[1]{0}', space=sflag, size = 0x4, scoped, tag = 'scoped memory for decoder_forward.24']
    %12 = vsyncpa [#allocation3], 0
    // Predicated region
    $region2: #{decoder_forward.24} parent=1 // pred_check
      _
    $region3: #{decoder_forward.24} parent=1 // pred_check_branch
      %14 = sbr.rel (0) target = $region5
    $region4: #{decoder_forward.24} parent=1 // pred_region
      _
    $region5: #{decoder_forward.24} parent=1 // pred_fallthru
      _
    // Predicated region
    $region6: #{decoder_forward.24} parent=1 // pred_check
      _
    $region7: #{decoder_forward.24} parent=1 // pred_check_branch
      %16 = sbr.rel (0) target = $region9
    $region8: #{decoder_forward.24} parent=1 // pred_region
      _
    $region9: #{decoder_forward.24} parent=1 // pred_fallthru
      _
    // Predicated region
    $region10: #{decoder_forward.24} parent=1 // pred_check
      _
    $region11: #{decoder_forward.24} parent=1 // pred_check_branch
      %18 = sbr.rel (0) target = $region13
    $region12: #{decoder_forward.24} parent=1 // pred_region
      _
    $region13: #{decoder_forward.24} parent=1 // pred_fallthru
      _
    // Predicated region
    $region14: #{decoder_forward.24} parent=1 // pred_check
      _
    $region15: #{decoder_forward.24} parent=1 // pred_check_branch
      %20 = sbr.rel (0) target = $region17
    $region16: #{decoder_forward.24} parent=1 // pred_region
      _
    $region17: #{decoder_forward.24} parent=1 // pred_fallthru
      _
    // Predicated region
    $region18: #{decoder_forward.24} parent=1 // pred_check
      _
    $region19: #{decoder_forward.24} parent=1 // pred_check_branch
      %22 = sbr.rel (0) target = $region21
    $region20: #{decoder_forward.24} parent=1 // pred_region
      _
    $region21: #{decoder_forward.24} parent=1 // pred_fallthru
      _
    // Predicated region
    $region22: #{decoder_forward.24} parent=1 // pred_check
      _
    $region23: #{decoder_forward.24} parent=1 // pred_check_branch
      %24 = sbr.rel (0) target = $region25
    $region24: #{decoder_forward.24} parent=1 // pred_region
      _
    $region25: #{decoder_forward.24} parent=1 // pred_fallthru
      _
    // Predicated region
    $region26: #{decoder_forward.24} parent=1 // pred_check
      _
    $region27: #{decoder_forward.24} parent=1 // pred_check_branch
      %26 = sbr.rel (0) target = $region29
    $region28: #{decoder_forward.24} parent=1 // pred_region
      %28 = vsyncadd [#allocation3], 0
      %s30 = sshll.u32 %s6, 4
      %s31 = int_to_ptr.hbm [resolvable:$true] %s30
      %s32 = sshll.u32 [#allocation2], 4
      %s33 = int_to_ptr.vmem [resolvable:$true] %s32
      %35 = dma.hbm_to_vmem [thread:$0]  %s31, 16, %s33, [#allocation3]
    $region29: #{decoder_forward.24} parent=1 // pred_fallthru
      _
    // Predicated region
    $region30: #{decoder_forward.24} parent=1 // pred_check
      _
    $region31: #{decoder_forward.24} parent=1 // pred_check_branch
      %37 = sbr.rel (0) target = $region33
    $region32: #{decoder_forward.24} parent=1 // pred_region
      %39 = dma.done [#allocation3], 16
    $region33: #{decoder_forward.24} parent=1 // pred_fallthru
      _
    %v40 = vld [vmem:[%s0] sm:$0xff]
    %v41 = vld [vmem:[%s0 + $0x8] sm:$0xff]
    %v42 = vld [vmem:[%s1] sm:$0x1]
    %v43 = vld [vmem:[%s2] sm:$0x1]
    %vm44 = vcmask 261120
    %v45 = vsel %vm44, %v40, 0.0
    %46 = vadd.xlane.f32.xlu0 %v45
    %v47 = vpop.xlane.xlu0 %46
    %v48 = vsel %vm44, %v41, 0.0
    %49 = vadd.xlane.f32.xlu0 %v48
    %v50 = vpop.xlane.xlu0 %49
    %v51 = vrcp.pop 32.0
    %v52 = vmul.f32 32.0, %v51
    %v53 = vsub.f32 1.0, %v52
    %v54 = vmul.f32 %v51, %v53
    %v55 = vadd.f32 %v51, %v54
    %vm56 = vweird.f32 %v51
    %v57 = vsel %vm56, %v51, %v55
    %v58 = vmul.f32 %v47, %v57
    %v59 = vmul.f32 %v50, %v57
    %v60 = vsub.f32 %v40, %v58
    %v61 = vsub.f32 %v41, %v59
    %v62 = vmul.f32 %v60, %v60
    %v63 = vmul.f32 %v61, %v61
    %v64 = vsel %vm44, %v62, 0.0
    %65 = vadd.xlane.f32.xlu0 %v64
    %v66 = vpop.xlane.xlu0 %65
    %v67 = vsel %vm44, %v63, 0.0
    %68 = vadd.xlane.f32.xlu0 %v67
    %v69 = vpop.xlane.xlu0 %68
    %v70 = vrcp.pop 31.0
    %v71 = vmul.f32 31.0, %v70
    %v72 = vsub.f32 1.0, %v71
    %v73 = vmul.f32 %v70, %v72
    %v74 = vadd.f32 %v70, %v73
    %vm75 = vweird.f32 %v70
    %v76 = vsel %vm75, %v70, %v74
    %v77 = vmul.f32 %v66, %v76
    %v78 = vmul.f32 %v69, %v76
    %v79 = vrsqrt.pop %v77
    %v80 = vmul.f32 %v79, %v77
    %v81 = vmul.f32 %v80, %v79
    %v82 = vmul.f32 0.5, %v81
    %v83 = vsub.f32 1.5, %v82
    %v84 = vmul.f32 %v79, %v83
    %v85 = vmul.f32 %v77, %v84
    %vm86 = vcmp.eq.f32.partialorder %v77, inf
    %v87 = vsel %vm86, %v77, %v85
    %vm88 = vcmp.eq.f32.partialorder %v77, 0.0
    %v89 = vand.u32 %v77, 2147483648
    %v90 = vsel %vm88, %v89, %v87
    %v91 = vrsqrt.pop %v78
    %v92 = vmul.f32 %v91, %v78
    %v93 = vmul.f32 %v92, %v91
    %v94 = vmul.f32 0.5, %v93
    %v95 = vsub.f32 1.5, %v94
    %v96 = vmul.f32 %v91, %v95
    %v97 = vmul.f32 %v78, %v96
    %vm98 = vcmp.eq.f32.partialorder %v78, inf
    %v99 = vsel %vm98, %v78, %v97
    %vm100 = vcmp.eq.f32.partialorder %v78, 0.0
    %v101 = vand.u32 %v78, 2147483648
    %v102 = vsel %vm100, %v101, %v99
    %v104 = vperm.slane %v42, 0
    %v106 = vmul.f32 %v104, %v60
    %v107 = vmul.f32 %v104, %v61
    %v108 = vadd.f32 %v90, 1e-06
    %v109 = vadd.f32 %v102, 1e-06
    %v110 = vrcp.pop %v108
    %v111 = vmul.f32 %v108, %v110
    %v112 = vsub.f32 1.0, %v111
    %v113 = vmul.f32 %v110, %v112
    %v114 = vadd.f32 %v110, %v113
    %vm115 = vweird.f32 %v108
    %vm116 = vweird.f32 %v110
    %vm117 = vmor %vm115, %vm116
    %v118 = vsel %vm117, %v110, %v114
    %v119 = vand.u32 2147483647, %v108
    %vm120 = vcmp.eq.f32.partialorder %v119, 8.507059e+37
    %v121 = vand.u32 %v108, 2147483648
    %v122 = vor.u32 1.1754944e-38, %v121
    %v123 = vsel %vm120, %v122, %v118
    %v124 = vmul.f32 %v106, %v123
    %v125 = vrcp.pop %v109
    %v126 = vmul.f32 %v109, %v125
    %v127 = vsub.f32 1.0, %v126
    %v128 = vmul.f32 %v125, %v127
    %v129 = vadd.f32 %v125, %v128
    %vm130 = vweird.f32 %v109
    %vm131 = vweird.f32 %v125
    %vm132 = vmor %vm130, %vm131
    %v133 = vsel %vm132, %v125, %v129
    %v134 = vand.u32 2147483647, %v109
    %vm135 = vcmp.eq.f32.partialorder %v134, 8.507059e+37
    %v136 = vand.u32 %v109, 2147483648
    %v137 = vor.u32 1.1754944e-38, %v136
    %v138 = vsel %vm135, %v137, %v133
    %v139 = vmul.f32 %v107, %v138
    %v141 = vperm.slane %v43, 0
    %v143 = vadd.f32 %v124, %v141
    %v144 = vadd.f32 %v139, %v141
    %v145 = vld [vmem:[%s3] sm:$0xff]
    %v146 = vld [vmem:[%s3 + $0x8] sm:$0xff]
    %v147 = vld [vmem:[%s3 + $0x10] sm:$0xff]
    %v148 = vld [vmem:[%s3 + $0x18] sm:$0xff]
    %v149 = vld [vmem:[%s4] sm:$0x1]
    %v151 = vperm.slane %v149, 0
    %v154 = vsel %vm44, %v143, 0
    %v157 = vsel %vm44, %v144, 0
    %159 = vmatpush.msra.mxu0 0.0
    %160 = vmatpush.msra.mxu0 0.0
    %161 = vmatpush.msra.mxu0 0.0
    %162 = vmatpush.msra.mxu0 0.0
    %163 = vmatpush.msra.mxu0 0.0
    %164 = vmatpush.msra.mxu0 0.0
    %165 = vmatpush.msra.mxu0 0.0
    %166 = vmatpush.msra.mxu0 0.0
    %167 = vmatpush.msra.mxu0 0.0
    %168 = vmatpush.msra.mxu0 0.0
    %169 = vmatpush.msra.mxu0 0.0
    %170 = vmatpush.msra.mxu0 0.0
    %171 = vmatpush.msra.mxu0 %v148
    %172 = vmatpush.msra.mxu0 %v147
    %173 = vmatpush.msra.mxu0 %v146
    %174 = vmatpush.msra.mxu0 %v145
    %175 = vmatmul.f32.gmra.mxu0 %v154
    %v176 = vpop.f32.mrf.mxu0
    %v177 = vadd.f32 %v151, %v176
    %178 = vmatmul.f32.gmra.mxu0 %v157
    %v179 = vpop.f32.mrf.mxu0
    %v180 = vadd.f32 %v151, %v179
    %181 = vdwg.mxu0
    %v182 = vmax.f32 %v177, 0.0
    %v183 = vmax.f32 %v180, 0.0
    %v184 = vld [vmem:[%s5] sm:$0xff]
    %v185 = vld [vmem:[%s5 + $0x8] sm:$0xff]
    %v186 = vld [vmem:[%s5 + $0x10] sm:$0xff]
    %v187 = vld [vmem:[%s5 + $0x18] sm:$0xff]
    %v188 = vld [vmem:[%s5 + $0x20] sm:$0xff]
    %v189 = vld [vmem:[%s5 + $0x28] sm:$0xff]
    %v190 = vld [vmem:[%s5 + $0x30] sm:$0xff]
    %v191 = vld [vmem:[%s5 + $0x38] sm:$0xff]
    %vm192 = vcmask 523264
    %v194 = vsel %vm192, %v182, 0
    %v197 = vsel %vm192, %v183, 0
    %199 = vmatpush.msra.mxu0 0.0
    %200 = vmatpush.msra.mxu0 0.0
    %201 = vmatpush.msra.mxu0 0.0
    %202 = vmatpush.msra.mxu0 0.0
    %203 = vmatpush.msra.mxu0 0.0
    %204 = vmatpush.msra.mxu0 0.0
    %205 = vmatpush.msra.mxu0 0.0
    %206 = vmatpush.msra.mxu0 0.0
    %207 = vmatpush.msra.mxu0 %v191
    %208 = vmatpush.msra.mxu0 %v190
    %209 = vmatpush.msra.mxu0 %v189
    %210 = vmatpush.msra.mxu0 %v188
    %211 = vmatpush.msra.mxu0 %v187
    %212 = vmatpush.msra.mxu0 %v186
    %213 = vmatpush.msra.mxu0 %v185
    %214 = vmatpush.msra.mxu0 %v184
    %215 = vmatmul.f32.gmra.mxu0 %v194
    %v216 = vpop.f32.mrf.mxu0
    %v217 = vadd.f32 0.0, %v216
    %218 = vmatmul.f32.gmra.mxu0 %v197
    %v219 = vpop.f32.mrf.mxu0
    %v220 = vadd.f32 0.0, %v219
    %221 = vdwg.mxu0
    %v222 = vadd.f32 %v40, %v217
    %v223 = vadd.f32 %v41, %v220
    %v224 = vld [vmem:[#allocation2] sm:$0x1]
    %v226 = vperm.slane %v224, 0
    %v228 = vadd.f32 %v222, %v226
    %v229 = vadd.f32 %v223, %v226
    %230 = vst.msk [vmem:[%s7] sm:$0xff] %vm44, %v228
    %231 = vst.msk [vmem:[%s7 + $0x8] sm:$0xff] %vm44, %v229
    // Predicated region
    $region34: #{decoder_forward.24} parent=1 // pred_check
      _
    $region35: #{decoder_forward.24} parent=1 // pred_check_branch
      %233 = sbr.rel (0) target = $region37
    $region36: #{decoder_forward.24} parent=1 // pred_region
      _
    $region37: #{decoder_forward.24} parent=1 // pred_fallthru
      _
    // Predicated region
    $region38: #{decoder_forward.24} parent=1 // pred_check
      _
    $region39: #{decoder_forward.24} parent=1 // pred_check_branch
      %235 = sbr.rel (0) target = $region41
    $region40: #{decoder_forward.24} parent=1 // pred_region
      _
    $region41: #{decoder_forward.24} parent=1 // pred_fallthru
      _
    %236 = vsyncpa [#allocation3], 1

// kernel: decoder_forward.22
$region0: #{decoder_forward.22}
  #allocation0 [shape = 'u32[]', space=smem, size = 0x4, offset = 0x4, fixed_abs, tag = 'smem constant byte address 0x4 - core index']
  #allocation1 [shape = 'u32[72,128]{1,0:T(1,128)}', space=vmem, size = 0x9000, scoped, tag = 'internal scratch']
  %s0 = inlined_call_operand.vmem [shape: f32[2,8,32], index: 0, kind: input, shape index: {}]
  %s1 = inlined_call_operand.vmem [shape: f32[2,8,64], index: 1, kind: input, shape index: {}]
  %s2 = inlined_call_operand.vmem [shape: f32[2,1,8], index: 2, kind: input, shape index: {}]
  %s3 = inlined_call_operand.vmem [shape: f32[2,8,32], index: 3, kind: output, shape index: {}]
  %s4 = sld [smem:[#allocation0]]
  $region45: #{decoder_forward.22} parent=0
    _
  %s6 = ssub.s32 1, %s4
  %s7 = scalar_select 0, %s6, %s4
  loop: start=0, step=1, limit=4
  $region2: #{decoder_forward.22} parent=0 // loop_pre_header
    _
  $region3: #{decoder_forward.22} parent=0 // loop_header
    %s9 = sphi 0, %s13
    %p10 = scmp.ge.s32.totalorder %s9, 4
    %s19 = sphi 0, %s21
    %s22 = sphi 0, %s19
    %s23 = sphi 0, %s22
    %s39 = sphi 0, %s23
    %s45 = sphi 0, %s47
    %s48 = sphi 0, %s45
    %s49 = sphi 0, %s48
    %s65 = sphi 0, %s49
    %s71 = sphi 0, %s73
    %s74 = sphi 0, %s71
    %s75 = sphi 0, %s74
    %s91 = sphi 0, %s75
    %s97 = sphi 0, %s99
    %s100 = sphi 0, %s97
    %s101 = sphi 0, %s100
    %s117 = sphi 0, %s101
  $region4: #{decoder_forward.22} parent=0 // loop_header_branch
    %12 = sbr.rel (%p10) target = $region8
  $region5: #{decoder_forward.22} parent=0 // loop_body
    %s14 = ssub.s32 %s9, 1
    %s15 = ssub.s32 %s9, 2
    %s16 = sadd.s32 %s9, 1
    %s17 = ssub.s32 %s9, %s16
    %p18 = scmp.eq.s32.totalorder %s17, 0
    %s20 = sadd.s32 %s19, 1
    %s21 = scalar_select %p18, %s19, %s20
    %p24 = pneg %p18
    %p25 = scmp.eq.s32.totalorder %s9, 1
    %p26 = por %p24, %p25
    %p27 = scmp.ne.s32.totalorder %s19, %s22
    %p28 = scmp.eq.s32.totalorder %s9, 0
    %p29 = por %p27, %p28
    %p30 = scmp.ne.s32.totalorder %s19, %s22
    %p31 = scmp.eq.s32.totalorder %s14, 1
    %p32 = por %p30, %p31
    %p33 = scmp.ne.s32.totalorder %s22, %s23
    %p34 = scmp.eq.s32.totalorder %s14, 0
    %p35 = por %p33, %p34
    %p36 = scmp.ne.s32.totalorder %s22, %s23
    %p37 = scmp.eq.s32.totalorder %s15, 1
    %p38 = por %p36, %p37
    %p40 = scmp.ne.s32.totalorder %s23, %s39
    %p41 = scmp.eq.s32.totalorder %s15, 0
    %p42 = por %p40, %p41
    %s43 = ssub.s32 %s9, %s16
    %p44 = scmp.eq.s32.totalorder %s43, 0
    %s46 = sadd.s32 %s45, 1
    %s47 = scalar_select %p44, %s45, %s46
    %p50 = pneg %p44
    %p51 = scmp.eq.s32.totalorder %s9, 1
    %p52 = por %p50, %p51
    %p53 = scmp.ne.s32.totalorder %s45, %s48
    %p54 = scmp.eq.s32.totalorder %s9, 0
    %p55 = por %p53, %p54
    %p56 = scmp.ne.s32.totalorder %s45, %s48
    %p57 = scmp.eq.s32.totalorder %s14, 1
    %p58 = por %p56, %p57
    %p59 = scmp.ne.s32.totalorder %s48, %s49
    %p60 = scmp.eq.s32.totalorder %s14, 0
    %p61 = por %p59, %p60
    %p62 = scmp.ne.s32.totalorder %s48, %s49
    %p63 = scmp.eq.s32.totalorder %s15, 1
    %p64 = por %p62, %p63
    %p66 = scmp.ne.s32.totalorder %s49, %s65
    %p67 = scmp.eq.s32.totalorder %s15, 0
    %p68 = por %p66, %p67
    %s69 = ssub.s32 %s9, %s16
    %p70 = scmp.eq.s32.totalorder %s69, 0
    %s72 = sadd.s32 %s71, 1
    %s73 = scalar_select %p70, %s71, %s72
    %p76 = pneg %p70
    %p77 = scmp.eq.s32.totalorder %s9, 1
    %p78 = por %p76, %p77
    %p79 = scmp.ne.s32.totalorder %s71, %s74
    %p80 = scmp.eq.s32.totalorder %s9, 0
    %p81 = por %p79, %p80
    %p82 = scmp.ne.s32.totalorder %s71, %s74
    %p83 = scmp.eq.s32.totalorder %s14, 1
    %p84 = por %p82, %p83
    %p85 = scmp.ne.s32.totalorder %s74, %s75
    %p86 = scmp.eq.s32.totalorder %s14, 0
    %p87 = por %p85, %p86
    %p88 = scmp.ne.s32.totalorder %s74, %s75
    %p89 = scmp.eq.s32.totalorder %s15, 1
    %p90 = por %p88, %p89
    %p92 = scmp.ne.s32.totalorder %s75, %s91
    %p93 = scmp.eq.s32.totalorder %s15, 0
    %p94 = por %p92, %p93
    %s95 = ssub.s32 %s9, %s16
    %p96 = scmp.eq.s32.totalorder %s95, 0
    %s98 = sadd.s32 %s97, 1
    %s99 = scalar_select %p96, %s97, %s98
    %p102 = pneg %p96
    %p103 = scmp.eq.s32.totalorder %s9, 1
    %p104 = por %p102, %p103
    %p105 = scmp.ne.s32.totalorder %s97, %s100
    %p106 = scmp.eq.s32.totalorder %s9, 0
    %p107 = por %p105, %p106
    %p108 = scmp.ne.s32.totalorder %s97, %s100
    %p109 = scmp.eq.s32.totalorder %s14, 1
    %p110 = por %p108, %p109
    %p111 = scmp.ne.s32.totalorder %s100, %s101
    %p112 = scmp.eq.s32.totalorder %s14, 0
    %p113 = por %p111, %p112
    %p114 = scmp.ne.s32.totalorder %s100, %s101
    %p115 = scmp.eq.s32.totalorder %s15, 1
    %p116 = por %p114, %p115
    %p118 = scmp.ne.s32.totalorder %s101, %s117
    %p119 = scmp.eq.s32.totalorder %s15, 0
    %p120 = por %p118, %p119
    %p121 = scmp.le.s32.totalorder 1, %s9
    %p122 = scmp.lt.s32.totalorder %s9, 3
    %p123 = pnand %p121, %p122
    %p124 = pneg %p123
    // Predicated region
    $region9: #{decoder_forward.22} parent=5 // pred_check
      _
    $region10: #{decoder_forward.22} parent=5 // pred_check_branch
      %126 = sbr.rel (%p123) target = $region12
    $region11: #{decoder_forward.22} parent=5 // pred_region
      %s127 = ssub.s32 %s9, 1
    $region12: #{decoder_forward.22} parent=5 // pred_fallthru
      _
    %p128 = scmp.lt.s32.totalorder %s9, 2
    // Predicated region
    $region13: #{decoder_forward.22} parent=5 // pred_check
      %p129 = pneg %p128
    $region14: #{decoder_forward.22} parent=5 // pred_check_branch
      %131 = sbr.rel (%p129) target = $region16
    $region15: #{decoder_forward.22} parent=5 // pred_region
      // Predicated region
      $region17: #{decoder_forward.22} parent=15 // pred_check
        %p132 = pneg %p29
      $region18: #{decoder_forward.22} parent=15 // pred_check_branch
        %134 = sbr.rel (%p132) target = $region20
      $region19: #{decoder_forward.22} parent=15 // pred_region
        %p135 = scmp.lt.s32.totalorder %s9, 1
        %s136 = scalar_select %p135, %s9, 1
        %s137 = smul.addr %s136, 8
        %s138 = scalar_lea.vmem %s0, %s137
      $region20: #{decoder_forward.22} parent=15 // pred_fallthru
        _
      // Predicated region
      $region21: #{decoder_forward.22} parent=15 // pred_check
        %p139 = pneg %p55
      $region22: #{decoder_forward.22} parent=15 // pred_check_branch
        %141 = sbr.rel (%p139) target = $region24
      $region23: #{decoder_forward.22} parent=15 // pred_region
        %p142 = scmp.lt.s32.totalorder %s9, 1
        %s143 = scalar_select %p142, %s9, 1
        %s144 = smul.addr %s143, 8
        %s145 = scalar_lea.vmem %s1, %s144
      $region24: #{decoder_forward.22} parent=15 // pred_fallthru
        _
      // Predicated region
      $region25: #{decoder_forward.22} parent=15 // pred_check
        %p146 = pneg %p81
      $region26: #{decoder_forward.22} parent=15 // pred_check_branch
        %148 = sbr.rel (%p146) target = $region28
      $region27: #{decoder_forward.22} parent=15 // pred_region
        %p149 = scmp.lt.s32.totalorder %s9, 1
        %s150 = scalar_select %p149, %s9, 1
        %s151 = scalar_lea.vmem %s2, %s150
      $region28: #{decoder_forward.22} parent=15 // pred_fallthru
        _
    $region16: #{decoder_forward.22} parent=5 // pred_fallthru
      _
    %p152 = scmp.le.s32.totalorder 1, %s9
    %p153 = scmp.lt.s32.totalorder %s9, 3
    %p154 = pnand %p152, %p153
    %p155 = pneg %p154
    // Predicated region
    $region29: #{decoder_forward.22} parent=5 // pred_check
      _
    $region30: #{decoder_forward.22} parent=5 // pred_check_branch
      %157 = sbr.rel (%p154) target = $region32
    $region31: #{decoder_forward.22} parent=5 // pred_region
      %s158 = ssub.s32 %s9, 1
      %p159 = scmp.lt.s32.totalorder %s14, 1
      %s160 = scalar_select %p159, %s14, 1
      %s161 = smul.addr %s160, 8
      %s162 = scalar_lea.vmem %s0, %s161
      %p163 = pneg %p35
      %p164 = pneg %p32
      %p165 = scmp.lt.s32.totalorder %s14, 1
      %s166 = scalar_select %p165, %s14, 1
      %s167 = smul.addr %s166, 8
      %s168 = scalar_lea.vmem %s1, %s167
      %p169 = pneg %p61
      %p170 = pneg %p58
      %p171 = scmp.lt.s32.totalorder %s14, 1
      %s172 = scalar_select %p171, %s14, 1
      %s173 = scalar_lea.vmem %s2, %s172
      %p174 = pneg %p87
      %p175 = pneg %p84
      %p176 = pneg %p113
      %p177 = pneg %p110
      %p178 = scmp.lt.s32.totalorder %s14, 1
      %s179 = scalar_select %p178, %s14, 1
      %s180 = smul.addr %s179, 8
      %s181 = scalar_lea.vmem %s3, %s180
      %p182 = scmp.lt.s32.totalorder %s14, 1
      %s183 = scalar_select %p182, %s14, 1
      %s184 = smul.addr %s183, 8
      %s185 = scalar_lea.vmem %s0, %s184
      %p186 = scmp.lt.s32.totalorder %s14, 1
      %s187 = scalar_select %p186, %s14, 1
      %s188 = smul.addr %s187, 8
      %s189 = scalar_lea.vmem %s1, %s188
      %p190 = scmp.lt.s32.totalorder %s14, 1
      %s191 = scalar_select %p190, %s14, 1
      %s192 = scalar_lea.vmem %s2, %s191
      %p193 = scmp.lt.s32.totalorder %s14, 1
      %s194 = scalar_select %p193, %s14, 1
      %s195 = smul.addr %s194, 8
      %s196 = scalar_lea.vmem %s3, %s195
      %v197 = vld [vmem:[%s189] sm:$0xff]
      %v198 = vld [vmem:[%s185] sm:$0xff]
      %v199 = vld [vmem:[%s192] sm:$0x1]
      %vm200 = vcmp.eq.f32.partialorder %v199, 0.0
      %v201 = vsel %vm200, 1, 0
      %v202 = vperm.slane %v201, 0
      %vm203 = vcmp.eq.s32.totalorder %v202, 1
      %vm204 = vcmask 64512
      %v206 = vsel %vm204, %v198, 0
      %v209 = vsel %vm204, %v197, 0
      %211 = vmatpush.xpose.msra.mxu0 0.0
      %212 = vmatpush.xpose.msra.mxu0 0.0
      %213 = vmatpush.xpose.msra.mxu0 0.0
      %214 = vmatpush.xpose.msra.mxu0 0.0
      %215 = vmatpush.xpose.msra.mxu0 0.0
      %216 = vmatpush.xpose.msra.mxu0 0.0
      %217 = vmatpush.xpose.msra.mxu0 0.0
      %218 = vmatpush.xpose.msra.mxu0 0.0
      %219 = vmatpush.xpose.msra.mxu0 0.0
      %220 = vmatpush.xpose.msra.mxu0 0.0
      %221 = vmatpush.xpose.msra.mxu0 0.0
      %222 = vmatpush.xpose.msra.mxu0 0.0
      %223 = vmatpush.xpose.msra.mxu0 0.0
      %224 = vmatpush.xpose.msra.mxu0 0.0
      %225 = vmatpush.xpose.msra.mxu0 0.0
      %226 = vmatpush.xpose.msra.mxu0 %v209
      %227 = vmatmul.f32.gmra.mxu0 %v206
      %v228 = vpop.f32.mrf.mxu0
      %v229 = vadd.f32 0.0, %v228
      %230 = vdwg.mxu0
      %v231 = vmul.f32 %v229, 0.35355338
      %v232 = vsel %vm203, -1e+09, %v231
      %v233 = vsel %vm204, %v232, -inf
      %234 = vmax.xlane.f32.xlu0 %v233
      %v235 = vpop.xlane.xlu0 %234
      %v236 = vsub.f32 %v232, %v235
      %v237 = vmul.f32 %v236, 1.442695
      %v238 = vpow.pop %v237
      %v239 = vsel %vm204, %v238, 0.0
      %240 = vadd.xlane.f32.xlu0 %v239
      %v241 = vpop.xlane.xlu0 %240
      %v242 = vrcp.pop %v241
      %v243 = vmul.f32 %v238, %v242
      %244 = vrot.lane.b32.xlu0 %v197, 96
      %v245 = vpop.permute.xlu0 %244
      %v248 = vsel %vm204, %v243, 0
      %250 = vmatpush.msra.mxu0 0.0
      %251 = vmatpush.msra.mxu0 0.0
      %252 = vmatpush.msra.mxu0 0.0
      %253 = vmatpush.msra.mxu0 0.0
      %254 = vmatpush.msra.mxu0 0.0
      %255 = vmatpush.msra.mxu0 0.0
      %256 = vmatpush.msra.mxu0 0.0
      %257 = vmatpush.msra.mxu0 0.0
      %258 = vmatpush.msra.mxu0 0.0
      %259 = vmatpush.msra.mxu0 0.0
      %260 = vmatpush.msra.mxu0 0.0
      %261 = vmatpush.msra.mxu0 0.0
      %262 = vmatpush.msra.mxu0 0.0
      %263 = vmatpush.msra.mxu0 0.0
      %264 = vmatpush.msra.mxu0 0.0
      %265 = vmatpush.msra.mxu0 %v245
      %266 = vmatmul.f32.gmra.mxu0 %v248
      %v267 = vpop.f32.mrf.mxu0
      %v268 = vadd.f32 0.0, %v267
      %269 = vdwg.mxu0
      %270 = vrot.lane.b32.xlu0 %v198, 120
      %v271 = vpop.permute.xlu0 %270
      %272 = vrot.lane.b32.xlu0 %v197, 120
      %v273 = vpop.permute.xlu0 %272
      %v274 = vsel %vm204, %v271, 0
      %v276 = vsel %vm204, %v273, 0
      %278 = vmatpush.xpose.msra.mxu0 0.0
      %279 = vmatpush.xpose.msra.mxu0 0.0
      %280 = vmatpush.xpose.msra.mxu0 0.0
      %281 = vmatpush.xpose.msra.mxu0 0.0
      %282 = vmatpush.xpose.msra.mxu0 0.0
      %283 = vmatpush.xpose.msra.mxu0 0.0
      %284 = vmatpush.xpose.msra.mxu0 0.0
      %285 = vmatpush.xpose.msra.mxu0 0.0
      %286 = vmatpush.xpose.msra.mxu0 0.0
      %287 = vmatpush.xpose.msra.mxu0 0.0
      %288 = vmatpush.xpose.msra.mxu0 0.0
      %289 = vmatpush.xpose.msra.mxu0 0.0
      %290 = vmatpush.xpose.msra.mxu0 0.0
      %291 = vmatpush.xpose.msra.mxu0 0.0
      %292 = vmatpush.xpose.msra.mxu0 0.0
      %293 = vmatpush.xpose.msra.mxu0 %v276
      %294 = vmatmul.f32.gmra.mxu0 %v274
      %v295 = vpop.f32.mrf.mxu0
      %v296 = vadd.f32 0.0, %v295
      %297 = vdwg.mxu0
      %v298 = vmul.f32 %v296, 0.35355338
      %v299 = vsel %vm203, -1e+09, %v298
      %v300 = vsel %vm204, %v299, -inf
      %301 = vmax.xlane.f32.xlu0 %v300
      %v302 = vpop.xlane.xlu0 %301
      %v303 = vsub.f32 %v299, %v302
      %v304 = vmul.f32 %v303, 1.442695
      %v305 = vpow.pop %v304
      %v306 = vsel %vm204, %v305, 0.0
      %307 = vadd.xlane.f32.xlu0 %v306
      %v308 = vpop.xlane.xlu0 %307
      %v309 = vrcp.pop %v308
      %v310 = vmul.f32 %v305, %v309
      %311 = vrot.lane.b32.xlu0 %v197, 88
      %v312 = vpop.permute.xlu0 %311
      %v315 = vsel %vm204, %v310, 0
      %317 = vmatpush.msra.mxu0 0.0
      %318 = vmatpush.msra.mxu0 0.0
      %319 = vmatpush.msra.mxu0 0.0
      %320 = vmatpush.msra.mxu0 0.0
      %321 = vmatpush.msra.mxu0 0.0
      %322 = vmatpush.msra.mxu0 0.0
      %323 = vmatpush.msra.mxu0 0.0
      %324 = vmatpush.msra.mxu0 0.0
      %325 = vmatpush.msra.mxu0 0.0
      %326 = vmatpush.msra.mxu0 0.0
      %327 = vmatpush.msra.mxu0 0.0
      %328 = vmatpush.msra.mxu0 0.0
      %329 = vmatpush.msra.mxu0 0.0
      %330 = vmatpush.msra.mxu0 0.0
      %331 = vmatpush.msra.mxu0 0.0
      %332 = vmatpush.msra.mxu0 %v312
      %333 = vmatmul.f32.gmra.mxu0 %v315
      %v334 = vpop.f32.mrf.mxu0
      %v335 = vadd.f32 0.0, %v334
      %336 = vdwg.mxu0
      %337 = vrot.lane.b32.xlu0 %v198, 112
      %v338 = vpop.permute.xlu0 %337
      %339 = vrot.lane.b32.xlu0 %v197, 112
      %v340 = vpop.permute.xlu0 %339
      %v341 = vsel %vm204, %v338, 0
      %v343 = vsel %vm204, %v340, 0
      %345 = vmatpush.xpose.msra.mxu0 0.0
      %346 = vmatpush.xpose.msra.mxu0 0.0
      %347 = vmatpush.xpose.msra.mxu0 0.0
      %348 = vmatpush.xpose.msra.mxu0 0.0
      %349 = vmatpush.xpose.msra.mxu0 0.0
      %350 = vmatpush.xpose.msra.mxu0 0.0
      %351 = vmatpush.xpose.msra.mxu0 0.0
      %352 = vmatpush.xpose.msra.mxu0 0.0
      %353 = vmatpush.xpose.msra.mxu0 0.0
      %354 = vmatpush.xpose.msra.mxu0 0.0
      %355 = vmatpush.xpose.msra.mxu0 0.0
      %356 = vmatpush.xpose.msra.mxu0 0.0
      %357 = vmatpush.xpose.msra.mxu0 0.0
      %358 = vmatpush.xpose.msra.mxu0 0.0
      %359 = vmatpush.xpose.msra.mxu0 0.0
      %360 = vmatpush.xpose.msra.mxu0 %v343
      %361 = vmatmul.f32.gmra.mxu0 %v341
      %v362 = vpop.f32.mrf.mxu0
      %v363 = vadd.f32 0.0, %v362
      %364 = vdwg.mxu0
      %v365 = vmul.f32 %v363, 0.35355338
      %v366 = vsel %vm203, -1e+09, %v365
      %v367 = vsel %vm204, %v366, -inf
      %368 = vmax.xlane.f32.xlu0 %v367
      %v369 = vpop.xlane.xlu0 %368
      %v370 = vsub.f32 %v366, %v369
      %v371 = vmul.f32 %v370, 1.442695
      %v372 = vpow.pop %v371
      %v373 = vsel %vm204, %v372, 0.0
      %374 = vadd.xlane.f32.xlu0 %v373
      %v375 = vpop.xlane.xlu0 %374
      %v376 = vrcp.pop %v375
      %v377 = vmul.f32 %v372, %v376
      %378 = vrot.lane.b32.xlu0 %v197, 80
      %v379 = vpop.permute.xlu0 %378
      %v382 = vsel %vm204, %v377, 0
      %384 = vmatpush.msra.mxu0 0.0
      %385 = vmatpush.msra.mxu0 0.0
      %386 = vmatpush.msra.mxu0 0.0
      %387 = vmatpush.msra.mxu0 0.0
      %388 = vmatpush.msra.mxu0 0.0
      %389 = vmatpush.msra.mxu0 0.0
      %390 = vmatpush.msra.mxu0 0.0
      %391 = vmatpush.msra.mxu0 0.0
      %392 = vmatpush.msra.mxu0 0.0
      %393 = vmatpush.msra.mxu0 0.0
      %394 = vmatpush.msra.mxu0 0.0
      %395 = vmatpush.msra.mxu0 0.0
      %396 = vmatpush.msra.mxu0 0.0
      %397 = vmatpush.msra.mxu0 0.0
      %398 = vmatpush.msra.mxu0 0.0
      %399 = vmatpush.msra.mxu0 %v379
      %400 = vmatmul.f32.gmra.mxu0 %v382
      %v401 = vpop.f32.mrf.mxu0
      %v402 = vadd.f32 0.0, %v401
      %403 = vdwg.mxu0
      %404 = vrot.lane.b32.xlu0 %v198, 104
      %v405 = vpop.permute.xlu0 %404
      %406 = vrot.lane.b32.xlu0 %v197, 104
      %v407 = vpop.permute.xlu0 %406
      %v408 = vsel %vm204, %v405, 0
      %v410 = vsel %vm204, %v407, 0
      %412 = vmatpush.xpose.msra.mxu0 0.0
      %413 = vmatpush.xpose.msra.mxu0 0.0
      %414 = vmatpush.xpose.msra.mxu0 0.0
      %415 = vmatpush.xpose.msra.mxu0 0.0
      %416 = vmatpush.xpose.msra.mxu0 0.0
      %417 = vmatpush.xpose.msra.mxu0 0.0
      %418 = vmatpush.xpose.msra.mxu0 0.0
      %419 = vmatpush.xpose.msra.mxu0 0.0
      %420 = vmatpush.xpose.msra.mxu0 0.0
      %421 = vmatpush.xpose.msra.mxu0 0.0
      %422 = vmatpush.xpose.msra.mxu0 0.0
      %423 = vmatpush.xpose.msra.mxu0 0.0
      %424 = vmatpush.xpose.msra.mxu0 0.0
      %425 = vmatpush.xpose.msra.mxu0 0.0
      %426 = vmatpush.xpose.msra.mxu0 0.0
      %427 = vmatpush.xpose.msra.mxu0 %v410
      %428 = vmatmul.f32.gmra.mxu0 %v408
      %v429 = vpop.f32.mrf.mxu0
      %v430 = vadd.f32 0.0, %v429
      %431 = vdwg.mxu0
      %v432 = vmul.f32 %v430, 0.35355338
      %v433 = vsel %vm203, -1e+09, %v432
      %v434 = vsel %vm204, %v433, -inf
      %435 = vmax.xlane.f32.xlu0 %v434
      %v436 = vpop.xlane.xlu0 %435
      %v437 = vsub.f32 %v433, %v436
      %v438 = vmul.f32 %v437, 1.442695
      %v439 = vpow.pop %v438
      %v440 = vsel %vm204, %v439, 0.0
      %441 = vadd.xlane.f32.xlu0 %v440
      %v442 = vpop.xlane.xlu0 %441
      %v443 = vrcp.pop %v442
      %v444 = vmul.f32 %v439, %v443
      %445 = vrot.lane.b32.xlu0 %v197, 72
      %v446 = vpop.permute.xlu0 %445
      %v449 = vsel %vm204, %v444, 0
      %451 = vmatpush.msra.mxu0 0.0
      %452 = vmatpush.msra.mxu0 0.0
      %453 = vmatpush.msra.mxu0 0.0
      %454 = vmatpush.msra.mxu0 0.0
      %455 = vmatpush.msra.mxu0 0.0
      %456 = vmatpush.msra.mxu0 0.0
      %457 = vmatpush.msra.mxu0 0.0
      %458 = vmatpush.msra.mxu0 0.0
      %459 = vmatpush.msra.mxu0 0.0
      %460 = vmatpush.msra.mxu0 0.0
      %461 = vmatpush.msra.mxu0 0.0
      %462 = vmatpush.msra.mxu0 0.0
      %463 = vmatpush.msra.mxu0 0.0
      %464 = vmatpush.msra.mxu0 0.0
      %465 = vmatpush.msra.mxu0 0.0
      %466 = vmatpush.msra.mxu0 %v446
      %467 = vmatmul.f32.gmra.mxu0 %v449
      %v468 = vpop.f32.mrf.mxu0
      %v469 = vadd.f32 0.0, %v468
      %470 = vdwg.mxu0
      %472 = vrot.lane.b32.xlu0 %v335, 8
      %v473 = vpop.permute.xlu0 %472
      %476 = vrot.lane.b32.xlu0 %v402, 16
      %v477 = vpop.permute.xlu0 %476
      %480 = vrot.lane.b32.xlu0 %v469, 24
      %v481 = vpop.permute.xlu0 %480
      %v483 = vsel %vm204, %v268, %v473
      %vm484 = vcmask 130048
      %v485 = vsel %vm484, %v483, %v477
      %vm486 = vcmask 195584
      %v487 = vsel %vm486, %v485, %v481
      %vm488 = vcmask 261120
      %489 = vst.msk [vmem:[%s196] sm:$0xff] %vm488, %v487
      %p490 = scmp.lt.s32.totalorder %s14, 1
      %s491 = scalar_select %p490, %s14, 1
      %s492 = smul.addr %s491, 8
      %s493 = scalar_lea.vmem %s3, %s492
      // Predicated region
      $region33: #{decoder_forward.22} parent=31 // pred_check
        %p494 = pneg %p110
      $region34: #{decoder_forward.22} parent=31 // pred_check_branch
        %496 = sbr.rel (%p494) target = $region36
      $region35: #{decoder_forward.22} parent=31 // pred_region
        _
      $region36: #{decoder_forward.22} parent=31 // pred_fallthru
        _
    $region32: #{decoder_forward.22} parent=5 // pred_fallthru
      _
    %p497 = scmp.le.s32.totalorder 2, %s9
    // Predicated region
    $region37: #{decoder_forward.22} parent=5 // pred_check
      %p498 = pneg %p497
    $region38: #{decoder_forward.22} parent=5 // pred_check_branch
      %500 = sbr.rel (%p498) target = $region40
    $region39: #{decoder_forward.22} parent=5 // pred_region
      %s501 = ssub.s32 %s9, 2
      // Predicated region
      $region41: #{decoder_forward.22} parent=39 // pred_check
        %p502 = pneg %p116
      $region42: #{decoder_forward.22} parent=39 // pred_check_branch
        %504 = sbr.rel (%p502) target = $region44
      $region43: #{decoder_forward.22} parent=39 // pred_region
        %p505 = scmp.lt.s32.totalorder %s15, 1
        %s506 = scalar_select %p505, %s15, 1
        %s507 = smul.addr %s506, 8
        %s508 = scalar_lea.vmem %s3, %s507
      $region44: #{decoder_forward.22} parent=39 // pred_fallthru
        _
    $region40: #{decoder_forward.22} parent=5 // pred_fallthru
      _
  $region6: #{decoder_forward.22} parent=0 // loop_footer
    %s13 = sadd.s32 1, %s9
  $region7: #{decoder_forward.22} parent=0 // loop_footer_branch
    %8 = sbr.rel target = $region3
  $region8: #{decoder_forward.22} parent=0 // loop_exit
    _

// kernel: decoder_forward.25
$region0: #{decoder_forward.25}
  #allocation0 [shape = 'u32[]', space=smem, size = 0x4, offset = 0x4, fixed_abs, tag = 'smem constant byte address 0x4 - core index']
  #allocation1 [shape = 'u32[72,128]{1,0:T(1,128)}', space=vmem, size = 0x9000, scoped, tag = 'internal scratch']
  %s0 = inlined_call_operand.vmem [shape: f32[16,32], index: 0, kind: input, shape index: {}]
  %s1 = inlined_call_operand.hbm [shape: f32[1,32], index: 1, kind: input, shape index: {}]
  %s2 = inlined_call_operand.hbm [shape: f32[1,32], index: 2, kind: input, shape index: {}]
  %s3 = inlined_call_operand.vmem [shape: f32[32,96], index: 3, kind: input, shape index: {}]
  %s4 = inlined_call_operand.hbm [shape: f32[1,96], index: 4, kind: input, shape index: {}]
  %s5 = inlined_call_operand.vmem [shape: f32[16,96], index: 5, kind: output, shape index: {}]
  %s6 = sld [smem:[#allocation0]]
  $region42: #{decoder_forward.25} parent=0
    _
  %s8 = ssub.s32 1, %s6
  %s9 = scalar_select 0, %s8, %s6
  $region1: #{decoder_forward.25} parent=0
    #allocation2 [shape = 'u8[512]{0}', space=vmem, size = 0x400, scoped, tag = 'input window, operand 1, single buffered']
    #allocation3 [shape = 's32[1]{0}', space=sflag, size = 0x4, scoped, tag = 'scoped memory for decoder_forward.25']
    #allocation4 [shape = 'u8[512]{0}', space=vmem, size = 0x400, scoped, tag = 'input window, operand 2, single buffered']
    #allocation5 [shape = 's32[1]{0}', space=sflag, size = 0x4, scoped, tag = 'scoped memory for decoder_forward.25']
    #allocation6 [shape = 'u8[512]{0}', space=vmem, size = 0x400, scoped, tag = 'input window, operand 4, single buffered']
    %10 = vsyncpa [#allocation3], 0
    %11 = vsyncpa [#allocation5], 0
    // Predicated region
    $region2: #{decoder_forward.25} parent=1 // pred_check
      _
    $region3: #{decoder_forward.25} parent=1 // pred_check_branch
      %13 = sbr.rel (0) target = $region5
    $region4: #{decoder_forward.25} parent=1 // pred_region
      _
    $region5: #{decoder_forward.25} parent=1 // pred_fallthru
      _
    // Predicated region
    $region6: #{decoder_forward.25} parent=1 // pred_check
      _
    $region7: #{decoder_forward.25} parent=1 // pred_check_branch
      %15 = sbr.rel (0) target = $region9
    $region8: #{decoder_forward.25} parent=1 // pred_region
      %17 = vsyncadd [#allocation3], 0
      %s19 = sshll.u32 %s1, 4
      %s20 = int_to_ptr.hbm [resolvable:$true] %s19
      %s21 = sshll.u32 [#allocation2], 4
      %s22 = int_to_ptr.vmem [resolvable:$true] %s21
      %24 = dma.hbm_to_vmem [thread:$0]  %s20, 16, %s22, [#allocation3]
    $region9: #{decoder_forward.25} parent=1 // pred_fallthru
      _
    // Predicated region
    $region10: #{decoder_forward.25} parent=1 // pred_check
      _
    $region11: #{decoder_forward.25} parent=1 // pred_check_branch
      %26 = sbr.rel (0) target = $region13
    $region12: #{decoder_forward.25} parent=1 // pred_region
      %28 = vsyncadd [#allocation5], 0
      %s30 = sshll.u32 %s2, 4
      %s31 = int_to_ptr.hbm [resolvable:$true] %s30
      %s32 = sshll.u32 [#allocation4], 4
      %s33 = int_to_ptr.vmem [resolvable:$true] %s32
      %35 = dma.hbm_to_vmem [thread:$0]  %s31, 16, %s33, [#allocation5]
    $region13: #{decoder_forward.25} parent=1 // pred_fallthru
      _
    // Predicated region
    $region14: #{decoder_forward.25} parent=1 // pred_check
      _
    $region15: #{decoder_forward.25} parent=1 // pred_check_branch
      %37 = sbr.rel (0) target = $region17
    $region16: #{decoder_forward.25} parent=1 // pred_region
      _
    $region17: #{decoder_forward.25} parent=1 // pred_fallthru
      _
    // Predicated region
    $region18: #{decoder_forward.25} parent=1 // pred_check
      _
    $region19: #{decoder_forward.25} parent=1 // pred_check_branch
      %39 = sbr.rel (0) target = $region21
    $region20: #{decoder_forward.25} parent=1 // pred_region
      %41 = vsyncadd [#allocation5], 0
      %s43 = sshll.u32 %s4, 4
      %s44 = int_to_ptr.hbm [resolvable:$true] %s43
      %s45 = sshll.u32 [#allocation6], 4
      %s46 = int_to_ptr.vmem [resolvable:$true] %s45
      %48 = dma.hbm_to_vmem [thread:$0]  %s44, 16, %s46, [#allocation5]
    $region21: #{decoder_forward.25} parent=1 // pred_fallthru
      _
    // Predicated region
    $region22: #{decoder_forward.25} parent=1 // pred_check
      _
    $region23: #{decoder_forward.25} parent=1 // pred_check_branch
      %50 = sbr.rel (0) target = $region25
    $region24: #{decoder_forward.25} parent=1 // pred_region
      %52 = dma.done [#allocation3], 16
    $region25: #{decoder_forward.25} parent=1 // pred_fallthru
      _
    // Predicated region
    $region26: #{decoder_forward.25} parent=1 // pred_check
      _
    $region27: #{decoder_forward.25} parent=1 // pred_check_branch
      %54 = sbr.rel (0) target = $region29
    $region28: #{decoder_forward.25} parent=1 // pred_region
      %56 = dma.done [#allocation5], 16
    $region29: #{decoder_forward.25} parent=1 // pred_fallthru
      _
    // Predicated region
    $region30: #{decoder_forward.25} parent=1 // pred_check
      _
    $region31: #{decoder_forward.25} parent=1 // pred_check_branch
      %58 = sbr.rel (0) target = $region33
    $region32: #{decoder_forward.25} parent=1 // pred_region
      %60 = dma.done [#allocation5], 16
    $region33: #{decoder_forward.25} parent=1 // pred_fallthru
      _
    %v61 = vld [vmem:[%s0] sm:$0xff]
    %v62 = vld [vmem:[%s0 + $0x8] sm:$0xff]
    %v63 = vld [vmem:[#allocation2] sm:$0x1]
    %v64 = vld [vmem:[#allocation4] sm:$0x1]
    %vm65 = vcmask 261120
    %v66 = vsel %vm65, %v61, 0.0
    %67 = vadd.xlane.f32.xlu0 %v66
    %v68 = vpop.xlane.xlu0 %67
    %v69 = vsel %vm65, %v62, 0.0
    %70 = vadd.xlane.f32.xlu0 %v69
    %v71 = vpop.xlane.xlu0 %70
    %v72 = vrcp.pop 32.0
    %v73 = vmul.f32 32.0, %v72
    %v74 = vsub.f32 1.0, %v73
    %v75 = vmul.f32 %v72, %v74
    %v76 = vadd.f32 %v72, %v75
    %vm77 = vweird.f32 %v72
    %v78 = vsel %vm77, %v72, %v76
    %v79 = vmul.f32 %v68, %v78
    %v80 = vmul.f32 %v71, %v78
    %v81 = vsub.f32 %v61, %v79
    %v82 = vsub.f32 %v62, %v80
    %v83 = vmul.f32 %v81, %v81
    %v84 = vmul.f32 %v82, %v82
    %v85 = vsel %vm65, %v83, 0.0
    %86 = vadd.xlane.f32.xlu0 %v85
    %v87 = vpop.xlane.xlu0 %86
    %v88 = vsel %vm65, %v84, 0.0
    %89 = vadd.xlane.f32.xlu0 %v88
    %v90 = vpop.xlane.xlu0 %89
    %v91 = vrcp.pop 31.0
    %v92 = vmul.f32 31.0, %v91
    %v93 = vsub.f32 1.0, %v92
    %v94 = vmul.f32 %v91, %v93
    %v95 = vadd.f32 %v91, %v94
    %vm96 = vweird.f32 %v91
    %v97 = vsel %vm96, %v91, %v95
    %v98 = vmul.f32 %v87, %v97
    %v99 = vmul.f32 %v90, %v97
    %v100 = vrsqrt.pop %v98
    %v101 = vmul.f32 %v100, %v98
    %v102 = vmul.f32 %v101, %v100
    %v103 = vmul.f32 0.5, %v102
    %v104 = vsub.f32 1.5, %v103
    %v105 = vmul.f32 %v100, %v104
    %v106 = vmul.f32 %v98, %v105
    %vm107 = vcmp.eq.f32.partialorder %v98, inf
    %v108 = vsel %vm107, %v98, %v106
    %vm109 = vcmp.eq.f32.partialorder %v98, 0.0
    %v110 = vand.u32 %v98, 2147483648
    %v111 = vsel %vm109, %v110, %v108
    %v112 = vrsqrt.pop %v99
    %v113 = vmul.f32 %v112, %v99
    %v114 = vmul.f32 %v113, %v112
    %v115 = vmul.f32 0.5, %v114
    %v116 = vsub.f32 1.5, %v115
    %v117 = vmul.f32 %v112, %v116
    %v118 = vmul.f32 %v99, %v117
    %vm119 = vcmp.eq.f32.partialorder %v99, inf
    %v120 = vsel %vm119, %v99, %v118
    %vm121 = vcmp.eq.f32.partialorder %v99, 0.0
    %v122 = vand.u32 %v99, 2147483648
    %v123 = vsel %vm121, %v122, %v120
    %v125 = vperm.slane %v63, 0
    %v127 = vmul.f32 %v125, %v81
    %v128 = vmul.f32 %v125, %v82
    %v129 = vadd.f32 %v111, 1e-06
    %v130 = vadd.f32 %v123, 1e-06
    %v131 = vrcp.pop %v129
    %v132 = vmul.f32 %v129, %v131
    %v133 = vsub.f32 1.0, %v132
    %v134 = vmul.f32 %v131, %v133
    %v135 = vadd.f32 %v131, %v134
    %vm136 = vweird.f32 %v129
    %vm137 = vweird.f32 %v131
    %vm138 = vmor %vm136, %vm137
    %v139 = vsel %vm138, %v131, %v135
    %v140 = vand.u32 2147483647, %v129
    %vm141 = vcmp.eq.f32.partialorder %v140, 8.507059e+37
    %v142 = vand.u32 %v129, 2147483648
    %v143 = vor.u32 1.1754944e-38, %v142
    %v144 = vsel %vm141, %v143, %v139
    %v145 = vmul.f32 %v127, %v144
    %v146 = vrcp.pop %v130
    %v147 = vmul.f32 %v130, %v146
    %v148 = vsub.f32 1.0, %v147
    %v149 = vmul.f32 %v146, %v148
    %v150 = vadd.f32 %v146, %v149
    %vm151 = vweird.f32 %v130
    %vm152 = vweird.f32 %v146
    %vm153 = vmor %vm151, %vm152
    %v154 = vsel %vm153, %v146, %v150
    %v155 = vand.u32 2147483647, %v130
    %vm156 = vcmp.eq.f32.partialorder %v155, 8.507059e+37
    %v157 = vand.u32 %v130, 2147483648
    %v158 = vor.u32 1.1754944e-38, %v157
    %v159 = vsel %vm156, %v158, %v154
    %v160 = vmul.f32 %v128, %v159
    %v162 = vperm.slane %v64, 0
    %v164 = vadd.f32 %v145, %v162
    %v165 = vadd.f32 %v160, %v162
    %v166 = vld [vmem:[%s3] sm:$0xff]
    %v167 = vld [vmem:[%s3 + $0x8] sm:$0xff]
    %v168 = vld [vmem:[%s3 + $0x10] sm:$0xff]
    %v169 = vld [vmem:[%s3 + $0x18] sm:$0xff]
    %v170 = vld [vmem:[#allocation6] sm:$0x1]
    %v172 = vperm.slane %v170, 0
    %v175 = vsel %vm65, %v164, 0
    %v178 = vsel %vm65, %v165, 0
    %180 = vmatpush.msra.mxu0 0.0
    %181 = vmatpush.msra.mxu0 0.0
    %182 = vmatpush.msra.mxu0 0.0
    %183 = vmatpush.msra.mxu0 0.0
    %184 = vmatpush.msra.mxu0 0.0
    %185 = vmatpush.msra.mxu0 0.0
    %186 = vmatpush.msra.mxu0 0.0
    %187 = vmatpush.msra.mxu0 0.0
    %188 = vmatpush.msra.mxu0 0.0
    %189 = vmatpush.msra.mxu0 0.0
    %190 = vmatpush.msra.mxu0 0.0
    %191 = vmatpush.msra.mxu0 0.0
    %192 = vmatpush.msra.mxu0 %v169
    %193 = vmatpush.msra.mxu0 %v168
    %194 = vmatpush.msra.mxu0 %v167
    %195 = vmatpush.msra.mxu0 %v166
    %196 = vmatmul.f32.gmra.mxu0 %v175
    %v197 = vpop.f32.mrf.mxu0
    %v198 = vadd.f32 %v172, %v197
    %199 = vmatmul.f32.gmra.mxu0 %v178
    %v200 = vpop.f32.mrf.mxu0
    %v201 = vadd.f32 %v172, %v200
    %202 = vdwg.mxu0
    %vm203 = vcmask 785408
    %204 = vst.msk [vmem:[%s5] sm:$0xff] %vm203, %v198
    %205 = vst.msk [vmem:[%s5 + $0x8] sm:$0xff] %vm203, %v201
    // Predicated region
    $region34: #{decoder_forward.25} parent=1 // pred_check
      _
    $region35: #{decoder_forward.25} parent=1 // pred_check_branch
      %207 = sbr.rel (0) target = $region37
    $region36: #{decoder_forward.25} parent=1 // pred_region
      _
    $region37: #{decoder_forward.25} parent=1 // pred_fallthru
      _
    // Predicated region
    $region38: #{decoder_forward.25} parent=1 // pred_check
      _
    $region39: #{decoder_forward.25} parent=1 // pred_check_branch
      %209 = sbr.rel (0) target = $region41
    $region40: #{decoder_forward.25} parent=1 // pred_region
      _
    $region41: #{decoder_forward.25} parent=1 // pred_fallthru
      _
    %210 = vsyncpa [#allocation3], 1
    %211 = vsyncpa [#allocation5], 1

// kernel: decoder_forward.29
$region0: #{decoder_forward.29}
  #allocation0 [shape = 'u32[]', space=smem, size = 0x4, offset = 0x4, fixed_abs, tag = 'smem constant byte address 0x4 - core index']
  #allocation1 [shape = 'u32[72,128]{1,0:T(1,128)}', space=vmem, size = 0x9000, scoped, tag = 'internal scratch']
  %s0 = inlined_call_operand.vmem [shape: f32[16,32], index: 0, kind: input, shape index: {}]
  %s1 = inlined_call_operand.hbm [shape: f32[32,64], index: 1, kind: input, shape index: {}]
  %s2 = inlined_call_operand.hbm [shape: f32[1,64], index: 2, kind: input, shape index: {}]
  %s3 = inlined_call_operand.vmem [shape: f32[16,64], index: 3, kind: output, shape index: {}]
  %s4 = sld [smem:[#allocation0]]
  $region30: #{decoder_forward.29} parent=0
    _
  %s6 = ssub.s32 1, %s4
  %s7 = scalar_select 0, %s6, %s4
  $region1: #{decoder_forward.29} parent=0
    #allocation2 [shape = 'u8[16384]{0}', space=vmem, size = 0x4000, scoped, tag = 'input window, operand 1, single buffered']
    #allocation3 [shape = 's32[1]{0}', space=sflag, size = 0x4, scoped, tag = 'scoped memory for decoder_forward.29']
    #allocation4 [shape = 'u8[512]{0}', space=vmem, size = 0x400, scoped, tag = 'input window, operand 2, single buffered']
    #allocation5 [shape = 's32[1]{0}', space=sflag, size = 0x4, scoped, tag = 'scoped memory for decoder_forward.29']
    %8 = vsyncpa [#allocation3], 0
    %9 = vsyncpa [#allocation5], 0
    // Predicated region
    $region2: #{decoder_forward.29} parent=1 // pred_check
      _
    $region3: #{decoder_forward.29} parent=1 // pred_check_branch
      %11 = sbr.rel (0) target = $region5
    $region4: #{decoder_forward.29} parent=1 // pred_region
      _
    $region5: #{decoder_forward.29} parent=1 // pred_fallthru
      _
    // Predicated region
    $region6: #{decoder_forward.29} parent=1 // pred_check
      _
    $region7: #{decoder_forward.29} parent=1 // pred_check_branch
      %13 = sbr.rel (0) target = $region9
    $region8: #{decoder_forward.29} parent=1 // pred_region
      %15 = vsyncadd [#allocation3], 0
      %s16 = sshll.u32 %s1, 4
      %s17 = int_to_ptr.hbm [resolvable:$true] %s16
      %s18 = sshll.u32 [#allocation2], 4
      %s19 = int_to_ptr.vmem [resolvable:$true] %s18
      %24 = dma.hbm_to_vmem [thread:$0]  %s17, 512, %s19, [#allocation3], 128, 128, 8
    $region9: #{decoder_forward.29} parent=1 // pred_fallthru
      _
    // Predicated region
    $region10: #{decoder_forward.29} parent=1 // pred_check
      _
    $region11: #{decoder_forward.29} parent=1 // pred_check_branch
      %26 = sbr.rel (0) target = $region13
    $region12: #{decoder_forward.29} parent=1 // pred_region
      %28 = vsyncadd [#allocation5], 0
      %s30 = sshll.u32 %s2, 4
      %s31 = int_to_ptr.hbm [resolvable:$true] %s30
      %s32 = sshll.u32 [#allocation4], 4
      %s33 = int_to_ptr.vmem [resolvable:$true] %s32
      %35 = dma.hbm_to_vmem [thread:$0]  %s31, 16, %s33, [#allocation5]
    $region13: #{decoder_forward.29} parent=1 // pred_fallthru
      _
    // Predicated region
    $region14: #{decoder_forward.29} parent=1 // pred_check
      _
    $region15: #{decoder_forward.29} parent=1 // pred_check_branch
      %37 = sbr.rel (0) target = $region17
    $region16: #{decoder_forward.29} parent=1 // pred_region
      %39 = dma.done [#allocation3], 512
    $region17: #{decoder_forward.29} parent=1 // pred_fallthru
      _
    // Predicated region
    $region18: #{decoder_forward.29} parent=1 // pred_check
      _
    $region19: #{decoder_forward.29} parent=1 // pred_check_branch
      %41 = sbr.rel (0) target = $region21
    $region20: #{decoder_forward.29} parent=1 // pred_region
      %43 = dma.done [#allocation5], 16
    $region21: #{decoder_forward.29} parent=1 // pred_fallthru
      _
    %v44 = vld [vmem:[%s0] sm:$0xff]
    %v45 = vld [vmem:[%s0 + $0x8] sm:$0xff]
    %v46 = vld [vmem:[#allocation2] sm:$0xff]
    %v47 = vld [vmem:[#allocation2 + $0x8] sm:$0xff]
    %v48 = vld [vmem:[#allocation2 + $0x10] sm:$0xff]
    %v49 = vld [vmem:[#allocation2 + $0x18] sm:$0xff]
    %v50 = vld [vmem:[#allocation4] sm:$0x1]
    %v52 = vperm.slane %v50, 0
    %vm54 = vcmask 261120
    %v56 = vsel %vm54, %v44, 0
    %v59 = vsel %vm54, %v45, 0
    %61 = vmatpush.msra.mxu0 0.0
    %62 = vmatpush.msra.mxu0 0.0
    %63 = vmatpush.msra.mxu0 0.0
    %64 = vmatpush.msra.mxu0 0.0
    %65 = vmatpush.msra.mxu0 0.0
    %66 = vmatpush.msra.mxu0 0.0
    %67 = vmatpush.msra.mxu0 0.0
    %68 = vmatpush.msra.mxu0 0.0
    %69 = vmatpush.msra.mxu0 0.0
    %70 = vmatpush.msra.mxu0 0.0
    %71 = vmatpush.msra.mxu0 0.0
    %72 = vmatpush.msra.mxu0 0.0
    %73 = vmatpush.msra.mxu0 %v49
    %74 = vmatpush.msra.mxu0 %v48
    %75 = vmatpush.msra.mxu0 %v47
    %76 = vmatpush.msra.mxu0 %v46
    %77 = vmatmul.f32.gmra.mxu0 %v56
    %v78 = vpop.f32.mrf.mxu0
    %v79 = vadd.f32 %v52, %v78
    %80 = vmatmul.f32.gmra.mxu0 %v59
    %v81 = vpop.f32.mrf.mxu0
    %v82 = vadd.f32 %v52, %v81
    %83 = vdwg.mxu0
    %vm84 = vcmask 523264
    %85 = vst.msk [vmem:[%s3] sm:$0xff] %vm84, %v79
    %86 = vst.msk [vmem:[%s3 + $0x8] sm:$0xff] %vm84, %v82
    // Predicated region
    $region22: #{decoder_forward.29} parent=1 // pred_check
      _
    $region23: #{decoder_forward.29} parent=1 // pred_check_branch
      %88 = sbr.rel (0) target = $region25
    $region24: #{decoder_forward.29} parent=1 // pred_region
      _
    $region25: #{decoder_forward.29} parent=1 // pred_fallthru
      _
    // Predicated region
    $region26: #{decoder_forward.29} parent=1 // pred_check
      _
    $region27: #{decoder_forward.29} parent=1 // pred_check_branch
      %90 = sbr.rel (0) target = $region29
    $region28: #{decoder_forward.29} parent=1 // pred_region
      _
    $region29: #{decoder_forward.29} parent=1 // pred_fallthru
      _
    %91 = vsyncpa [#allocation3], 1
    %92 = vsyncpa [#allocation5], 1

// kernel: decoder_forward.32
$region0: #{decoder_forward.32}
  #allocation0 [shape = 'u32[]', space=smem, size = 0x4, offset = 0x4, fixed_abs, tag = 'smem constant byte address 0x4 - core index']
  #allocation1 [shape = 'u32[72,128]{1,0:T(1,128)}', space=vmem, size = 0x9000, scoped, tag = 'internal scratch']
  %s0 = inlined_call_operand.vmem [shape: f32[16,32], index: 0, kind: input, shape index: {}]
  %s1 = inlined_call_operand.vmem [shape: f32[1,32], index: 1, kind: input, shape index: {}]
  %s2 = inlined_call_operand.vmem [shape: f32[1,32], index: 2, kind: input, shape index: {}]
  %s3 = inlined_call_operand.vmem [shape: f32[32,64], index: 3, kind: input, shape index: {}]
  %s4 = inlined_call_operand.vmem [shape: f32[1,64], index: 4, kind: input, shape index: {}]
  %s5 = inlined_call_operand.vmem [shape: f32[64,32], index: 5, kind: input, shape index: {}]
  %s6 = inlined_call_operand.vmem [shape: f32[1,32], index: 6, kind: input, shape index: {}]
  %s7 = inlined_call_operand.vmem [shape: f32[16,32], index: 7, kind: output, shape index: {}]
  %s8 = sld [smem:[#allocation0]]
  $region38: #{decoder_forward.32} parent=0
    _
  %s10 = ssub.s32 1, %s8
  %s11 = scalar_select 0, %s10, %s8
  // Predicated region
  $region2: #{decoder_forward.32} parent=0 // pred_check
    _
  $region3: #{decoder_forward.32} parent=0 // pred_check_branch
    %13 = sbr.rel (0) target = $region5
  $region4: #{decoder_forward.32} parent=0 // pred_region
    _
  $region5: #{decoder_forward.32} parent=0 // pred_fallthru
    _
  // Predicated region
  $region6: #{decoder_forward.32} parent=0 // pred_check
    _
  $region7: #{decoder_forward.32} parent=0 // pred_check_branch
    %15 = sbr.rel (0) target = $region9
  $region8: #{decoder_forward.32} parent=0 // pred_region
    _
  $region9: #{decoder_forward.32} parent=0 // pred_fallthru
    _
  // Predicated region
  $region10: #{decoder_forward.32} parent=0 // pred_check
    _
  $region11: #{decoder_forward.32} parent=0 // pred_check_branch
    %17 = sbr.rel (0) target = $region13
  $region12: #{decoder_forward.32} parent=0 // pred_region
    _
  $region13: #{decoder_forward.32} parent=0 // pred_fallthru
    _
  // Predicated region
  $region14: #{decoder_forward.32} parent=0 // pred_check
    _
  $region15: #{decoder_forward.32} parent=0 // pred_check_branch
    %19 = sbr.rel (0) target = $region17
  $region16: #{decoder_forward.32} parent=0 // pred_region
    _
  $region17: #{decoder_forward.32} parent=0 // pred_fallthru
    _
  // Predicated region
  $region18: #{decoder_forward.32} parent=0 // pred_check
    _
  $region19: #{decoder_forward.32} parent=0 // pred_check_branch
    %21 = sbr.rel (0) target = $region21
  $region20: #{decoder_forward.32} parent=0 // pred_region
    _
  $region21: #{decoder_forward.32} parent=0 // pred_fallthru
    _
  // Predicated region
  $region22: #{decoder_forward.32} parent=0 // pred_check
    _
  $region23: #{decoder_forward.32} parent=0 // pred_check_branch
    %23 = sbr.rel (0) target = $region25
  $region24: #{decoder_forward.32} parent=0 // pred_region
    _
  $region25: #{decoder_forward.32} parent=0 // pred_fallthru
    _
  // Predicated region
  $region26: #{decoder_forward.32} parent=0 // pred_check
    _
  $region27: #{decoder_forward.32} parent=0 // pred_check_branch
    %25 = sbr.rel (0) target = $region29
  $region28: #{decoder_forward.32} parent=0 // pred_region
    _
  $region29: #{decoder_forward.32} parent=0 // pred_fallthru
    _
  %v26 = vld [vmem:[%s0] sm:$0xff]
  %v27 = vld [vmem:[%s0 + $0x8] sm:$0xff]
  %v28 = vld [vmem:[%s1] sm:$0x1]
  %v29 = vld [vmem:[%s2] sm:$0x1]
  %vm30 = vcmask 261120
  %v31 = vsel %vm30, %v26, 0.0
  %32 = vadd.xlane.f32.xlu0 %v31
  %v33 = vpop.xlane.xlu0 %32
  %v34 = vsel %vm30, %v27, 0.0
  %35 = vadd.xlane.f32.xlu0 %v34
  %v36 = vpop.xlane.xlu0 %35
  %v37 = vrcp.pop 32.0
  %v38 = vmul.f32 32.0, %v37
  %v39 = vsub.f32 1.0, %v38
  %v40 = vmul.f32 %v37, %v39
  %v41 = vadd.f32 %v37, %v40
  %vm42 = vweird.f32 %v37
  %v43 = vsel %vm42, %v37, %v41
  %v44 = vmul.f32 %v33, %v43
  %v45 = vmul.f32 %v36, %v43
  %v46 = vsub.f32 %v26, %v44
  %v47 = vsub.f32 %v27, %v45
  %v48 = vmul.f32 %v46, %v46
  %v49 = vmul.f32 %v47, %v47
  %v50 = vsel %vm30, %v48, 0.0
  %51 = vadd.xlane.f32.xlu0 %v50
  %v52 = vpop.xlane.xlu0 %51
  %v53 = vsel %vm30, %v49, 0.0
  %54 = vadd.xlane.f32.xlu0 %v53
  %v55 = vpop.xlane.xlu0 %54
  %v56 = vrcp.pop 31.0
  %v57 = vmul.f32 31.0, %v56
  %v58 = vsub.f32 1.0, %v57
  %v59 = vmul.f32 %v56, %v58
  %v60 = vadd.f32 %v56, %v59
  %vm61 = vweird.f32 %v56
  %v62 = vsel %vm61, %v56, %v60
  %v63 = vmul.f32 %v52, %v62
  %v64 = vmul.f32 %v55, %v62
  %v65 = vrsqrt.pop %v63
  %v66 = vmul.f32 %v65, %v63
  %v67 = vmul.f32 %v66, %v65
  %v68 = vmul.f32 0.5, %v67
  %v69 = vsub.f32 1.5, %v68
  %v70 = vmul.f32 %v65, %v69
  %v71 = vmul.f32 %v63, %v70
  %vm72 = vcmp.eq.f32.partialorder %v63, inf
  %v73 = vsel %vm72, %v63, %v71
  %vm74 = vcmp.eq.f32.partialorder %v63, 0.0
  %v75 = vand.u32 %v63, 2147483648
  %v76 = vsel %vm74, %v75, %v73
  %v77 = vrsqrt.pop %v64
  %v78 = vmul.f32 %v77, %v64
  %v79 = vmul.f32 %v78, %v77
  %v80 = vmul.f32 0.5, %v79
  %v81 = vsub.f32 1.5, %v80
  %v82 = vmul.f32 %v77, %v81
  %v83 = vmul.f32 %v64, %v82
  %vm84 = vcmp.eq.f32.partialorder %v64, inf
  %v85 = vsel %vm84, %v64, %v83
  %vm86 = vcmp.eq.f32.partialorder %v64, 0.0
  %v87 = vand.u32 %v64, 2147483648
  %v88 = vsel %vm86, %v87, %v85
  %v90 = vperm.slane %v28, 0
  %v92 = vmul.f32 %v90, %v46
  %v93 = vmul.f32 %v90, %v47
  %v94 = vadd.f32 %v76, 1e-06
  %v95 = vadd.f32 %v88, 1e-06
  %v96 = vrcp.pop %v94
  %v97 = vmul.f32 %v94, %v96
  %v98 = vsub.f32 1.0, %v97
  %v99 = vmul.f32 %v96, %v98
  %v100 = vadd.f32 %v96, %v99
  %vm101 = vweird.f32 %v94
  %vm102 = vweird.f32 %v96
  %vm103 = vmor %vm101, %vm102
  %v104 = vsel %vm103, %v96, %v100
  %v105 = vand.u32 2147483647, %v94
  %vm106 = vcmp.eq.f32.partialorder %v105, 8.507059e+37
  %v107 = vand.u32 %v94, 2147483648
  %v108 = vor.u32 1.1754944e-38, %v107
  %v109 = vsel %vm106, %v108, %v104
  %v110 = vmul.f32 %v92, %v109
  %v111 = vrcp.pop %v95
  %v112 = vmul.f32 %v95, %v111
  %v113 = vsub.f32 1.0, %v112
  %v114 = vmul.f32 %v111, %v113
  %v115 = vadd.f32 %v111, %v114
  %vm116 = vweird.f32 %v95
  %vm117 = vweird.f32 %v111
  %vm118 = vmor %vm116, %vm117
  %v119 = vsel %vm118, %v111, %v115
  %v120 = vand.u32 2147483647, %v95
  %vm121 = vcmp.eq.f32.partialorder %v120, 8.507059e+37
  %v122 = vand.u32 %v95, 2147483648
  %v123 = vor.u32 1.1754944e-38, %v122
  %v124 = vsel %vm121, %v123, %v119
  %v125 = vmul.f32 %v93, %v124
  %v127 = vperm.slane %v29, 0
  %v129 = vadd.f32 %v110, %v127
  %v130 = vadd.f32 %v125, %v127
  %v131 = vld [vmem:[%s3] sm:$0xff]
  %v132 = vld [vmem:[%s3 + $0x8] sm:$0xff]
  %v133 = vld [vmem:[%s3 + $0x10] sm:$0xff]
  %v134 = vld [vmem:[%s3 + $0x18] sm:$0xff]
  %v135 = vld [vmem:[%s4] sm:$0x1]
  %v137 = vperm.slane %v135, 0
  %v140 = vsel %vm30, %v129, 0
  %v143 = vsel %vm30, %v130, 0
  %145 = vmatpush.msra.mxu0 0.0
  %146 = vmatpush.msra.mxu0 0.0
  %147 = vmatpush.msra.mxu0 0.0
  %148 = vmatpush.msra.mxu0 0.0
  %149 = vmatpush.msra.mxu0 0.0
  %150 = vmatpush.msra.mxu0 0.0
  %151 = vmatpush.msra.mxu0 0.0
  %152 = vmatpush.msra.mxu0 0.0
  %153 = vmatpush.msra.mxu0 0.0
  %154 = vmatpush.msra.mxu0 0.0
  %155 = vmatpush.msra.mxu0 0.0
  %156 = vmatpush.msra.mxu0 0.0
  %157 = vmatpush.msra.mxu0 %v134
  %158 = vmatpush.msra.mxu0 %v133
  %159 = vmatpush.msra.mxu0 %v132
  %160 = vmatpush.msra.mxu0 %v131
  %161 = vmatmul.f32.gmra.mxu0 %v140
  %v162 = vpop.f32.mrf.mxu0
  %v163 = vadd.f32 %v137, %v162
  %164 = vmatmul.f32.gmra.mxu0 %v143
  %v165 = vpop.f32.mrf.mxu0
  %v166 = vadd.f32 %v137, %v165
  %167 = vdwg.mxu0
  %v168 = vmax.f32 %v163, 0.0
  %v169 = vmax.f32 %v166, 0.0
  %v170 = vld [vmem:[%s5] sm:$0xff]
  %v171 = vld [vmem:[%s5 + $0x8] sm:$0xff]
  %v172 = vld [vmem:[%s5 + $0x10] sm:$0xff]
  %v173 = vld [vmem:[%s5 + $0x18] sm:$0xff]
  %v174 = vld [vmem:[%s5 + $0x20] sm:$0xff]
  %v175 = vld [vmem:[%s5 + $0x28] sm:$0xff]
  %v176 = vld [vmem:[%s5 + $0x30] sm:$0xff]
  %v177 = vld [vmem:[%s5 + $0x38] sm:$0xff]
  %vm178 = vcmask 523264
  %v180 = vsel %vm178, %v168, 0
  %v183 = vsel %vm178, %v169, 0
  %185 = vmatpush.msra.mxu0 0.0
  %186 = vmatpush.msra.mxu0 0.0
  %187 = vmatpush.msra.mxu0 0.0
  %188 = vmatpush.msra.mxu0 0.0
  %189 = vmatpush.msra.mxu0 0.0
  %190 = vmatpush.msra.mxu0 0.0
  %191 = vmatpush.msra.mxu0 0.0
  %192 = vmatpush.msra.mxu0 0.0
  %193 = vmatpush.msra.mxu0 %v177
  %194 = vmatpush.msra.mxu0 %v176
  %195 = vmatpush.msra.mxu0 %v175
  %196 = vmatpush.msra.mxu0 %v174
  %197 = vmatpush.msra.mxu0 %v173
  %198 = vmatpush.msra.mxu0 %v172
  %199 = vmatpush.msra.mxu0 %v171
  %200 = vmatpush.msra.mxu0 %v170
  %201 = vmatmul.f32.gmra.mxu0 %v180
  %v202 = vpop.f32.mrf.mxu0
  %v203 = vadd.f32 0.0, %v202
  %204 = vmatmul.f32.gmra.mxu0 %v183
  %v205 = vpop.f32.mrf.mxu0
  %v206 = vadd.f32 0.0, %v205
  %207 = vdwg.mxu0
  %v208 = vadd.f32 %v26, %v203
  %v209 = vadd.f32 %v27, %v206
  %v210 = vld [vmem:[%s6] sm:$0x1]
  %v212 = vperm.slane %v210, 0
  %v214 = vadd.f32 %v208, %v212
  %v215 = vadd.f32 %v209, %v212
  %216 = vst.msk [vmem:[%s7] sm:$0xff] %vm30, %v214
  %217 = vst.msk [vmem:[%s7 + $0x8] sm:$0xff] %vm30, %v215
  // Predicated region
  $region30: #{decoder_forward.32} parent=0 // pred_check
    _
  $region31: #{decoder_forward.32} parent=0 // pred_check_branch
    %219 = sbr.rel (0) target = $region33
  $region32: #{decoder_forward.32} parent=0 // pred_region
    _
  $region33: #{decoder_forward.32} parent=0 // pred_fallthru
    _
  // Predicated region
  $region34: #{decoder_forward.32} parent=0 // pred_check
    _
  $region35: #{decoder_forward.32} parent=0 // pred_check_branch
    %221 = sbr.rel (0) target = $region37
  $region36: #{decoder_forward.32} parent=0 // pred_region
    _
  $region37: #{decoder_forward.32} parent=0 // pred_fallthru
    _

// kernel: decoder_forward.28
$region0: #{decoder_forward.28}
  #allocation0 [shape = 'u32[]', space=smem, size = 0x4, offset = 0x4, fixed_abs, tag = 'smem constant byte address 0x4 - core index']
  #allocation1 [shape = 'u32[72,128]{1,0:T(1,128)}', space=vmem, size = 0x9000, scoped, tag = 'internal scratch']
  %s0 = inlined_call_operand.vmem [shape: f32[16,32], index: 0, kind: input, shape index: {}]
  %s1 = inlined_call_operand.hbm [shape: f32[1,32], index: 1, kind: input, shape index: {}]
  %s2 = inlined_call_operand.hbm [shape: f32[1,32], index: 2, kind: input, shape index: {}]
  %s3 = inlined_call_operand.hbm [shape: f32[32,32], index: 3, kind: input, shape index: {}]
  %s4 = inlined_call_operand.hbm [shape: f32[1,32], index: 4, kind: input, shape index: {}]
  %s5 = inlined_call_operand.vmem [shape: f32[16,32], index: 5, kind: output, shape index: {}]
  %s6 = sld [smem:[#allocation0]]
  $region46: #{decoder_forward.28} parent=0
    _
  %s8 = ssub.s32 1, %s6
  %s9 = scalar_select 0, %s8, %s6
  $region1: #{decoder_forward.28} parent=0
    #allocation2 [shape = 'u8[512]{0}', space=vmem, size = 0x400, scoped, tag = 'input window, operand 1, single buffered']
    #allocation3 [shape = 's32[1]{0}', space=sflag, size = 0x4, scoped, tag = 'scoped memory for decoder_forward.28']
    #allocation4 [shape = 'u8[512]{0}', space=vmem, size = 0x400, scoped, tag = 'input window, operand 2, single buffered']
    #allocation5 [shape = 's32[1]{0}', space=sflag, size = 0x4, scoped, tag = 'scoped memory for decoder_forward.28']
    #allocation6 [shape = 'u8[16384]{0}', space=vmem, size = 0x4000, scoped, tag = 'input window, operand 3, single buffered']
    #allocation7 [shape = 'u8[512]{0}', space=vmem, size = 0x400, scoped, tag = 'input window, operand 4, single buffered']
    #allocation8 [shape = 's32[1]{0}', space=sflag, size = 0x4, scoped, tag = 'scoped memory for decoder_forward.28']
    %10 = vsyncpa [#allocation3], 0
    %11 = vsyncpa [#allocation5], 0
    %12 = vsyncpa [#allocation8], 0
    // Predicated region
    $region2: #{decoder_forward.28} parent=1 // pred_check
      _
    $region3: #{decoder_forward.28} parent=1 // pred_check_branch
      %14 = sbr.rel (0) target = $region5
    $region4: #{decoder_forward.28} parent=1 // pred_region
      _
    $region5: #{decoder_forward.28} parent=1 // pred_fallthru
      _
    // Predicated region
    $region6: #{decoder_forward.28} parent=1 // pred_check
      _
    $region7: #{decoder_forward.28} parent=1 // pred_check_branch
      %16 = sbr.rel (0) target = $region9
    $region8: #{decoder_forward.28} parent=1 // pred_region
      %18 = vsyncadd [#allocation3], 0
      %s20 = sshll.u32 %s1, 4
      %s21 = int_to_ptr.hbm [resolvable:$true] %s20
      %s22 = sshll.u32 [#allocation2], 4
      %s23 = int_to_ptr.vmem [resolvable:$true] %s22
      %25 = dma.hbm_to_vmem [thread:$0]  %s21, 16, %s23, [#allocation3]
    $region9: #{decoder_forward.28} parent=1 // pred_fallthru
      _
    // Predicated region
    $region10: #{decoder_forward.28} parent=1 // pred_check
      _
    $region11: #{decoder_forward.28} parent=1 // pred_check_branch
      %27 = sbr.rel (0) target = $region13
    $region12: #{decoder_forward.28} parent=1 // pred_region
      %29 = vsyncadd [#allocation5], 0
      %s31 = sshll.u32 %s2, 4
      %s32 = int_to_ptr.hbm [resolvable:$true] %s31
      %s33 = sshll.u32 [#allocation4], 4
      %s34 = int_to_ptr.vmem [resolvable:$true] %s33
      %36 = dma.hbm_to_vmem [thread:$0]  %s32, 16, %s34, [#allocation5]
    $region13: #{decoder_forward.28} parent=1 // pred_fallthru
      _
    // Predicated region
    $region14: #{decoder_forward.28} parent=1 // pred_check
      _
    $region15: #{decoder_forward.28} parent=1 // pred_check_branch
      %38 = sbr.rel (0) target = $region17
    $region16: #{decoder_forward.28} parent=1 // pred_region
      %40 = vsyncadd [#allocation5], 0
      %s41 = sshll.u32 %s3, 4
      %s42 = int_to_ptr.hbm [resolvable:$true] %s41
      %s43 = sshll.u32 [#allocation6], 4
      %s44 = int_to_ptr.vmem [resolvable:$true] %s43
      %49 = dma.hbm_to_vmem [thread:$0]  %s42, 512, %s44, [#allocation5], 128, 128, 8
    $region17: #{decoder_forward.28} parent=1 // pred_fallthru
      _
    // Predicated region
    $region18: #{decoder_forward.28} parent=1 // pred_check
      _
    $region19: #{decoder_forward.28} parent=1 // pred_check_branch
      %51 = sbr.rel (0) target = $region21
    $region20: #{decoder_forward.28} parent=1 // pred_region
      %53 = vsyncadd [#allocation8], 0
      %s55 = sshll.u32 %s4, 4
      %s56 = int_to_ptr.hbm [resolvable:$true] %s55
      %s57 = sshll.u32 [#allocation7], 4
      %s58 = int_to_ptr.vmem [resolvable:$true] %s57
      %60 = dma.hbm_to_vmem [thread:$0]  %s56, 16, %s58, [#allocation8]
    $region21: #{decoder_forward.28} parent=1 // pred_fallthru
      _
    // Predicated region
    $region22: #{decoder_forward.28} parent=1 // pred_check
      _
    $region23: #{decoder_forward.28} parent=1 // pred_check_branch
      %62 = sbr.rel (0) target = $region25
    $region24: #{decoder_forward.28} parent=1 // pred_region
      %64 = dma.done [#allocation3], 16
    $region25: #{decoder_forward.28} parent=1 // pred_fallthru
      _
    // Predicated region
    $region26: #{decoder_forward.28} parent=1 // pred_check
      _
    $region27: #{decoder_forward.28} parent=1 // pred_check_branch
      %66 = sbr.rel (0) target = $region29
    $region28: #{decoder_forward.28} parent=1 // pred_region
      %68 = dma.done [#allocation5], 16
    $region29: #{decoder_forward.28} parent=1 // pred_fallthru
      _
    // Predicated region
    $region30: #{decoder_forward.28} parent=1 // pred_check
      _
    $region31: #{decoder_forward.28} parent=1 // pred_check_branch
      %70 = sbr.rel (0) target = $region33
    $region32: #{decoder_forward.28} parent=1 // pred_region
      %72 = dma.done [#allocation5], 512
    $region33: #{decoder_forward.28} parent=1 // pred_fallthru
      _
    // Predicated region
    $region34: #{decoder_forward.28} parent=1 // pred_check
      _
    $region35: #{decoder_forward.28} parent=1 // pred_check_branch
      %74 = sbr.rel (0) target = $region37
    $region36: #{decoder_forward.28} parent=1 // pred_region
      %76 = dma.done [#allocation8], 16
    $region37: #{decoder_forward.28} parent=1 // pred_fallthru
      _
    %v77 = vld [vmem:[%s0] sm:$0xff]
    %v78 = vld [vmem:[%s0 + $0x8] sm:$0xff]
    %v79 = vld [vmem:[#allocation2] sm:$0x1]
    %v80 = vld [vmem:[#allocation4] sm:$0x1]
    %vm81 = vcmask 261120
    %v82 = vsel %vm81, %v77, 0.0
    %83 = vadd.xlane.f32.xlu0 %v82
    %v84 = vpop.xlane.xlu0 %83
    %v85 = vsel %vm81, %v78, 0.0
    %86 = vadd.xlane.f32.xlu0 %v85
    %v87 = vpop.xlane.xlu0 %86
    %v88 = vrcp.pop 32.0
    %v89 = vmul.f32 32.0, %v88
    %v90 = vsub.f32 1.0, %v89
    %v91 = vmul.f32 %v88, %v90
    %v92 = vadd.f32 %v88, %v91
    %vm93 = vweird.f32 %v88
    %v94 = vsel %vm93, %v88, %v92
    %v95 = vmul.f32 %v84, %v94
    %v96 = vmul.f32 %v87, %v94
    %v97 = vsub.f32 %v77, %v95
    %v98 = vsub.f32 %v78, %v96
    %v99 = vmul.f32 %v97, %v97
    %v100 = vmul.f32 %v98, %v98
    %v101 = vsel %vm81, %v99, 0.0
    %102 = vadd.xlane.f32.xlu0 %v101
    %v103 = vpop.xlane.xlu0 %102
    %v104 = vsel %vm81, %v100, 0.0
    %105 = vadd.xlane.f32.xlu0 %v104
    %v106 = vpop.xlane.xlu0 %105
    %v107 = vrcp.pop 31.0
    %v108 = vmul.f32 31.0, %v107
    %v109 = vsub.f32 1.0, %v108
    %v110 = vmul.f32 %v107, %v109
    %v111 = vadd.f32 %v107, %v110
    %vm112 = vweird.f32 %v107
    %v113 = vsel %vm112, %v107, %v111
    %v114 = vmul.f32 %v103, %v113
    %v115 = vmul.f32 %v106, %v113
    %v116 = vrsqrt.pop %v114
    %v117 = vmul.f32 %v116, %v114
    %v118 = vmul.f32 %v117, %v116
    %v119 = vmul.f32 0.5, %v118
    %v120 = vsub.f32 1.5, %v119
    %v121 = vmul.f32 %v116, %v120
    %v122 = vmul.f32 %v114, %v121
    %vm123 = vcmp.eq.f32.partialorder %v114, inf
    %v124 = vsel %vm123, %v114, %v122
    %vm125 = vcmp.eq.f32.partialorder %v114, 0.0
    %v126 = vand.u32 %v114, 2147483648
    %v127 = vsel %vm125, %v126, %v124
    %v128 = vrsqrt.pop %v115
    %v129 = vmul.f32 %v128, %v115
    %v130 = vmul.f32 %v129, %v128
    %v131 = vmul.f32 0.5, %v130
    %v132 = vsub.f32 1.5, %v131
    %v133 = vmul.f32 %v128, %v132
    %v134 = vmul.f32 %v115, %v133
    %vm135 = vcmp.eq.f32.partialorder %v115, inf
    %v136 = vsel %vm135, %v115, %v134
    %vm137 = vcmp.eq.f32.partialorder %v115, 0.0
    %v138 = vand.u32 %v115, 2147483648
    %v139 = vsel %vm137, %v138, %v136
    %v141 = vperm.slane %v79, 0
    %v143 = vmul.f32 %v141, %v97
    %v144 = vmul.f32 %v141, %v98
    %v145 = vadd.f32 %v127, 1e-06
    %v146 = vadd.f32 %v139, 1e-06
    %v147 = vrcp.pop %v145
    %v148 = vmul.f32 %v145, %v147
    %v149 = vsub.f32 1.0, %v148
    %v150 = vmul.f32 %v147, %v149
    %v151 = vadd.f32 %v147, %v150
    %vm152 = vweird.f32 %v145
    %vm153 = vweird.f32 %v147
    %vm154 = vmor %vm152, %vm153
    %v155 = vsel %vm154, %v147, %v151
    %v156 = vand.u32 2147483647, %v145
    %vm157 = vcmp.eq.f32.partialorder %v156, 8.507059e+37
    %v158 = vand.u32 %v145, 2147483648
    %v159 = vor.u32 1.1754944e-38, %v158
    %v160 = vsel %vm157, %v159, %v155
    %v161 = vmul.f32 %v143, %v160
    %v162 = vrcp.pop %v146
    %v163 = vmul.f32 %v146, %v162
    %v164 = vsub.f32 1.0, %v163
    %v165 = vmul.f32 %v162, %v164
    %v166 = vadd.f32 %v162, %v165
    %vm167 = vweird.f32 %v146
    %vm168 = vweird.f32 %v162
    %vm169 = vmor %vm167, %vm168
    %v170 = vsel %vm169, %v162, %v166
    %v171 = vand.u32 2147483647, %v146
    %vm172 = vcmp.eq.f32.partialorder %v171, 8.507059e+37
    %v173 = vand.u32 %v146, 2147483648
    %v174 = vor.u32 1.1754944e-38, %v173
    %v175 = vsel %vm172, %v174, %v170
    %v176 = vmul.f32 %v144, %v175
    %v178 = vperm.slane %v80, 0
    %v180 = vadd.f32 %v161, %v178
    %v181 = vadd.f32 %v176, %v178
    %v182 = vld [vmem:[#allocation6] sm:$0xff]
    %v183 = vld [vmem:[#allocation6 + $0x8] sm:$0xff]
    %v184 = vld [vmem:[#allocation6 + $0x10] sm:$0xff]
    %v185 = vld [vmem:[#allocation6 + $0x18] sm:$0xff]
    %v186 = vld [vmem:[#allocation7] sm:$0x1]
    %v188 = vperm.slane %v186, 0
    %v191 = vsel %vm81, %v180, 0
    %v194 = vsel %vm81, %v181, 0
    %196 = vmatpush.msra.mxu0 0.0
    %197 = vmatpush.msra.mxu0 0.0
    %198 = vmatpush.msra.mxu0 0.0
    %199 = vmatpush.msra.mxu0 0.0
    %200 = vmatpush.msra.mxu0 0.0
    %201 = vmatpush.msra.mxu0 0.0
    %202 = vmatpush.msra.mxu0 0.0
    %203 = vmatpush.msra.mxu0 0.0
    %204 = vmatpush.msra.mxu0 0.0
    %205 = vmatpush.msra.mxu0 0.0
    %206 = vmatpush.msra.mxu0 0.0
    %207 = vmatpush.msra.mxu0 0.0
    %208 = vmatpush.msra.mxu0 %v185
    %209 = vmatpush.msra.mxu0 %v184
    %210 = vmatpush.msra.mxu0 %v183
    %211 = vmatpush.msra.mxu0 %v182
    %212 = vmatmul.f32.gmra.mxu0 %v191
    %v213 = vpop.f32.mrf.mxu0
    %v214 = vadd.f32 %v188, %v213
    %215 = vmatmul.f32.gmra.mxu0 %v194
    %v216 = vpop.f32.mrf.mxu0
    %v217 = vadd.f32 %v188, %v216
    %218 = vdwg.mxu0
    %219 = vst.msk [vmem:[%s5] sm:$0xff] %vm81, %v214
    %220 = vst.msk [vmem:[%s5 + $0x8] sm:$0xff] %vm81, %v217
    // Predicated region
    $region38: #{decoder_forward.28} parent=1 // pred_check
      _
    $region39: #{decoder_forward.28} parent=1 // pred_check_branch
      %222 = sbr.rel (0) target = $region41
    $region40: #{decoder_forward.28} parent=1 // pred_region
      _
    $region41: #{decoder_forward.28} parent=1 // pred_fallthru
      _
    // Predicated region
    $region42: #{decoder_forward.28} parent=1 // pred_check
      _
    $region43: #{decoder_forward.28} parent=1 // pred_check_branch
      %224 = sbr.rel (0) target = $region45
    $region44: #{decoder_forward.28} parent=1 // pred_region
      _
    $region45: #{decoder_forward.28} parent=1 // pred_fallthru
      _
    %225 = vsyncpa [#allocation3], 1
    %226 = vsyncpa [#allocation5], 1
    %227 = vsyncpa [#allocation8], 1

// kernel: decoder_forward.33
$region0: #{decoder_forward.33}
  #allocation0 [shape = 'u32[]', space=smem, size = 0x4, offset = 0x4, fixed_abs, tag = 'smem constant byte address 0x4 - core index']
  #allocation1 [shape = 'u32[72,128]{1,0:T(1,128)}', space=vmem, size = 0x9000, scoped, tag = 'internal scratch']
  %s0 = inlined_call_operand.vmem [shape: f32[16,32], index: 0, kind: input, shape index: {}]
  %s1 = inlined_call_operand.vmem [shape: f32[1,32], index: 1, kind: input, shape index: {}]
  %s2 = inlined_call_operand.vmem [shape: f32[1,32], index: 2, kind: input, shape index: {}]
  %s3 = inlined_call_operand.hbm [shape: f32[16,32], index: 3, kind: output, shape index: {}]
  %s4 = sld [smem:[#allocation0]]
  $region22: #{decoder_forward.33} parent=0
    _
  %s6 = ssub.s32 1, %s4
  %s7 = scalar_select 0, %s6, %s4
  $region1: #{decoder_forward.33} parent=0
    #allocation2 [shape = 'u8[8192]{0}', space=vmem, size = 0x2000, scoped, tag = 'output window, operand 0, single buffered']
    #allocation3 [shape = 's32[1]{0}', space=sflag, size = 0x4, scoped, tag = 'scoped memory for decoder_forward.33']
    %8 = vsyncpa [#allocation3], 0
    // Predicated region
    $region2: #{decoder_forward.33} parent=1 // pred_check
      _
    $region3: #{decoder_forward.33} parent=1 // pred_check_branch
      %10 = sbr.rel (0) target = $region5
    $region4: #{decoder_forward.33} parent=1 // pred_region
      _
    $region5: #{decoder_forward.33} parent=1 // pred_fallthru
      _
    // Predicated region
    $region6: #{decoder_forward.33} parent=1 // pred_check
      _
    $region7: #{decoder_forward.33} parent=1 // pred_check_branch
      %12 = sbr.rel (0) target = $region9
    $region8: #{decoder_forward.33} parent=1 // pred_region
      _
    $region9: #{decoder_forward.33} parent=1 // pred_fallthru
      _
    // Predicated region
    $region10: #{decoder_forward.33} parent=1 // pred_check
      _
    $region11: #{decoder_forward.33} parent=1 // pred_check_branch
      %14 = sbr.rel (0) target = $region13
    $region12: #{decoder_forward.33} parent=1 // pred_region
      _
    $region13: #{decoder_forward.33} parent=1 // pred_fallthru
      _
    %v15 = vld [vmem:[%s0] sm:$0xff]
    %v16 = vld [vmem:[%s0 + $0x8] sm:$0xff]
    %v17 = vld [vmem:[%s1] sm:$0x1]
    %v18 = vld [vmem:[%s2] sm:$0x1]
    %vm19 = vcmask 261120
    %v20 = vsel %vm19, %v15, 0.0
    %21 = vadd.xlane.f32.xlu0 %v20
    %v22 = vpop.xlane.xlu0 %21
    %v23 = vsel %vm19, %v16, 0.0
    %24 = vadd.xlane.f32.xlu0 %v23
    %v25 = vpop.xlane.xlu0 %24
    %v26 = vrcp.pop 32.0
    %v27 = vmul.f32 32.0, %v26
    %v28 = vsub.f32 1.0, %v27
    %v29 = vmul.f32 %v26, %v28
    %v30 = vadd.f32 %v26, %v29
    %vm31 = vweird.f32 %v26
    %v32 = vsel %vm31, %v26, %v30
    %v33 = vmul.f32 %v22, %v32
    %v34 = vmul.f32 %v25, %v32
    %v35 = vsub.f32 %v15, %v33
    %v36 = vsub.f32 %v16, %v34
    %v37 = vmul.f32 %v35, %v35
    %v38 = vmul.f32 %v36, %v36
    %v39 = vsel %vm19, %v37, 0.0
    %40 = vadd.xlane.f32.xlu0 %v39
    %v41 = vpop.xlane.xlu0 %40
    %v42 = vsel %vm19, %v38, 0.0
    %43 = vadd.xlane.f32.xlu0 %v42
    %v44 = vpop.xlane.xlu0 %43
    %v45 = vrcp.pop 31.0
    %v46 = vmul.f32 31.0, %v45
    %v47 = vsub.f32 1.0, %v46
    %v48 = vmul.f32 %v45, %v47
    %v49 = vadd.f32 %v45, %v48
    %vm50 = vweird.f32 %v45
    %v51 = vsel %vm50, %v45, %v49
    %v52 = vmul.f32 %v41, %v51
    %v53 = vmul.f32 %v44, %v51
    %v54 = vrsqrt.pop %v52
    %v55 = vmul.f32 %v54, %v52
    %v56 = vmul.f32 %v55, %v54
    %v57 = vmul.f32 0.5, %v56
    %v58 = vsub.f32 1.5, %v57
    %v59 = vmul.f32 %v54, %v58
    %v60 = vmul.f32 %v52, %v59
    %vm61 = vcmp.eq.f32.partialorder %v52, inf
    %v62 = vsel %vm61, %v52, %v60
    %vm63 = vcmp.eq.f32.partialorder %v52, 0.0
    %v64 = vand.u32 %v52, 2147483648
    %v65 = vsel %vm63, %v64, %v62
    %v66 = vrsqrt.pop %v53
    %v67 = vmul.f32 %v66, %v53
    %v68 = vmul.f32 %v67, %v66
    %v69 = vmul.f32 0.5, %v68
    %v70 = vsub.f32 1.5, %v69
    %v71 = vmul.f32 %v66, %v70
    %v72 = vmul.f32 %v53, %v71
    %vm73 = vcmp.eq.f32.partialorder %v53, inf
    %v74 = vsel %vm73, %v53, %v72
    %vm75 = vcmp.eq.f32.partialorder %v53, 0.0
    %v76 = vand.u32 %v53, 2147483648
    %v77 = vsel %vm75, %v76, %v74
    %v79 = vperm.slane %v17, 0
    %v81 = vmul.f32 %v79, %v35
    %v82 = vmul.f32 %v79, %v36
    %v83 = vadd.f32 %v65, 1e-06
    %v84 = vadd.f32 %v77, 1e-06
    %v85 = vrcp.pop %v83
    %v86 = vmul.f32 %v83, %v85
    %v87 = vsub.f32 1.0, %v86
    %v88 = vmul.f32 %v85, %v87
    %v89 = vadd.f32 %v85, %v88
    %vm90 = vweird.f32 %v83
    %vm91 = vweird.f32 %v85
    %vm92 = vmor %vm90, %vm91
    %v93 = vsel %vm92, %v85, %v89
    %v94 = vand.u32 2147483647, %v83
    %vm95 = vcmp.eq.f32.partialorder %v94, 8.507059e+37
    %v96 = vand.u32 %v83, 2147483648
    %v97 = vor.u32 1.1754944e-38, %v96
    %v98 = vsel %vm95, %v97, %v93
    %v99 = vmul.f32 %v81, %v98
    %v100 = vrcp.pop %v84
    %v101 = vmul.f32 %v84, %v100
    %v102 = vsub.f32 1.0, %v101
    %v103 = vmul.f32 %v100, %v102
    %v104 = vadd.f32 %v100, %v103
    %vm105 = vweird.f32 %v84
    %vm106 = vweird.f32 %v100
    %vm107 = vmor %vm105, %vm106
    %v108 = vsel %vm107, %v100, %v104
    %v109 = vand.u32 2147483647, %v84
    %vm110 = vcmp.eq.f32.partialorder %v109, 8.507059e+37
    %v111 = vand.u32 %v84, 2147483648
    %v112 = vor.u32 1.1754944e-38, %v111
    %v113 = vsel %vm110, %v112, %v108
    %v114 = vmul.f32 %v82, %v113
    %v116 = vperm.slane %v18, 0
    %v118 = vadd.f32 %v99, %v116
    %v119 = vadd.f32 %v114, %v116
    %120 = vst.msk [vmem:[#allocation2] sm:$0xff] %vm19, %v118
    %121 = vst.msk [vmem:[#allocation2 + $0x8] sm:$0xff] %vm19, %v119
    // Predicated region
    $region14: #{decoder_forward.33} parent=1 // pred_check
      _
    $region15: #{decoder_forward.33} parent=1 // pred_check_branch
      %123 = sbr.rel (0) target = $region17
    $region16: #{decoder_forward.33} parent=1 // pred_region
      %125 = vsyncadd [#allocation3], 0
      %s126 = sshll.u32 [#allocation2], 4
      %s127 = int_to_ptr.vmem [resolvable:$true] %s126
      %s128 = sshll.u32 %s3, 4
      %s129 = int_to_ptr.hbm [resolvable:$true] %s128
      %134 = dma.vmem_to_hbm [thread:$0]  %s127, 256, %s129, [#allocation3], 128, 128, 8
    $region17: #{decoder_forward.33} parent=1 // pred_fallthru
      _
    // Predicated region
    $region18: #{decoder_forward.33} parent=1 // pred_check
      _
    $region19: #{decoder_forward.33} parent=1 // pred_check_branch
      %136 = sbr.rel (0) target = $region21
    $region20: #{decoder_forward.33} parent=1 // pred_region
      %138 = dma.done [#allocation3], 256
    $region21: #{decoder_forward.33} parent=1 // pred_fallthru
      _
    %139 = vsyncpa [#allocation3], 1

</llo_original>
